<compile_context>
chip_gen: v7x
topology: tpu7x:2x2x1
jax: 0.10.0
libtpu: 0.0.40
codegen_flags: <defaults>
</compile_context>

<pallas_src>
import jax
import jax.numpy as jnp
from jax.experimental import pallas as pl
from jax.experimental.pallas import tpu as pltpu

CHANNELS = 1
IMG_SIZE = 28
IMG_SHAPE = (CHANNELS, IMG_SIZE, IMG_SIZE)
LATENT_DIM = 100
LATENT_PADDED = 128                                    # pad K 100 -> 128 (MXU-aligned)
OUT_FEATURES = CHANNELS * IMG_SIZE * IMG_SIZE          # 784
OUT_PADDED = 896                                       # 7 * 128 (lane-dense store)
BN_EPS = 1e-5                                          # nn.BatchNorm1d default eps
LRELU_SLOPE = 0.2                                      # nn.LeakyReLU(0.2)

LAYER_DIMS = [LATENT_PADDED, 128, 256, 512, 1024, OUT_PADDED]   # padded fan-in/out
BN_DIMS = (256, 512, 1024)


def _vmem_spec():
    return pl.BlockSpec(memory_space=pltpu.MemorySpace.VMEM)


# ---------------- fused kernel ----------------

def generator_kernel(z_ref,
                     w0_ref, w1_ref, w2_ref, w3_ref, w4_ref,
                     b0_ref, b4_ref,
                     gb1_ref, gb2_ref, gb3_ref,
                     o_ref):
    def matmul(h, w_ref):
        # Cast activations to the bf16 weight dtype only at the MXU input;
        # accumulate in f32.
        return jnp.dot(h.astype(w_ref.dtype), w_ref[...],
                       preferred_element_type=jnp.float32)

    def lrelu(y):
        return jnp.maximum(y, LRELU_SLOPE * y)

    def batchnorm(y, gb_ref):
        # Training-mode BatchNorm1d, single-pass stats: var = E[y^2] - E[y]^2.
        # gamma folded into the rsqrt scale; whole BN is one (B,N) mul-add.
        mean = jnp.mean(y, axis=0, keepdims=True)
        mean_sq = jnp.mean(y * y, axis=0, keepdims=True)
        var = mean_sq - mean * mean
        scale = gb_ref[0:1, :] * jax.lax.rsqrt(var + BN_EPS)      # (1,N)
        shift = gb_ref[1:2, :] - mean * scale                     # (1,N)
        return y * scale + shift

    # block(latent_dim, 128, normalize=False)  -- bias kept (no BN follows)
    h = lrelu(matmul(z_ref[...], w0_ref) + b0_ref[...])
    # block(128, 256), block(256, 512), block(512, 1024)
    # (Linear biases dropped: they cancel exactly under training-mode BN.)
    h = lrelu(batchnorm(matmul(h, w1_ref), gb1_ref))
    h = lrelu(batchnorm(matmul(h, w2_ref), gb2_ref))
    h = lrelu(batchnorm(matmul(h, w3_ref), gb3_ref))
    # Linear(1024, 784 [padded to 896]) + Tanh  (padded cols are tanh(0)=0)
    o_ref[...] = jnp.tanh(matmul(h, w4_ref) + b4_ref[...])


# ---------------- wrapper ----------------

def generator_forward(z, params):
    """params: dict with 'w' (5 bf16 mats), 'b0', 'b4', 'gb' (3 f32 (2,N) mats)."""
    batch = z.shape[0]
    w = params["w"]
    b0, b4 = params["b0"], params["b4"]
    gb = params["gb"]

    # Pad the latent/contraction dim 100 -> 128 (w0 rows already zero-padded).
    z_p = jnp.pad(z, ((0, 0), (0, LATENT_PADDED - z.shape[1])))

    inputs = (z_p, *w, b0, b4, *gb)
    n_in = len(inputs)

    flops = 2 * batch * sum(int(wi.shape[0]) * int(wi.shape[1]) for wi in w)
    weight_bytes = sum(int(wi.size) * wi.dtype.itemsize for wi in w)
    small_bytes = (int(b0.size) + int(b4.size)
                   + sum(int(g.size) for g in gb)) * 4
    io_bytes = batch * (LATENT_PADDED + OUT_PADDED) * 4
    bytes_accessed = weight_bytes + small_bytes + io_bytes

    # Explicit VMEM budget: weights + params + I/O + a few live (B,1024) f32
    # activations, 2x headroom, clamped to [32 MiB, 64 MiB] (v7x physical cap).
    act_bytes = 4 * batch * 1024 * 4
    vmem_limit = int(min(64 << 20,
                         max(32 << 20,
                             2 * (weight_bytes + small_bytes + io_bytes + act_bytes))))

    out = pl.pallas_call(
        generator_kernel,
        out_shape=jax.ShapeDtypeStruct((batch, OUT_PADDED), jnp.float32),
        in_specs=[_vmem_spec() for _ in range(n_in)],
        out_specs=_vmem_spec(),
        compiler_params=pltpu.CompilerParams(vmem_limit_bytes=vmem_limit),
        cost_estimate=pl.CostEstimate(
            flops=flops,
            transcendentals=batch * OUT_PADDED,
            bytes_accessed=bytes_accessed,
        ),
    )(*inputs)

    # Drop lane padding, then img = img.view(B, 1, 28, 28)  (NCHW).
    return out[:, :OUT_FEATURES].reshape(batch, *IMG_SHAPE)


# ---------------- pure-JAX reference (same math, for validation) ----------------

def generator_reference(z, params):
    w = params["w"]
    b0, b4 = params["b0"], params["b4"]
    gb = params["gb"]

    z_p = jnp.pad(z, ((0, 0), (0, LATENT_PADDED - z.shape[1])))

    def matmul(h, wi):
        return jnp.dot(h.astype(wi.dtype), wi, preferred_element_type=jnp.float32)

    def lrelu(y):
        return jnp.maximum(y, LRELU_SLOPE * y)

    def bn(y, gbi):
        mean = jnp.mean(y, axis=0, keepdims=True)
        var = jnp.mean((y - mean) ** 2, axis=0, keepdims=True)
        return (y - mean) * jax.lax.rsqrt(var + BN_EPS) * gbi[0:1, :] + gbi[1:2, :]

    h = lrelu(matmul(z_p, w[0]) + b0)
    h = lrelu(bn(matmul(h, w[1]), gb[0]))
    h = lrelu(bn(matmul(h, w[2]), gb[1]))
    h = lrelu(bn(matmul(h, w[3]), gb[2]))
    out = jnp.tanh(matmul(h, w[4]) + b4)
    return out[:, :OUT_FEATURES].reshape(z.shape[0], *IMG_SHAPE)


# ---------------- parameter init (deterministic, PyTorch-style) ----------------

def init_params(key):
    # Logical dims (PyTorch): 100->128->256->512->1024->784
    logical_in = [LATENT_DIM, 128, 256, 512, 1024]
    logical_out = [128, 256, 512, 1024, OUT_FEATURES]

    ws = []
    b0 = None
    b4 = None
    for i in range(5):
        key, kw, kb = jax.random.split(key, 3)
        bound = 1.0 / (logical_in[i] ** 0.5)  # nn.Linear default uniform init
        w = jax.random.uniform(kw, (logical_in[i], logical_out[i]),
                               jnp.float32, -bound, bound)
        bias = jax.random.uniform(kb, (1, logical_out[i]),
                                  jnp.float32, -bound, bound)
        if i == 0:
            # Pad contraction dim 100 -> 128 with zero rows (exact).
            w = jnp.pad(w, ((0, LATENT_PADDED - LATENT_DIM), (0, 0)))
            b0 = bias
        if i == 4:
            # Pad output features 784 -> 896 with zero columns (lane-dense store).
            w = jnp.pad(w, ((0, 0), (0, OUT_PADDED - OUT_FEATURES)))
            bias = jnp.pad(bias, ((0, 0), (0, OUT_PADDED - OUT_FEATURES)))
            b4 = bias
        # Biases of layers 1..3 are dropped: they cancel under training-mode BN.
        ws.append(w.astype(jnp.bfloat16))   # cast once; halves weight HBM bytes

    # Padded tail of w4 / b4 must be zero so padded output cols are tanh(0)=0.
    assert bool(jnp.all(ws[4][:, OUT_FEATURES:] == 0))
    assert bool(jnp.all(b4[:, OUT_FEATURES:] == 0))

    # BatchNorm1d default init: gamma=1, beta=0; packed as (2, N) per layer.
    gbs = [jnp.concatenate([jnp.ones((1, d), jnp.float32),
                            jnp.zeros((1, d), jnp.float32)], axis=0)
           for d in BN_DIMS]
    return key, {"w": ws, "b0": b0, "b4": b4, "gb": gbs}


if __name__ == "__main__":
    key = jax.random.PRNGKey(0)
    key, params = init_params(key)

    B = 8   # BatchNorm in training mode needs B > 1
    key, kz = jax.random.split(key)
    z = jax.random.normal(kz, (B, LATENT_DIM), dtype=jnp.float32)

    img = generator_forward(z, params)
    img = jax.block_until_ready(img)

    assert img.shape == (B, CHANNELS, IMG_SIZE, IMG_SIZE), img.shape
    assert img.dtype == jnp.float32
    assert bool(jnp.all(jnp.isfinite(img)))
    assert bool(jnp.all(jnp.abs(img) <= 1.0))  # tanh output range

    # Validate against a pure-JAX reference using the same (bf16-weight) math.
    # NOTE: this checks kernel correctness; bf16 weight quantization vs a full
    # f32 PyTorch Generator is a separate (small, GAN-acceptable) error.
    ref = jax.block_until_ready(generator_reference(z, params))
    max_err = float(jnp.max(jnp.abs(img - ref)))
    assert max_err < 2e-2, max_err

    print("KERNEL_OK")
</pallas_src>

<mosaic_0001>
module attributes {stable_mosaic.version = 11 : i64} {
  func.func @generator_kernel(%arg0: memref<8x128xf32, #tpu.memory_space<vmem>>, %arg1: memref<128x128xbf16, #tpu.memory_space<vmem>>, %arg2: memref<128x256xbf16, #tpu.memory_space<vmem>>, %arg3: memref<256x512xbf16, #tpu.memory_space<vmem>>, %arg4: memref<512x1024xbf16, #tpu.memory_space<vmem>>, %arg5: memref<1024x896xbf16, #tpu.memory_space<vmem>>, %arg6: memref<1x128xf32, #tpu.memory_space<vmem>>, %arg7: memref<1x896xf32, #tpu.memory_space<vmem>>, %arg8: memref<2x256xf32, #tpu.memory_space<vmem>>, %arg9: memref<2x512xf32, #tpu.memory_space<vmem>>, %arg10: memref<2x1024xf32, #tpu.memory_space<vmem>>, %arg11: memref<8x896xf32, #tpu.memory_space<vmem>>) attributes {dimension_semantics = [], scalar_prefetch = 0 : i64, scratch_operands = 0 : i64, tpu.core_type = #tpu.core_type<tc>} {
    %c0 = arith.constant 0 : index
    %c0_0 = arith.constant 0 : index
    %0 = vector.load %arg0[%c0, %c0_0] : memref<8x128xf32, #tpu.memory_space<vmem>>, vector<8x128xf32>
    %1 = arith.truncf %0 : vector<8x128xf32> to vector<8x128xbf16>
    %c0_1 = arith.constant 0 : index
    %c0_2 = arith.constant 0 : index
    %2 = vector.load %arg1[%c0_1, %c0_2] : memref<128x128xbf16, #tpu.memory_space<vmem>>, vector<128x128xbf16>
    %cst = arith.constant dense<0.000000e+00> : vector<8x128xf32>
    %3 = tpu.matmul %1, %2, %cst {dimension_numbers = #tpu.dot_dimension_numbers<[1], [0], [0], [1], [0, 0, 1, 1], [], []>} : vector<8x128xbf16>, vector<128x128xbf16>, vector<8x128xf32> -> vector<8x128xf32>
    %c0_3 = arith.constant 0 : index
    %c0_4 = arith.constant 0 : index
    %4 = vector.load %arg6[%c0_3, %c0_4] : memref<1x128xf32, #tpu.memory_space<vmem>>, vector<1x128xf32>
    %5 = vector.broadcast %4 : vector<1x128xf32> to vector<8x128xf32>
    %6 = arith.addf %3, %5 : vector<8x128xf32>
    %cst_5 = arith.constant 2.000000e-01 : f32
    %7 = vector.broadcast %cst_5 : f32 to vector<8x128xf32>
    %8 = arith.mulf %7, %6 : vector<8x128xf32>
    %9 = arith.maximumf %6, %8 : vector<8x128xf32>
    %10 = arith.truncf %9 : vector<8x128xf32> to vector<8x128xbf16>
    %c0_6 = arith.constant 0 : index
    %c0_7 = arith.constant 0 : index
    %11 = vector.load %arg2[%c0_6, %c0_7] : memref<128x256xbf16, #tpu.memory_space<vmem>>, vector<128x256xbf16>
    %cst_8 = arith.constant dense<0.000000e+00> : vector<8x256xf32>
    %12 = tpu.matmul %10, %11, %cst_8 {dimension_numbers = #tpu.dot_dimension_numbers<[1], [0], [0], [1], [0, 0, 1, 1], [], []>} : vector<8x128xbf16>, vector<128x256xbf16>, vector<8x256xf32> -> vector<8x256xf32>
    %cst_9 = arith.constant dense<0.000000e+00> : vector<256xf32>
    %13 = vector.multi_reduction <add>, %12, %cst_9 [0] : vector<8x256xf32> to vector<256xf32>
    %14 = vector.shape_cast %13 : vector<256xf32> to vector<1x256xf32>
    %cst_10 = arith.constant 8.000000e+00 : f32
    %15 = vector.broadcast %cst_10 : f32 to vector<1x256xf32>
    %16 = arith.divf %14, %15 : vector<1x256xf32>
    %17 = arith.mulf %12, %12 : vector<8x256xf32>
    %cst_11 = arith.constant dense<0.000000e+00> : vector<256xf32>
    %18 = vector.multi_reduction <add>, %17, %cst_11 [0] : vector<8x256xf32> to vector<256xf32>
    %19 = vector.shape_cast %18 : vector<256xf32> to vector<1x256xf32>
    %cst_12 = arith.constant 8.000000e+00 : f32
    %20 = vector.broadcast %cst_12 : f32 to vector<1x256xf32>
    %21 = arith.divf %19, %20 : vector<1x256xf32>
    %22 = arith.mulf %16, %16 : vector<1x256xf32>
    %23 = arith.subf %21, %22 : vector<1x256xf32>
    %c0_13 = arith.constant 0 : index
    %c0_14 = arith.constant 0 : index
    %24 = vector.load %arg8[%c0_13, %c0_14] : memref<2x256xf32, #tpu.memory_space<vmem>>, vector<1x256xf32>
    %cst_15 = arith.constant 9.99999974E-6 : f32
    %25 = vector.broadcast %cst_15 : f32 to vector<1x256xf32>
    %26 = arith.addf %23, %25 : vector<1x256xf32>
    %27 = math.rsqrt %26 : vector<1x256xf32>
    %28 = arith.mulf %24, %27 : vector<1x256xf32>
    %c1 = arith.constant 1 : index
    %c0_16 = arith.constant 0 : index
    %29 = vector.load %arg8[%c1, %c0_16] : memref<2x256xf32, #tpu.memory_space<vmem>>, vector<1x256xf32>
    %30 = arith.mulf %16, %28 : vector<1x256xf32>
    %31 = arith.subf %29, %30 : vector<1x256xf32>
    %32 = vector.broadcast %28 : vector<1x256xf32> to vector<8x256xf32>
    %33 = arith.mulf %12, %32 : vector<8x256xf32>
    %34 = vector.broadcast %31 : vector<1x256xf32> to vector<8x256xf32>
    %35 = arith.addf %33, %34 : vector<8x256xf32>
    %cst_17 = arith.constant 2.000000e-01 : f32
    %36 = vector.broadcast %cst_17 : f32 to vector<8x256xf32>
    %37 = arith.mulf %36, %35 : vector<8x256xf32>
    %38 = arith.maximumf %35, %37 : vector<8x256xf32>
    %39 = arith.truncf %38 : vector<8x256xf32> to vector<8x256xbf16>
    %c0_18 = arith.constant 0 : index
    %c0_19 = arith.constant 0 : index
    %40 = vector.load %arg3[%c0_18, %c0_19] : memref<256x512xbf16, #tpu.memory_space<vmem>>, vector<256x512xbf16>
    %cst_20 = arith.constant dense<0.000000e+00> : vector<8x512xf32>
    %41 = tpu.matmul %39, %40, %cst_20 {dimension_numbers = #tpu.dot_dimension_numbers<[1], [0], [0], [1], [0, 0, 1, 1], [], []>} : vector<8x256xbf16>, vector<256x512xbf16>, vector<8x512xf32> -> vector<8x512xf32>
    %cst_21 = arith.constant dense<0.000000e+00> : vector<512xf32>
    %42 = vector.multi_reduction <add>, %41, %cst_21 [0] : vector<8x512xf32> to vector<512xf32>
    %43 = vector.shape_cast %42 : vector<512xf32> to vector<1x512xf32>
    %cst_22 = arith.constant 8.000000e+00 : f32
    %44 = vector.broadcast %cst_22 : f32 to vector<1x512xf32>
    %45 = arith.divf %43, %44 : vector<1x512xf32>
    %46 = arith.mulf %41, %41 : vector<8x512xf32>
    %cst_23 = arith.constant dense<0.000000e+00> : vector<512xf32>
    %47 = vector.multi_reduction <add>, %46, %cst_23 [0] : vector<8x512xf32> to vector<512xf32>
    %48 = vector.shape_cast %47 : vector<512xf32> to vector<1x512xf32>
    %cst_24 = arith.constant 8.000000e+00 : f32
    %49 = vector.broadcast %cst_24 : f32 to vector<1x512xf32>
    %50 = arith.divf %48, %49 : vector<1x512xf32>
    %51 = arith.mulf %45, %45 : vector<1x512xf32>
    %52 = arith.subf %50, %51 : vector<1x512xf32>
    %c0_25 = arith.constant 0 : index
    %c0_26 = arith.constant 0 : index
    %53 = vector.load %arg9[%c0_25, %c0_26] : memref<2x512xf32, #tpu.memory_space<vmem>>, vector<1x512xf32>
    %cst_27 = arith.constant 9.99999974E-6 : f32
    %54 = vector.broadcast %cst_27 : f32 to vector<1x512xf32>
    %55 = arith.addf %52, %54 : vector<1x512xf32>
    %56 = math.rsqrt %55 : vector<1x512xf32>
    %57 = arith.mulf %53, %56 : vector<1x512xf32>
    %c1_28 = arith.constant 1 : index
    %c0_29 = arith.constant 0 : index
    %58 = vector.load %arg9[%c1_28, %c0_29] : memref<2x512xf32, #tpu.memory_space<vmem>>, vector<1x512xf32>
    %59 = arith.mulf %45, %57 : vector<1x512xf32>
    %60 = arith.subf %58, %59 : vector<1x512xf32>
    %61 = vector.broadcast %57 : vector<1x512xf32> to vector<8x512xf32>
    %62 = arith.mulf %41, %61 : vector<8x512xf32>
    %63 = vector.broadcast %60 : vector<1x512xf32> to vector<8x512xf32>
    %64 = arith.addf %62, %63 : vector<8x512xf32>
    %cst_30 = arith.constant 2.000000e-01 : f32
    %65 = vector.broadcast %cst_30 : f32 to vector<8x512xf32>
    %66 = arith.mulf %65, %64 : vector<8x512xf32>
    %67 = arith.maximumf %64, %66 : vector<8x512xf32>
    %68 = arith.truncf %67 : vector<8x512xf32> to vector<8x512xbf16>
    %c0_31 = arith.constant 0 : index
    %c0_32 = arith.constant 0 : index
    %69 = vector.load %arg4[%c0_31, %c0_32] : memref<512x1024xbf16, #tpu.memory_space<vmem>>, vector<512x1024xbf16>
    %cst_33 = arith.constant dense<0.000000e+00> : vector<8x1024xf32>
    %70 = tpu.matmul %68, %69, %cst_33 {dimension_numbers = #tpu.dot_dimension_numbers<[1], [0], [0], [1], [0, 0, 1, 1], [], []>} : vector<8x512xbf16>, vector<512x1024xbf16>, vector<8x1024xf32> -> vector<8x1024xf32>
    %cst_34 = arith.constant dense<0.000000e+00> : vector<1024xf32>
    %71 = vector.multi_reduction <add>, %70, %cst_34 [0] : vector<8x1024xf32> to vector<1024xf32>
    %72 = vector.shape_cast %71 : vector<1024xf32> to vector<1x1024xf32>
    %cst_35 = arith.constant 8.000000e+00 : f32
    %73 = vector.broadcast %cst_35 : f32 to vector<1x1024xf32>
    %74 = arith.divf %72, %73 : vector<1x1024xf32>
    %75 = arith.mulf %70, %70 : vector<8x1024xf32>
    %cst_36 = arith.constant dense<0.000000e+00> : vector<1024xf32>
    %76 = vector.multi_reduction <add>, %75, %cst_36 [0] : vector<8x1024xf32> to vector<1024xf32>
    %77 = vector.shape_cast %76 : vector<1024xf32> to vector<1x1024xf32>
    %cst_37 = arith.constant 8.000000e+00 : f32
    %78 = vector.broadcast %cst_37 : f32 to vector<1x1024xf32>
    %79 = arith.divf %77, %78 : vector<1x1024xf32>
    %80 = arith.mulf %74, %74 : vector<1x1024xf32>
    %81 = arith.subf %79, %80 : vector<1x1024xf32>
    %c0_38 = arith.constant 0 : index
    %c0_39 = arith.constant 0 : index
    %82 = vector.load %arg10[%c0_38, %c0_39] : memref<2x1024xf32, #tpu.memory_space<vmem>>, vector<1x1024xf32>
    %cst_40 = arith.constant 9.99999974E-6 : f32
    %83 = vector.broadcast %cst_40 : f32 to vector<1x1024xf32>
    %84 = arith.addf %81, %83 : vector<1x1024xf32>
    %85 = math.rsqrt %84 : vector<1x1024xf32>
    %86 = arith.mulf %82, %85 : vector<1x1024xf32>
    %c1_41 = arith.constant 1 : index
    %c0_42 = arith.constant 0 : index
    %87 = vector.load %arg10[%c1_41, %c0_42] : memref<2x1024xf32, #tpu.memory_space<vmem>>, vector<1x1024xf32>
    %88 = arith.mulf %74, %86 : vector<1x1024xf32>
    %89 = arith.subf %87, %88 : vector<1x1024xf32>
    %90 = vector.broadcast %86 : vector<1x1024xf32> to vector<8x1024xf32>
    %91 = arith.mulf %70, %90 : vector<8x1024xf32>
    %92 = vector.broadcast %89 : vector<1x1024xf32> to vector<8x1024xf32>
    %93 = arith.addf %91, %92 : vector<8x1024xf32>
    %cst_43 = arith.constant 2.000000e-01 : f32
    %94 = vector.broadcast %cst_43 : f32 to vector<8x1024xf32>
    %95 = arith.mulf %94, %93 : vector<8x1024xf32>
    %96 = arith.maximumf %93, %95 : vector<8x1024xf32>
    %97 = arith.truncf %96 : vector<8x1024xf32> to vector<8x1024xbf16>
    %c0_44 = arith.constant 0 : index
    %c0_45 = arith.constant 0 : index
    %98 = vector.load %arg5[%c0_44, %c0_45] : memref<1024x896xbf16, #tpu.memory_space<vmem>>, vector<1024x896xbf16>
    %cst_46 = arith.constant dense<0.000000e+00> : vector<8x896xf32>
    %99 = tpu.matmul %97, %98, %cst_46 {dimension_numbers = #tpu.dot_dimension_numbers<[1], [0], [0], [1], [0, 0, 1, 1], [], []>} : vector<8x1024xbf16>, vector<1024x896xbf16>, vector<8x896xf32> -> vector<8x896xf32>
    %c0_47 = arith.constant 0 : index
    %c0_48 = arith.constant 0 : index
    %100 = vector.load %arg7[%c0_47, %c0_48] : memref<1x896xf32, #tpu.memory_space<vmem>>, vector<1x896xf32>
    %101 = vector.broadcast %100 : vector<1x896xf32> to vector<8x896xf32>
    %102 = arith.addf %99, %101 : vector<8x896xf32>
    %103 = math.tanh %102 : vector<8x896xf32>
    %c0_49 = arith.constant 0 : index
    %c0_50 = arith.constant 0 : index
    %104 = vector.load %arg11[%c0_49, %c0_50] : memref<8x896xf32, #tpu.memory_space<vmem>>, vector<8x896xf32>
    tpu.vector_store %arg11[%c0_49, %c0_50], %103 {strides = array<i32>} : memref<8x896xf32, #tpu.memory_space<vmem>>, vector<8x896xf32>,
    return
  }
}

</mosaic_0001>

<llo_original>
// kernel: tpu_custom_call.1
$region0: #{tpu_custom_call.1}
  #allocation0 [shape = 'u32[]', space=smem, size = 0x4, offset = 0x4, fixed_abs, tag = 'smem constant byte address 0x4 - core index']
  #allocation1 [shape = 'u32[144,128]{1,0:T(1,128)}', space=vmem, size = 0x12000, scoped, tag = 'internal scratch']
  %s0 = inlined_call_operand.hbm [shape: f32[8,128], index: 0, kind: input, shape index: {}]
  %s1 = inlined_call_operand.hbm [shape: bf16[128,128], index: 1, kind: input, shape index: {}]
  %s2 = inlined_call_operand.hbm [shape: bf16[128,256], index: 2, kind: input, shape index: {}]
  %s3 = inlined_call_operand.hbm [shape: bf16[256,512], index: 3, kind: input, shape index: {}]
  %s4 = inlined_call_operand.hbm [shape: bf16[512,1024], index: 4, kind: input, shape index: {}]
  %s5 = inlined_call_operand.hbm [shape: bf16[1024,896], index: 5, kind: input, shape index: {}]
  %s6 = inlined_call_operand.hbm [shape: f32[1,128], index: 6, kind: input, shape index: {}]
  %s7 = inlined_call_operand.hbm [shape: f32[1,896], index: 7, kind: input, shape index: {}]
  %s8 = inlined_call_operand.hbm [shape: f32[2,256], index: 8, kind: input, shape index: {}]
  %s9 = inlined_call_operand.hbm [shape: f32[2,512], index: 9, kind: input, shape index: {}]
  %s10 = inlined_call_operand.hbm [shape: f32[2,1024], index: 10, kind: input, shape index: {}]
  %s11 = inlined_call_operand.hbm [shape: f32[8,896], index: 11, kind: output, shape index: {}]
  %s12 = sld [smem:[#allocation0]]
  $region98: #{tpu_custom_call.1} parent=0
    _
  %s14 = ssub.s32 1, %s12
  %s15 = scalar_select 0, %s14, %s12
  $region1: #{tpu_custom_call.1} parent=0
    #allocation2 [shape = 'u8[4096]{0}', space=vmem, size = 0x1000, scoped, tag = 'input window, operand 0, single buffered']
    #allocation3 [shape = 's32[1]{0}', space=sflag, size = 0x4, scoped, tag = 'scoped memory for tpu_custom_call.1']
    #allocation4 [shape = 's32[1]{0}', space=sflag, size = 0x4, scoped, tag = 'scoped memory for tpu_custom_call.1']
    #allocation5 [shape = 'u8[32768]{0}', space=vmem, size = 0x8000, scoped, tag = 'input window, operand 1, single buffered']
    #allocation6 [shape = 's32[1]{0}', space=sflag, size = 0x4, scoped, tag = 'scoped memory for tpu_custom_call.1']
    #allocation7 [shape = 'u8[65536]{0}', space=vmem, size = 0x10000, scoped, tag = 'input window, operand 2, single buffered']
    #allocation8 [shape = 'u8[262144]{0}', space=vmem, size = 0x40000, scoped, tag = 'input window, operand 3, single buffered']
    #allocation9 [shape = 's32[1]{0}', space=sflag, size = 0x4, scoped, tag = 'scoped memory for tpu_custom_call.1']
    #allocation10 [shape = 'u8[1048576]{0}', space=vmem, size = 0x100000, scoped, tag = 'input window, operand 4, single buffered']
    #allocation11 [shape = 'u8[1835008]{0}', space=vmem, size = 0x1c0000, scoped, tag = 'input window, operand 5, single buffered']
    #allocation12 [shape = 's32[1]{0}', space=sflag, size = 0x4, scoped, tag = 'scoped memory for tpu_custom_call.1']
    #allocation13 [shape = 'u8[512]{0}', space=vmem, size = 0x400, scoped, tag = 'input window, operand 6, single buffered']
    #allocation14 [shape = 'u8[3584]{0}', space=vmem, size = 0x1000, scoped, tag = 'input window, operand 7, single buffered']
    #allocation15 [shape = 's32[1]{0}', space=sflag, size = 0x4, scoped, tag = 'scoped memory for tpu_custom_call.1']
    #allocation16 [shape = 'u8[2048]{0}', space=vmem, size = 0x800, scoped, tag = 'input window, operand 8, single buffered']
    #allocation17 [shape = 'u8[4096]{0}', space=vmem, size = 0x1000, scoped, tag = 'input window, operand 9, single buffered']
    #allocation18 [shape = 's32[1]{0}', space=sflag, size = 0x4, scoped, tag = 'scoped memory for tpu_custom_call.1']
    #allocation19 [shape = 'u8[8192]{0}', space=vmem, size = 0x2000, scoped, tag = 'input window, operand 10, single buffered']
    #allocation20 [shape = 'u8[28672]{0}', space=vmem, size = 0x7000, scoped, tag = 'output window, operand 0, single buffered']
    %16 = vsyncpa [#allocation3], 0
    %17 = vsyncpa [#allocation6], 0
    %18 = vsyncpa [#allocation9], 0
    %19 = vsyncpa [#allocation12], 0
    %20 = vsyncpa [#allocation15], 0
    %21 = vsyncpa [#allocation18], 0
    %22 = vsyncpa [#allocation4], 0
    // Predicated region
    $region2: #{tpu_custom_call.1} parent=1 // pred_check
      _
    $region3: #{tpu_custom_call.1} parent=1 // pred_check_branch
      %24 = sbr.rel (0) target = $region5
    $region4: #{tpu_custom_call.1} parent=1 // pred_region
      %s26 = ssub.s32 128, 128
      %27 = vsyncadd [#allocation3], %s26
      %s29 = sshll.u32 [#allocation2], 4
      %s30 = int_to_ptr.vmem [resolvable:$true] %s29
      %32 = dma.hbm_to_vmem [thread:$0]  %s0, 128, %s30, [#allocation3]
    $region5: #{tpu_custom_call.1} parent=1 // pred_fallthru
      _
    // Predicated region
    $region6: #{tpu_custom_call.1} parent=1 // pred_check
      _
    $region7: #{tpu_custom_call.1} parent=1 // pred_check_branch
      %34 = sbr.rel (0) target = $region9
    $region8: #{tpu_custom_call.1} parent=1 // pred_region
      %s36 = ssub.s32 1024, 1024
      %37 = vsyncadd [#allocation6], %s36
      %s38 = sshll.u32 [#allocation5], 4
      %s39 = int_to_ptr.vmem [resolvable:$true] %s38
      %44 = dma.hbm_to_vmem [thread:$0]  %s1, 1024, %s39, [#allocation6], 64, 64, 4
    $region9: #{tpu_custom_call.1} parent=1 // pred_fallthru
      _
    // Predicated region
    $region10: #{tpu_custom_call.1} parent=1 // pred_check
      _
    $region11: #{tpu_custom_call.1} parent=1 // pred_check_branch
      %46 = sbr.rel (0) target = $region13
    $region12: #{tpu_custom_call.1} parent=1 // pred_region
      %s48 = ssub.s32 2048, 2048
      %49 = vsyncadd [#allocation6], %s48
      %s50 = sshll.u32 [#allocation7], 4
      %s51 = int_to_ptr.vmem [resolvable:$true] %s50
      %56 = dma.hbm_to_vmem [thread:$0]  %s2, 2048, %s51, [#allocation6], 128, 128, 8
    $region13: #{tpu_custom_call.1} parent=1 // pred_fallthru
      _
    // Predicated region
    $region14: #{tpu_custom_call.1} parent=1 // pred_check
      _
    $region15: #{tpu_custom_call.1} parent=1 // pred_check_branch
      %58 = sbr.rel (0) target = $region17
    $region16: #{tpu_custom_call.1} parent=1 // pred_region
      %s60 = ssub.s32 8192, 8192
      %61 = vsyncadd [#allocation9], %s60
      %s62 = sshll.u32 [#allocation8], 4
      %s63 = int_to_ptr.vmem [resolvable:$true] %s62
      %68 = dma.hbm_to_vmem [thread:$0]  %s3, 8192, %s63, [#allocation9], 256, 256, 16
    $region17: #{tpu_custom_call.1} parent=1 // pred_fallthru
      _
    // Predicated region
    $region18: #{tpu_custom_call.1} parent=1 // pred_check
      _
    $region19: #{tpu_custom_call.1} parent=1 // pred_check_branch
      %70 = sbr.rel (0) target = $region21
    $region20: #{tpu_custom_call.1} parent=1 // pred_region
      %s72 = ssub.s32 32768, 32768
      %73 = vsyncadd [#allocation9], %s72
      %s74 = sshll.u32 [#allocation10], 4
      %s75 = int_to_ptr.vmem [resolvable:$true] %s74
      %80 = dma.hbm_to_vmem [thread:$0]  %s4, 32768, %s75, [#allocation9], 512, 512, 32
    $region21: #{tpu_custom_call.1} parent=1 // pred_fallthru
      _
    // Predicated region
    $region22: #{tpu_custom_call.1} parent=1 // pred_check
      _
    $region23: #{tpu_custom_call.1} parent=1 // pred_check_branch
      %82 = sbr.rel (0) target = $region25
    $region24: #{tpu_custom_call.1} parent=1 // pred_region
      %s84 = ssub.s32 57344, 57344
      %85 = vsyncadd [#allocation12], %s84
      %s86 = sshll.u32 [#allocation11], 4
      %s87 = int_to_ptr.vmem [resolvable:$true] %s86
      %92 = dma.hbm_to_vmem [thread:$0]  %s5, 57344, %s87, [#allocation12], 448, 448, 28
    $region25: #{tpu_custom_call.1} parent=1 // pred_fallthru
      _
    // Predicated region
    $region26: #{tpu_custom_call.1} parent=1 // pred_check
      _
    $region27: #{tpu_custom_call.1} parent=1 // pred_check_branch
      %94 = sbr.rel (0) target = $region29
    $region28: #{tpu_custom_call.1} parent=1 // pred_region
      %s96 = ssub.s32 16, 16
      %97 = vsyncadd [#allocation12], %s96
      %s99 = sshll.u32 [#allocation13], 4
      %s100 = int_to_ptr.vmem [resolvable:$true] %s99
      %102 = dma.hbm_to_vmem [thread:$0]  %s6, 16, %s100, [#allocation12]
    $region29: #{tpu_custom_call.1} parent=1 // pred_fallthru
      _
    // Predicated region
    $region30: #{tpu_custom_call.1} parent=1 // pred_check
      _
    $region31: #{tpu_custom_call.1} parent=1 // pred_check_branch
      %104 = sbr.rel (0) target = $region33
    $region32: #{tpu_custom_call.1} parent=1 // pred_region
      %s106 = ssub.s32 112, 112
      %107 = vsyncadd [#allocation15], %s106
      %s109 = sshll.u32 [#allocation14], 4
      %s110 = int_to_ptr.vmem [resolvable:$true] %s109
      %112 = dma.hbm_to_vmem [thread:$0]  %s7, 112, %s110, [#allocation15]
    $region33: #{tpu_custom_call.1} parent=1 // pred_fallthru
      _
    // Predicated region
    $region34: #{tpu_custom_call.1} parent=1 // pred_check
      _
    $region35: #{tpu_custom_call.1} parent=1 // pred_check_branch
      %114 = sbr.rel (0) target = $region37
    $region36: #{tpu_custom_call.1} parent=1 // pred_region
      %s116 = ssub.s32 64, 64
      %117 = vsyncadd [#allocation15], %s116
      %s119 = sshll.u32 [#allocation16], 4
      %s120 = int_to_ptr.vmem [resolvable:$true] %s119
      %122 = dma.hbm_to_vmem [thread:$0]  %s8, 64, %s120, [#allocation15]
    $region37: #{tpu_custom_call.1} parent=1 // pred_fallthru
      _
    // Predicated region
    $region38: #{tpu_custom_call.1} parent=1 // pred_check
      _
    $region39: #{tpu_custom_call.1} parent=1 // pred_check_branch
      %124 = sbr.rel (0) target = $region41
    $region40: #{tpu_custom_call.1} parent=1 // pred_region
      %s126 = ssub.s32 128, 128
      %127 = vsyncadd [#allocation18], %s126
      %s129 = sshll.u32 [#allocation17], 4
      %s130 = int_to_ptr.vmem [resolvable:$true] %s129
      %132 = dma.hbm_to_vmem [thread:$0]  %s9, 128, %s130, [#allocation18]
    $region41: #{tpu_custom_call.1} parent=1 // pred_fallthru
      _
    // Predicated region
    $region42: #{tpu_custom_call.1} parent=1 // pred_check
      _
    $region43: #{tpu_custom_call.1} parent=1 // pred_check_branch
      %134 = sbr.rel (0) target = $region45
    $region44: #{tpu_custom_call.1} parent=1 // pred_region
      %s136 = ssub.s32 256, 256
      %137 = vsyncadd [#allocation18], %s136
      %s139 = sshll.u32 [#allocation19], 4
      %s140 = int_to_ptr.vmem [resolvable:$true] %s139
      %142 = dma.hbm_to_vmem [thread:$0]  %s10, 256, %s140, [#allocation18]
    $region45: #{tpu_custom_call.1} parent=1 // pred_fallthru
      _
    // Predicated region
    $region46: #{tpu_custom_call.1} parent=1 // pred_check
      _
    $region47: #{tpu_custom_call.1} parent=1 // pred_check_branch
      %144 = sbr.rel (0) target = $region49
    $region48: #{tpu_custom_call.1} parent=1 // pred_region
      %145 = dma.done [#allocation3], 128
    $region49: #{tpu_custom_call.1} parent=1 // pred_fallthru
      _
    // Predicated region
    $region50: #{tpu_custom_call.1} parent=1 // pred_check
      _
    $region51: #{tpu_custom_call.1} parent=1 // pred_check_branch
      %147 = sbr.rel (0) target = $region53
    $region52: #{tpu_custom_call.1} parent=1 // pred_region
      %148 = dma.done [#allocation6], 1024
    $region53: #{tpu_custom_call.1} parent=1 // pred_fallthru
      _
    // Predicated region
    $region54: #{tpu_custom_call.1} parent=1 // pred_check
      _
    $region55: #{tpu_custom_call.1} parent=1 // pred_check_branch
      %150 = sbr.rel (0) target = $region57
    $region56: #{tpu_custom_call.1} parent=1 // pred_region
      %151 = dma.done [#allocation6], 2048
    $region57: #{tpu_custom_call.1} parent=1 // pred_fallthru
      _
    // Predicated region
    $region58: #{tpu_custom_call.1} parent=1 // pred_check
      _
    $region59: #{tpu_custom_call.1} parent=1 // pred_check_branch
      %153 = sbr.rel (0) target = $region61
    $region60: #{tpu_custom_call.1} parent=1 // pred_region
      %154 = dma.done [#allocation9], 8192
    $region61: #{tpu_custom_call.1} parent=1 // pred_fallthru
      _
    // Predicated region
    $region62: #{tpu_custom_call.1} parent=1 // pred_check
      _
    $region63: #{tpu_custom_call.1} parent=1 // pred_check_branch
      %156 = sbr.rel (0) target = $region65
    $region64: #{tpu_custom_call.1} parent=1 // pred_region
      %157 = dma.done [#allocation9], 32768
    $region65: #{tpu_custom_call.1} parent=1 // pred_fallthru
      _
    // Predicated region
    $region66: #{tpu_custom_call.1} parent=1 // pred_check
      _
    $region67: #{tpu_custom_call.1} parent=1 // pred_check_branch
      %159 = sbr.rel (0) target = $region69
    $region68: #{tpu_custom_call.1} parent=1 // pred_region
      %160 = dma.done [#allocation12], 57344
    $region69: #{tpu_custom_call.1} parent=1 // pred_fallthru
      _
    // Predicated region
    $region70: #{tpu_custom_call.1} parent=1 // pred_check
      _
    $region71: #{tpu_custom_call.1} parent=1 // pred_check_branch
      %162 = sbr.rel (0) target = $region73
    $region72: #{tpu_custom_call.1} parent=1 // pred_region
      %163 = dma.done [#allocation12], 16
    $region73: #{tpu_custom_call.1} parent=1 // pred_fallthru
      _
    // Predicated region
    $region74: #{tpu_custom_call.1} parent=1 // pred_check
      _
    $region75: #{tpu_custom_call.1} parent=1 // pred_check_branch
      %165 = sbr.rel (0) target = $region77
    $region76: #{tpu_custom_call.1} parent=1 // pred_region
      %166 = dma.done [#allocation15], 112
    $region77: #{tpu_custom_call.1} parent=1 // pred_fallthru
      _
    // Predicated region
    $region78: #{tpu_custom_call.1} parent=1 // pred_check
      _
    $region79: #{tpu_custom_call.1} parent=1 // pred_check_branch
      %168 = sbr.rel (0) target = $region81
    $region80: #{tpu_custom_call.1} parent=1 // pred_region
      %169 = dma.done [#allocation15], 64
    $region81: #{tpu_custom_call.1} parent=1 // pred_fallthru
      _
    // Predicated region
    $region82: #{tpu_custom_call.1} parent=1 // pred_check
      _
    $region83: #{tpu_custom_call.1} parent=1 // pred_check_branch
      %171 = sbr.rel (0) target = $region85
    $region84: #{tpu_custom_call.1} parent=1 // pred_region
      %172 = dma.done [#allocation18], 128
    $region85: #{tpu_custom_call.1} parent=1 // pred_fallthru
      _
    // Predicated region
    $region86: #{tpu_custom_call.1} parent=1 // pred_check
      _
    $region87: #{tpu_custom_call.1} parent=1 // pred_check_branch
      %174 = sbr.rel (0) target = $region89
    $region88: #{tpu_custom_call.1} parent=1 // pred_region
      %175 = dma.done [#allocation18], 256
    $region89: #{tpu_custom_call.1} parent=1 // pred_fallthru
      _
    %v177 = vld [vmem:[#allocation2] sm:$0xff]
    %v178 = vpack.c.bf16 %v177, %v177
    %v179 = vld [vmem:[#allocation5] sm:$0xf]
    %v180 = vld [vmem:[#allocation5 + $0x4] sm:$0xf]
    %v181 = vld [vmem:[#allocation5 + $0x8] sm:$0xf]
    %v182 = vld [vmem:[#allocation5 + $0xc] sm:$0xf]
    %v183 = vld [vmem:[#allocation5 + $0x10] sm:$0xf]
    %v184 = vld [vmem:[#allocation5 + $0x14] sm:$0xf]
    %v185 = vld [vmem:[#allocation5 + $0x18] sm:$0xf]
    %v186 = vld [vmem:[#allocation5 + $0x1c] sm:$0xf]
    %v187 = vld [vmem:[#allocation5 + $0x20] sm:$0xf]
    %v188 = vld [vmem:[#allocation5 + $0x24] sm:$0xf]
    %v189 = vld [vmem:[#allocation5 + $0x28] sm:$0xf]
    %v190 = vld [vmem:[#allocation5 + $0x2c] sm:$0xf]
    %v191 = vld [vmem:[#allocation5 + $0x30] sm:$0xf]
    %v192 = vld [vmem:[#allocation5 + $0x34] sm:$0xf]
    %v193 = vld [vmem:[#allocation5 + $0x38] sm:$0xf]
    %v194 = vld [vmem:[#allocation5 + $0x3c] sm:$0xf]
    %v195 = vld [vmem:[#allocation13] sm:$0x1]
    %v197 = vlaneseq
    %v198 = vshrl.u32 %v197, 7
    %v199 = vsub.s32 0, %v198
    %v200 = vrot.slane %v195, %v199
    %v218 = vunpack.c.l.b16 %v179
    %v219 = vunpack.c.l.b16 %v180
    %v220 = vunpack.c.l.b16 %v181
    %v221 = vunpack.c.l.b16 %v182
    %v222 = vunpack.c.l.b16 %v183
    %v223 = vunpack.c.l.b16 %v184
    %v224 = vunpack.c.l.b16 %v185
    %v225 = vunpack.c.l.b16 %v186
    %v226 = vunpack.c.l.b16 %v187
    %v227 = vunpack.c.l.b16 %v188
    %v228 = vunpack.c.l.b16 %v189
    %v229 = vunpack.c.l.b16 %v190
    %v230 = vunpack.c.l.b16 %v191
    %v231 = vunpack.c.l.b16 %v192
    %v232 = vunpack.c.l.b16 %v193
    %v233 = vunpack.c.l.b16 %v194
    %v234 = vpack.c.b16 %v219, %v218
    %v235 = vpack.c.b16 %v221, %v220
    %v236 = vpack.c.b16 %v223, %v222
    %v237 = vpack.c.b16 %v225, %v224
    %v238 = vpack.c.b16 %v227, %v226
    %v239 = vpack.c.b16 %v229, %v228
    %v240 = vpack.c.b16 %v231, %v230
    %v241 = vpack.c.b16 %v233, %v232
    %250 = vmatprep.subr.bf16.mxu0 0
    %251 = vmatpush1.bf16.msra.mxu0 %v234
    %252 = vmatprep.subr.bf16.mxu0 0
    %253 = vmatpush1.bf16.msra.mxu0 %v235
    %254 = vmatprep.subr.bf16.mxu0 0
    %255 = vmatpush1.bf16.msra.mxu0 %v236
    %256 = vmatprep.subr.bf16.mxu0 0
    %257 = vmatpush1.bf16.msra.mxu0 %v237
    %258 = vmatprep.subr.bf16.mxu0 0
    %259 = vmatpush1.bf16.msra.mxu0 %v238
    %260 = vmatprep.subr.bf16.mxu0 0
    %261 = vmatpush1.bf16.msra.mxu0 %v239
    %262 = vmatprep.subr.bf16.mxu0 0
    %263 = vmatpush1.bf16.msra.mxu0 %v240
    %264 = vmatprep.subr.bf16.mxu0 0
    %265 = vmatpush1.bf16.msra.mxu0 %v241
    %266 = vmatprep.subr.bf16.mxu0 0
    %267 = vmatpush1.bf16.msra.mxu0 0
    %268 = vmatprep.subr.bf16.mxu0 0
    %269 = vmatpush1.bf16.msra.mxu0 0
    %270 = vmatprep.subr.bf16.mxu0 0
    %271 = vmatpush1.bf16.msra.mxu0 0
    %272 = vmatprep.subr.bf16.mxu0 0
    %273 = vmatpush1.bf16.msra.mxu0 0
    %274 = vmatprep.subr.bf16.mxu0 0
    %275 = vmatpush1.bf16.msra.mxu0 0
    %276 = vmatprep.subr.bf16.mxu0 0
    %277 = vmatpush1.bf16.msra.mxu0 0
    %278 = vmatprep.subr.bf16.mxu0 0
    %279 = vmatpush1.bf16.msra.mxu0 0
    %280 = vmatprep.subr.bf16.mxu0 0
    %281 = vmatpush1.bf16.msra.mxu0 0
    %282 = vmatprep.mubr.bf16.mxu0 0
    %283 = vmatmul.mubr.bf16.gmra.mrb[0].mxu0 %v178
    %v284 = vpop.f32.mrb[0].mxu0
    %v285 = vadd.f32 %v200, %v284
    %v286 = vpop.f32.mrb[0].mxu0
    %v287 = vpop.f32.mrb[0].mxu0
    %v288 = vpop.f32.mrb[0].mxu0
    %289 = vdwg.mxu0
    %v290 = vmul.f32 %v285, 0.2
    %v291 = vmax.f32 %v285, %v290
    %v292 = vpack.c.bf16 %v291, %v291
    %v293 = vld [vmem:[#allocation7] sm:$0xff]
    %v294 = vld [vmem:[#allocation7 + $0x8] sm:$0xff]
    %v295 = vld [vmem:[#allocation7 + $0x10] sm:$0xff]
    %v296 = vld [vmem:[#allocation7 + $0x18] sm:$0xff]
    %v297 = vld [vmem:[#allocation7 + $0x20] sm:$0xff]
    %v298 = vld [vmem:[#allocation7 + $0x28] sm:$0xff]
    %v299 = vld [vmem:[#allocation7 + $0x30] sm:$0xff]
    %v300 = vld [vmem:[#allocation7 + $0x38] sm:$0xff]
    %v301 = vld [vmem:[#allocation7 + $0x40] sm:$0xff]
    %v302 = vld [vmem:[#allocation7 + $0x48] sm:$0xff]
    %v303 = vld [vmem:[#allocation7 + $0x50] sm:$0xff]
    %v304 = vld [vmem:[#allocation7 + $0x58] sm:$0xff]
    %v305 = vld [vmem:[#allocation7 + $0x60] sm:$0xff]
    %v306 = vld [vmem:[#allocation7 + $0x68] sm:$0xff]
    %v307 = vld [vmem:[#allocation7 + $0x70] sm:$0xff]
    %v308 = vld [vmem:[#allocation7 + $0x78] sm:$0xff]
    %v325 = vunpack.c.l.b16 %v293
    %v326 = vunpack.c.h.b16 %v293
    %v327 = vunpack.c.l.b16 %v294
    %v328 = vunpack.c.h.b16 %v294
    %v329 = vunpack.c.l.b16 %v295
    %v330 = vunpack.c.h.b16 %v295
    %v331 = vunpack.c.l.b16 %v296
    %v332 = vunpack.c.h.b16 %v296
    %v333 = vunpack.c.l.b16 %v297
    %v334 = vunpack.c.h.b16 %v297
    %v335 = vunpack.c.l.b16 %v298
    %v336 = vunpack.c.h.b16 %v298
    %v337 = vunpack.c.l.b16 %v299
    %v338 = vunpack.c.h.b16 %v299
    %v339 = vunpack.c.l.b16 %v300
    %v340 = vunpack.c.h.b16 %v300
    %v341 = vunpack.c.l.b16 %v301
    %v342 = vunpack.c.h.b16 %v301
    %v343 = vunpack.c.l.b16 %v302
    %v344 = vunpack.c.h.b16 %v302
    %v345 = vunpack.c.l.b16 %v303
    %v346 = vunpack.c.h.b16 %v303
    %v347 = vunpack.c.l.b16 %v304
    %v348 = vunpack.c.h.b16 %v304
    %v349 = vunpack.c.l.b16 %v305
    %v350 = vunpack.c.h.b16 %v305
    %v351 = vunpack.c.l.b16 %v306
    %v352 = vunpack.c.h.b16 %v306
    %v353 = vunpack.c.l.b16 %v307
    %v354 = vunpack.c.h.b16 %v307
    %v355 = vunpack.c.l.b16 %v308
    %v356 = vunpack.c.h.b16 %v308
    %v357 = vpack.c.b16 %v327, %v325
    %v358 = vpack.c.b16 %v328, %v326
    %v359 = vpack.c.b16 %v331, %v329
    %v360 = vpack.c.b16 %v332, %v330
    %v361 = vpack.c.b16 %v335, %v333
    %v362 = vpack.c.b16 %v336, %v334
    %v363 = vpack.c.b16 %v339, %v337
    %v364 = vpack.c.b16 %v340, %v338
    %v365 = vpack.c.b16 %v343, %v341
    %v366 = vpack.c.b16 %v344, %v342
    %v367 = vpack.c.b16 %v347, %v345
    %v368 = vpack.c.b16 %v348, %v346
    %v369 = vpack.c.b16 %v351, %v349
    %v370 = vpack.c.b16 %v352, %v350
    %v371 = vpack.c.b16 %v355, %v353
    %v372 = vpack.c.b16 %v356, %v354
    %389 = vmatprep.subr.bf16.mxu0 %v358
    %390 = vmatpush1.bf16.msra.mxu0 %v357
    %391 = vmatprep.subr.bf16.mxu0 %v360
    %392 = vmatpush1.bf16.msra.mxu0 %v359
    %393 = vmatprep.subr.bf16.mxu0 %v362
    %394 = vmatpush1.bf16.msra.mxu0 %v361
    %395 = vmatprep.subr.bf16.mxu0 %v364
    %396 = vmatpush1.bf16.msra.mxu0 %v363
    %397 = vmatprep.subr.bf16.mxu0 %v366
    %398 = vmatpush1.bf16.msra.mxu0 %v365
    %399 = vmatprep.subr.bf16.mxu0 %v368
    %400 = vmatpush1.bf16.msra.mxu0 %v367
    %401 = vmatprep.subr.bf16.mxu0 %v370
    %402 = vmatpush1.bf16.msra.mxu0 %v369
    %403 = vmatprep.subr.bf16.mxu0 %v372
    %404 = vmatpush1.bf16.msra.mxu0 %v371
    %405 = vmatprep.subr.bf16.mxu0 0
    %406 = vmatpush1.bf16.msra.mxu0 0
    %407 = vmatprep.subr.bf16.mxu0 0
    %408 = vmatpush1.bf16.msra.mxu0 0
    %409 = vmatprep.subr.bf16.mxu0 0
    %410 = vmatpush1.bf16.msra.mxu0 0
    %411 = vmatprep.subr.bf16.mxu0 0
    %412 = vmatpush1.bf16.msra.mxu0 0
    %413 = vmatprep.subr.bf16.mxu0 0
    %414 = vmatpush1.bf16.msra.mxu0 0
    %415 = vmatprep.subr.bf16.mxu0 0
    %416 = vmatpush1.bf16.msra.mxu0 0
    %417 = vmatprep.subr.bf16.mxu0 0
    %418 = vmatpush1.bf16.msra.mxu0 0
    %419 = vmatprep.subr.bf16.mxu0 0
    %420 = vmatpush1.bf16.msra.mxu0 0
    %421 = vmatprep.mubr.bf16.mxu0 0
    %422 = vmatmul.mubr.bf16.gmra.mrb[0].mxu0 %v292
    %v423 = vpop.f32.mrb[0].mxu0
    %v424 = vadd.f32 0.0, %v423
    %v425 = vpop.f32.mrb[0].mxu0
    %v426 = vadd.f32 0.0, %v425
    %v427 = vpop.f32.mrb[0].mxu0
    %v428 = vpop.f32.mrb[0].mxu0
    %429 = vdwg.mxu0
    %v430 = vrot.slane %v424, 4
    %v431 = vadd.f32 %v424, %v430
    %v432 = vrot.slane %v431, 2
    %v433 = vadd.f32 %v431, %v432
    %v434 = vrot.slane %v433, 1
    %v435 = vadd.f32 %v433, %v434
    %v436 = vrot.slane %v426, 4
    %v437 = vadd.f32 %v426, %v436
    %v438 = vrot.slane %v437, 2
    %v439 = vadd.f32 %v437, %v438
    %v440 = vrot.slane %v439, 1
    %v441 = vadd.f32 %v439, %v440
    %v442 = vrcp.pop 8.0
    %v443 = vmul.f32 %v435, %v442
    %v444 = vmul.f32 %v441, %v442
    %v445 = vmul.f32 %v424, %v424
    %v446 = vmul.f32 %v426, %v426
    %v447 = vrot.slane %v445, 4
    %v448 = vadd.f32 %v445, %v447
    %v449 = vrot.slane %v448, 2
    %v450 = vadd.f32 %v448, %v449
    %v451 = vrot.slane %v450, 1
    %v452 = vadd.f32 %v450, %v451
    %v453 = vrot.slane %v446, 4
    %v454 = vadd.f32 %v446, %v453
    %v455 = vrot.slane %v454, 2
    %v456 = vadd.f32 %v454, %v455
    %v457 = vrot.slane %v456, 1
    %v458 = vadd.f32 %v456, %v457
    %v459 = vmul.f32 %v452, %v442
    %v460 = vmul.f32 %v458, %v442
    %v461 = vmul.f32 %v443, %v443
    %v462 = vmul.f32 %v444, %v444
    %v463 = vsub.f32 %v459, %v461
    %v464 = vsub.f32 %v460, %v462
    %v465 = vld [vmem:[#allocation16] ss:$2 sm:$0x3]
    %v466 = vadd.f32 %v463, 1e-05
    %v467 = vadd.f32 %v464, 1e-05
    %v468 = vrsqrt.pop %v466
    %v469 = vrsqrt.pop %v467
    %v472 = vcombine.low %v468, %v469
    %v474 = vunpack.c.l.s4 1966171168
    %v475 = vunpack.c.0.s8 %v474
    %v476 = vlaneseq
    %v477 = vshrl.u32 %v476, 7
    %v478 = vsub.s32 %v475, %v477
    %v479 = vrot.slane %v472, %v478
    %v481 = vunpack.c.l.s4 1966171168
    %v482 = vunpack.c.0.s8 %v481
    %v483 = vlaneseq
    %v484 = vshrl.u32 %v483, 7
    %v485 = vsub.s32 %v482, %v484
    %v486 = vrot.slane %v479, %v485
    %v488 = vmul.f32 %v465, %v486
    %s489 = scalar_lea.vmem [#allocation16], 1
    %v490 = vld [vmem:[%s489] ss:$2 sm:$0x3]
    %v492 = vlaneseq
    %v493 = vshrl.u32 %v492, 7
    %v494 = vsub.s32 0, %v493
    %v495 = vrot.slane %v488, %v494
    %v496 = vlaneseq
    %v497 = vshrl.u32 %v496, 7
    %v498 = vsub.s32 1, %v497
    %v499 = vrot.slane %v488, %v498
    %v502 = vmul.f32 %v443, %v495
    %v503 = vmul.f32 %v444, %v499
    %v506 = vcombine.low %v502, %v503
    %v508 = vunpack.c.l.s4 1966171168
    %v509 = vunpack.c.0.s8 %v508
    %v510 = vlaneseq
    %v511 = vshrl.u32 %v510, 7
    %v512 = vsub.s32 %v509, %v511
    %v513 = vrot.slane %v506, %v512
    %v515 = vunpack.c.l.s4 1966171168
    %v516 = vunpack.c.0.s8 %v515
    %v517 = vlaneseq
    %v518 = vshrl.u32 %v517, 7
    %v519 = vsub.s32 %v516, %v518
    %v520 = vrot.slane %v513, %v519
    %v522 = vsub.f32 %v490, %v520
    %v523 = vmul.f32 %v424, %v495
    %v524 = vmul.f32 %v426, %v499
    %v526 = vlaneseq
    %v527 = vshrl.u32 %v526, 7
    %v528 = vsub.s32 0, %v527
    %v529 = vrot.slane %v522, %v528
    %v530 = vlaneseq
    %v531 = vshrl.u32 %v530, 7
    %v532 = vsub.s32 1, %v531
    %v533 = vrot.slane %v522, %v532
    %v536 = vadd.f32 %v523, %v529
    %v537 = vadd.f32 %v524, %v533
    %v538 = vmul.f32 %v536, 0.2
    %v539 = vmul.f32 %v537, 0.2
    %v540 = vmax.f32 %v536, %v538
    %v541 = vmax.f32 %v537, %v539
    %v542 = vpack.c.bf16 %v540, %v540
    %v543 = vpack.c.bf16 %v541, %v541
    %v544 = vld [vmem:[#allocation8] sm:$0xff]
    %v545 = vld [vmem:[#allocation8 + $0x8] sm:$0xff]
    %v546 = vld [vmem:[#allocation8 + $0x10] sm:$0xff]
    %v547 = vld [vmem:[#allocation8 + $0x18] sm:$0xff]
    %v548 = vld [vmem:[#allocation8 + $0x20] sm:$0xff]
    %v549 = vld [vmem:[#allocation8 + $0x28] sm:$0xff]
    %v550 = vld [vmem:[#allocation8 + $0x30] sm:$0xff]
    %v551 = vld [vmem:[#allocation8 + $0x38] sm:$0xff]
    %v552 = vld [vmem:[#allocation8 + $0x40] sm:$0xff]
    %v553 = vld [vmem:[#allocation8 + $0x48] sm:$0xff]
    %v554 = vld [vmem:[#allocation8 + $0x50] sm:$0xff]
    %v555 = vld [vmem:[#allocation8 + $0x58] sm:$0xff]
    %v556 = vld [vmem:[#allocation8 + $0x60] sm:$0xff]
    %v557 = vld [vmem:[#allocation8 + $0x68] sm:$0xff]
    %v558 = vld [vmem:[#allocation8 + $0x70] sm:$0xff]
    %v559 = vld [vmem:[#allocation8 + $0x78] sm:$0xff]
    %v560 = vld [vmem:[#allocation8 + $0x80] sm:$0xff]
    %v561 = vld [vmem:[#allocation8 + $0x88] sm:$0xff]
    %v562 = vld [vmem:[#allocation8 + $0x90] sm:$0xff]
    %v563 = vld [vmem:[#allocation8 + $0x98] sm:$0xff]
    %v564 = vld [vmem:[#allocation8 + $0xa0] sm:$0xff]
    %v565 = vld [vmem:[#allocation8 + $0xa8] sm:$0xff]
    %v566 = vld [vmem:[#allocation8 + $0xb0] sm:$0xff]
    %v567 = vld [vmem:[#allocation8 + $0xb8] sm:$0xff]
    %v568 = vld [vmem:[#allocation8 + $0xc0] sm:$0xff]
    %v569 = vld [vmem:[#allocation8 + $0xc8] sm:$0xff]
    %v570 = vld [vmem:[#allocation8 + $0xd0] sm:$0xff]
    %v571 = vld [vmem:[#allocation8 + $0xd8] sm:$0xff]
    %v572 = vld [vmem:[#allocation8 + $0xe0] sm:$0xff]
    %v573 = vld [vmem:[#allocation8 + $0xe8] sm:$0xff]
    %v574 = vld [vmem:[#allocation8 + $0xf0] sm:$0xff]
    %v575 = vld [vmem:[#allocation8 + $0xf8] sm:$0xff]
    %v576 = vld [vmem:[#allocation8 + $0x100] sm:$0xff]
    %v577 = vld [vmem:[#allocation8 + $0x108] sm:$0xff]
    %v578 = vld [vmem:[#allocation8 + $0x110] sm:$0xff]
    %v579 = vld [vmem:[#allocation8 + $0x118] sm:$0xff]
    %v580 = vld [vmem:[#allocation8 + $0x120] sm:$0xff]
    %v581 = vld [vmem:[#allocation8 + $0x128] sm:$0xff]
    %v582 = vld [vmem:[#allocation8 + $0x130] sm:$0xff]
    %v583 = vld [vmem:[#allocation8 + $0x138] sm:$0xff]
    %v584 = vld [vmem:[#allocation8 + $0x140] sm:$0xff]
    %v585 = vld [vmem:[#allocation8 + $0x148] sm:$0xff]
    %v586 = vld [vmem:[#allocation8 + $0x150] sm:$0xff]
    %v587 = vld [vmem:[#allocation8 + $0x158] sm:$0xff]
    %v588 = vld [vmem:[#allocation8 + $0x160] sm:$0xff]
    %v589 = vld [vmem:[#allocation8 + $0x168] sm:$0xff]
    %v590 = vld [vmem:[#allocation8 + $0x170] sm:$0xff]
    %v591 = vld [vmem:[#allocation8 + $0x178] sm:$0xff]
    %v592 = vld [vmem:[#allocation8 + $0x180] sm:$0xff]
    %v593 = vld [vmem:[#allocation8 + $0x188] sm:$0xff]
    %v594 = vld [vmem:[#allocation8 + $0x190] sm:$0xff]
    %v595 = vld [vmem:[#allocation8 + $0x198] sm:$0xff]
    %v596 = vld [vmem:[#allocation8 + $0x1a0] sm:$0xff]
    %v597 = vld [vmem:[#allocation8 + $0x1a8] sm:$0xff]
    %v598 = vld [vmem:[#allocation8 + $0x1b0] sm:$0xff]
    %v599 = vld [vmem:[#allocation8 + $0x1b8] sm:$0xff]
    %v600 = vld [vmem:[#allocation8 + $0x1c0] sm:$0xff]
    %v601 = vld [vmem:[#allocation8 + $0x1c8] sm:$0xff]
    %v602 = vld [vmem:[#allocation8 + $0x1d0] sm:$0xff]
    %v603 = vld [vmem:[#allocation8 + $0x1d8] sm:$0xff]
    %v604 = vld [vmem:[#allocation8 + $0x1e0] sm:$0xff]
    %v605 = vld [vmem:[#allocation8 + $0x1e8] sm:$0xff]
    %v606 = vld [vmem:[#allocation8 + $0x1f0] sm:$0xff]
    %v607 = vld [vmem:[#allocation8 + $0x1f8] sm:$0xff]
    %v672 = vunpack.c.l.b16 %v544
    %v673 = vunpack.c.h.b16 %v544
    %v674 = vunpack.c.l.b16 %v545
    %v675 = vunpack.c.h.b16 %v545
    %v676 = vunpack.c.l.b16 %v546
    %v677 = vunpack.c.h.b16 %v546
    %v678 = vunpack.c.l.b16 %v547
    %v679 = vunpack.c.h.b16 %v547
    %v680 = vunpack.c.l.b16 %v548
    %v681 = vunpack.c.h.b16 %v548
    %v682 = vunpack.c.l.b16 %v549
    %v683 = vunpack.c.h.b16 %v549
    %v684 = vunpack.c.l.b16 %v550
    %v685 = vunpack.c.h.b16 %v550
    %v686 = vunpack.c.l.b16 %v551
    %v687 = vunpack.c.h.b16 %v551
    %v688 = vunpack.c.l.b16 %v552
    %v689 = vunpack.c.h.b16 %v552
    %v690 = vunpack.c.l.b16 %v553
    %v691 = vunpack.c.h.b16 %v553
    %v692 = vunpack.c.l.b16 %v554
    %v693 = vunpack.c.h.b16 %v554
    %v694 = vunpack.c.l.b16 %v555
    %v695 = vunpack.c.h.b16 %v555
    %v696 = vunpack.c.l.b16 %v556
    %v697 = vunpack.c.h.b16 %v556
    %v698 = vunpack.c.l.b16 %v557
    %v699 = vunpack.c.h.b16 %v557
    %v700 = vunpack.c.l.b16 %v558
    %v701 = vunpack.c.h.b16 %v558
    %v702 = vunpack.c.l.b16 %v559
    %v703 = vunpack.c.h.b16 %v559
    %v704 = vunpack.c.l.b16 %v560
    %v705 = vunpack.c.h.b16 %v560
    %v706 = vunpack.c.l.b16 %v561
    %v707 = vunpack.c.h.b16 %v561
    %v708 = vunpack.c.l.b16 %v562
    %v709 = vunpack.c.h.b16 %v562
    %v710 = vunpack.c.l.b16 %v563
    %v711 = vunpack.c.h.b16 %v563
    %v712 = vunpack.c.l.b16 %v564
    %v713 = vunpack.c.h.b16 %v564
    %v714 = vunpack.c.l.b16 %v565
    %v715 = vunpack.c.h.b16 %v565
    %v716 = vunpack.c.l.b16 %v566
    %v717 = vunpack.c.h.b16 %v566
    %v718 = vunpack.c.l.b16 %v567
    %v719 = vunpack.c.h.b16 %v567
    %v720 = vunpack.c.l.b16 %v568
    %v721 = vunpack.c.h.b16 %v568
    %v722 = vunpack.c.l.b16 %v569
    %v723 = vunpack.c.h.b16 %v569
    %v724 = vunpack.c.l.b16 %v570
    %v725 = vunpack.c.h.b16 %v570
    %v726 = vunpack.c.l.b16 %v571
    %v727 = vunpack.c.h.b16 %v571
    %v728 = vunpack.c.l.b16 %v572
    %v729 = vunpack.c.h.b16 %v572
    %v730 = vunpack.c.l.b16 %v573
    %v731 = vunpack.c.h.b16 %v573
    %v732 = vunpack.c.l.b16 %v574
    %v733 = vunpack.c.h.b16 %v574
    %v734 = vunpack.c.l.b16 %v575
    %v735 = vunpack.c.h.b16 %v575
    %v736 = vunpack.c.l.b16 %v576
    %v737 = vunpack.c.h.b16 %v576
    %v738 = vunpack.c.l.b16 %v577
    %v739 = vunpack.c.h.b16 %v577
    %v740 = vunpack.c.l.b16 %v578
    %v741 = vunpack.c.h.b16 %v578
    %v742 = vunpack.c.l.b16 %v579
    %v743 = vunpack.c.h.b16 %v579
    %v744 = vunpack.c.l.b16 %v580
    %v745 = vunpack.c.h.b16 %v580
    %v746 = vunpack.c.l.b16 %v581
    %v747 = vunpack.c.h.b16 %v581
    %v748 = vunpack.c.l.b16 %v582
    %v749 = vunpack.c.h.b16 %v582
    %v750 = vunpack.c.l.b16 %v583
    %v751 = vunpack.c.h.b16 %v583
    %v752 = vunpack.c.l.b16 %v584
    %v753 = vunpack.c.h.b16 %v584
    %v754 = vunpack.c.l.b16 %v585
    %v755 = vunpack.c.h.b16 %v585
    %v756 = vunpack.c.l.b16 %v586
    %v757 = vunpack.c.h.b16 %v586
    %v758 = vunpack.c.l.b16 %v587
    %v759 = vunpack.c.h.b16 %v587
    %v760 = vunpack.c.l.b16 %v588
    %v761 = vunpack.c.h.b16 %v588
    %v762 = vunpack.c.l.b16 %v589
    %v763 = vunpack.c.h.b16 %v589
    %v764 = vunpack.c.l.b16 %v590
    %v765 = vunpack.c.h.b16 %v590
    %v766 = vunpack.c.l.b16 %v591
    %v767 = vunpack.c.h.b16 %v591
    %v768 = vunpack.c.l.b16 %v592
    %v769 = vunpack.c.h.b16 %v592
    %v770 = vunpack.c.l.b16 %v593
    %v771 = vunpack.c.h.b16 %v593
    %v772 = vunpack.c.l.b16 %v594
    %v773 = vunpack.c.h.b16 %v594
    %v774 = vunpack.c.l.b16 %v595
    %v775 = vunpack.c.h.b16 %v595
    %v776 = vunpack.c.l.b16 %v596
    %v777 = vunpack.c.h.b16 %v596
    %v778 = vunpack.c.l.b16 %v597
    %v779 = vunpack.c.h.b16 %v597
    %v780 = vunpack.c.l.b16 %v598
    %v781 = vunpack.c.h.b16 %v598
    %v782 = vunpack.c.l.b16 %v599
    %v783 = vunpack.c.h.b16 %v599
    %v784 = vunpack.c.l.b16 %v600
    %v785 = vunpack.c.h.b16 %v600
    %v786 = vunpack.c.l.b16 %v601
    %v787 = vunpack.c.h.b16 %v601
    %v788 = vunpack.c.l.b16 %v602
    %v789 = vunpack.c.h.b16 %v602
    %v790 = vunpack.c.l.b16 %v603
    %v791 = vunpack.c.h.b16 %v603
    %v792 = vunpack.c.l.b16 %v604
    %v793 = vunpack.c.h.b16 %v604
    %v794 = vunpack.c.l.b16 %v605
    %v795 = vunpack.c.h.b16 %v605
    %v796 = vunpack.c.l.b16 %v606
    %v797 = vunpack.c.h.b16 %v606
    %v798 = vunpack.c.l.b16 %v607
    %v799 = vunpack.c.h.b16 %v607
    %v800 = vpack.c.b16 %v676, %v672
    %v801 = vpack.c.b16 %v677, %v673
    %v802 = vpack.c.b16 %v678, %v674
    %v803 = vpack.c.b16 %v679, %v675
    %v804 = vpack.c.b16 %v684, %v680
    %v805 = vpack.c.b16 %v685, %v681
    %v806 = vpack.c.b16 %v686, %v682
    %v807 = vpack.c.b16 %v687, %v683
    %v808 = vpack.c.b16 %v692, %v688
    %v809 = vpack.c.b16 %v693, %v689
    %v810 = vpack.c.b16 %v694, %v690
    %v811 = vpack.c.b16 %v695, %v691
    %v812 = vpack.c.b16 %v700, %v696
    %v813 = vpack.c.b16 %v701, %v697
    %v814 = vpack.c.b16 %v702, %v698
    %v815 = vpack.c.b16 %v703, %v699
    %v816 = vpack.c.b16 %v708, %v704
    %v817 = vpack.c.b16 %v709, %v705
    %v818 = vpack.c.b16 %v710, %v706
    %v819 = vpack.c.b16 %v711, %v707
    %v820 = vpack.c.b16 %v716, %v712
    %v821 = vpack.c.b16 %v717, %v713
    %v822 = vpack.c.b16 %v718, %v714
    %v823 = vpack.c.b16 %v719, %v715
    %v824 = vpack.c.b16 %v724, %v720
    %v825 = vpack.c.b16 %v725, %v721
    %v826 = vpack.c.b16 %v726, %v722
    %v827 = vpack.c.b16 %v727, %v723
    %v828 = vpack.c.b16 %v732, %v728
    %v829 = vpack.c.b16 %v733, %v729
    %v830 = vpack.c.b16 %v734, %v730
    %v831 = vpack.c.b16 %v735, %v731
    %v832 = vpack.c.b16 %v740, %v736
    %v833 = vpack.c.b16 %v741, %v737
    %v834 = vpack.c.b16 %v742, %v738
    %v835 = vpack.c.b16 %v743, %v739
    %v836 = vpack.c.b16 %v748, %v744
    %v837 = vpack.c.b16 %v749, %v745
    %v838 = vpack.c.b16 %v750, %v746
    %v839 = vpack.c.b16 %v751, %v747
    %v840 = vpack.c.b16 %v756, %v752
    %v841 = vpack.c.b16 %v757, %v753
    %v842 = vpack.c.b16 %v758, %v754
    %v843 = vpack.c.b16 %v759, %v755
    %v844 = vpack.c.b16 %v764, %v760
    %v845 = vpack.c.b16 %v765, %v761
    %v846 = vpack.c.b16 %v766, %v762
    %v847 = vpack.c.b16 %v767, %v763
    %v848 = vpack.c.b16 %v772, %v768
    %v849 = vpack.c.b16 %v773, %v769
    %v850 = vpack.c.b16 %v774, %v770
    %v851 = vpack.c.b16 %v775, %v771
    %v852 = vpack.c.b16 %v780, %v776
    %v853 = vpack.c.b16 %v781, %v777
    %v854 = vpack.c.b16 %v782, %v778
    %v855 = vpack.c.b16 %v783, %v779
    %v856 = vpack.c.b16 %v788, %v784
    %v857 = vpack.c.b16 %v789, %v785
    %v858 = vpack.c.b16 %v790, %v786
    %v859 = vpack.c.b16 %v791, %v787
    %v860 = vpack.c.b16 %v796, %v792
    %v861 = vpack.c.b16 %v797, %v793
    %v862 = vpack.c.b16 %v798, %v794
    %v863 = vpack.c.b16 %v799, %v795
    %928 = vmatprep.subr.bf16.mxu0 %v801
    %929 = vmatpush1.bf16.msra.mxu0 %v800
    %930 = vmatprep.subr.bf16.mxu0 %v805
    %931 = vmatpush1.bf16.msra.mxu0 %v804
    %932 = vmatprep.subr.bf16.mxu0 %v809
    %933 = vmatpush1.bf16.msra.mxu0 %v808
    %934 = vmatprep.subr.bf16.mxu0 %v813
    %935 = vmatpush1.bf16.msra.mxu0 %v812
    %936 = vmatprep.subr.bf16.mxu0 %v817
    %937 = vmatpush1.bf16.msra.mxu0 %v816
    %938 = vmatprep.subr.bf16.mxu0 %v821
    %939 = vmatpush1.bf16.msra.mxu0 %v820
    %940 = vmatprep.subr.bf16.mxu0 %v825
    %941 = vmatpush1.bf16.msra.mxu0 %v824
    %942 = vmatprep.subr.bf16.mxu0 %v829
    %943 = vmatpush1.bf16.msra.mxu0 %v828
    %944 = vmatprep.subr.bf16.mxu0 %v833
    %945 = vmatpush1.bf16.msra.mxu0 %v832
    %946 = vmatprep.subr.bf16.mxu0 %v837
    %947 = vmatpush1.bf16.msra.mxu0 %v836
    %948 = vmatprep.subr.bf16.mxu0 %v841
    %949 = vmatpush1.bf16.msra.mxu0 %v840
    %950 = vmatprep.subr.bf16.mxu0 %v845
    %951 = vmatpush1.bf16.msra.mxu0 %v844
    %952 = vmatprep.subr.bf16.mxu0 %v849
    %953 = vmatpush1.bf16.msra.mxu0 %v848
    %954 = vmatprep.subr.bf16.mxu0 %v853
    %955 = vmatpush1.bf16.msra.mxu0 %v852
    %956 = vmatprep.subr.bf16.mxu0 %v857
    %957 = vmatpush1.bf16.msra.mxu0 %v856
    %958 = vmatprep.subr.bf16.mxu0 %v861
    %959 = vmatpush1.bf16.msra.mxu0 %v860
    %960 = vmatprep.mubr.bf16.mxu0 %v543
    %961 = vmatmul.mubr.bf16.gmra.mrb[0].mxu0 %v542
    %v962 = vpop.f32.mrb[0].mxu0
    %v963 = vadd.f32 0.0, %v962
    %v964 = vpop.f32.mrb[0].mxu0
    %v965 = vadd.f32 0.0, %v964
    %v966 = vpop.f32.mrb[0].mxu0
    %v967 = vpop.f32.mrb[0].mxu0
    %968 = vdwg.mxu0
    %969 = vmatprep.subr.bf16.mxu0 %v803
    %970 = vmatpush1.bf16.msra.mxu0 %v802
    %971 = vmatprep.subr.bf16.mxu0 %v807
    %972 = vmatpush1.bf16.msra.mxu0 %v806
    %973 = vmatprep.subr.bf16.mxu0 %v811
    %974 = vmatpush1.bf16.msra.mxu0 %v810
    %975 = vmatprep.subr.bf16.mxu0 %v815
    %976 = vmatpush1.bf16.msra.mxu0 %v814
    %977 = vmatprep.subr.bf16.mxu0 %v819
    %978 = vmatpush1.bf16.msra.mxu0 %v818
    %979 = vmatprep.subr.bf16.mxu0 %v823
    %980 = vmatpush1.bf16.msra.mxu0 %v822
    %981 = vmatprep.subr.bf16.mxu0 %v827
    %982 = vmatpush1.bf16.msra.mxu0 %v826
    %983 = vmatprep.subr.bf16.mxu0 %v831
    %984 = vmatpush1.bf16.msra.mxu0 %v830
    %985 = vmatprep.subr.bf16.mxu0 %v835
    %986 = vmatpush1.bf16.msra.mxu0 %v834
    %987 = vmatprep.subr.bf16.mxu0 %v839
    %988 = vmatpush1.bf16.msra.mxu0 %v838
    %989 = vmatprep.subr.bf16.mxu0 %v843
    %990 = vmatpush1.bf16.msra.mxu0 %v842
    %991 = vmatprep.subr.bf16.mxu0 %v847
    %992 = vmatpush1.bf16.msra.mxu0 %v846
    %993 = vmatprep.subr.bf16.mxu0 %v851
    %994 = vmatpush1.bf16.msra.mxu0 %v850
    %995 = vmatprep.subr.bf16.mxu0 %v855
    %996 = vmatpush1.bf16.msra.mxu0 %v854
    %997 = vmatprep.subr.bf16.mxu0 %v859
    %998 = vmatpush1.bf16.msra.mxu0 %v858
    %999 = vmatprep.subr.bf16.mxu0 %v863
    %1000 = vmatpush1.bf16.msra.mxu0 %v862
    %1001 = vmatprep.mubr.bf16.mxu0 %v543
    %1002 = vmatmul.mubr.bf16.gmra.mrb[0].mxu0 %v542
    %v1003 = vpop.f32.mrb[0].mxu0
    %v1004 = vadd.f32 0.0, %v1003
    %v1005 = vpop.f32.mrb[0].mxu0
    %v1006 = vadd.f32 0.0, %v1005
    %v1007 = vpop.f32.mrb[0].mxu0
    %v1008 = vpop.f32.mrb[0].mxu0
    %1009 = vdwg.mxu0
    %v1010 = vrot.slane %v963, 4
    %v1011 = vadd.f32 %v963, %v1010
    %v1012 = vrot.slane %v1011, 2
    %v1013 = vadd.f32 %v1011, %v1012
    %v1014 = vrot.slane %v1013, 1
    %v1015 = vadd.f32 %v1013, %v1014
    %v1016 = vrot.slane %v965, 4
    %v1017 = vadd.f32 %v965, %v1016
    %v1018 = vrot.slane %v1017, 2
    %v1019 = vadd.f32 %v1017, %v1018
    %v1020 = vrot.slane %v1019, 1
    %v1021 = vadd.f32 %v1019, %v1020
    %v1022 = vrot.slane %v1004, 4
    %v1023 = vadd.f32 %v1004, %v1022
    %v1024 = vrot.slane %v1023, 2
    %v1025 = vadd.f32 %v1023, %v1024
    %v1026 = vrot.slane %v1025, 1
    %v1027 = vadd.f32 %v1025, %v1026
    %v1028 = vrot.slane %v1006, 4
    %v1029 = vadd.f32 %v1006, %v1028
    %v1030 = vrot.slane %v1029, 2
    %v1031 = vadd.f32 %v1029, %v1030
    %v1032 = vrot.slane %v1031, 1
    %v1033 = vadd.f32 %v1031, %v1032
    %v1034 = vmul.f32 %v1015, %v442
    %v1035 = vmul.f32 %v1021, %v442
    %v1036 = vmul.f32 %v1027, %v442
    %v1037 = vmul.f32 %v1033, %v442
    %v1038 = vmul.f32 %v963, %v963
    %v1039 = vmul.f32 %v965, %v965
    %v1040 = vmul.f32 %v1004, %v1004
    %v1041 = vmul.f32 %v1006, %v1006
    %v1042 = vrot.slane %v1038, 4
    %v1043 = vadd.f32 %v1038, %v1042
    %v1044 = vrot.slane %v1043, 2
    %v1045 = vadd.f32 %v1043, %v1044
    %v1046 = vrot.slane %v1045, 1
    %v1047 = vadd.f32 %v1045, %v1046
    %v1048 = vrot.slane %v1039, 4
    %v1049 = vadd.f32 %v1039, %v1048
    %v1050 = vrot.slane %v1049, 2
    %v1051 = vadd.f32 %v1049, %v1050
    %v1052 = vrot.slane %v1051, 1
    %v1053 = vadd.f32 %v1051, %v1052
    %v1054 = vrot.slane %v1040, 4
    %v1055 = vadd.f32 %v1040, %v1054
    %v1056 = vrot.slane %v1055, 2
    %v1057 = vadd.f32 %v1055, %v1056
    %v1058 = vrot.slane %v1057, 1
    %v1059 = vadd.f32 %v1057, %v1058
    %v1060 = vrot.slane %v1041, 4
    %v1061 = vadd.f32 %v1041, %v1060
    %v1062 = vrot.slane %v1061, 2
    %v1063 = vadd.f32 %v1061, %v1062
    %v1064 = vrot.slane %v1063, 1
    %v1065 = vadd.f32 %v1063, %v1064
    %v1066 = vmul.f32 %v1047, %v442
    %v1067 = vmul.f32 %v1053, %v442
    %v1068 = vmul.f32 %v1059, %v442
    %v1069 = vmul.f32 %v1065, %v442
    %v1070 = vmul.f32 %v1034, %v1034
    %v1071 = vmul.f32 %v1035, %v1035
    %v1072 = vmul.f32 %v1036, %v1036
    %v1073 = vmul.f32 %v1037, %v1037
    %v1074 = vsub.f32 %v1066, %v1070
    %v1075 = vsub.f32 %v1067, %v1071
    %v1076 = vsub.f32 %v1068, %v1072
    %v1077 = vsub.f32 %v1069, %v1073
    %v1078 = vld [vmem:[#allocation17] ss:$2 sm:$0xf]
    %v1079 = vadd.f32 %v1074, 1e-05
    %v1080 = vadd.f32 %v1075, 1e-05
    %v1081 = vadd.f32 %v1076, 1e-05
    %v1082 = vadd.f32 %v1077, 1e-05
    %v1083 = vrsqrt.pop %v1079
    %v1084 = vrsqrt.pop %v1080
    %v1085 = vrsqrt.pop %v1081
    %v1086 = vrsqrt.pop %v1082
    %v1091 = vcombine.low %v1083, %v1084
    %v1092 = vcombine.low %v1085, %v1086
    %v1094 = vunpack.c.l.s4 1966171168
    %v1095 = vunpack.c.0.s8 %v1094
    %v1096 = vlaneseq
    %v1097 = vshrl.u32 %v1096, 7
    %v1098 = vsub.s32 %v1095, %v1097
    %v1099 = vrot.slane %v1091, %v1098
    %v1101 = vunpack.c.l.s4 1966171168
    %v1102 = vunpack.c.0.s8 %v1101
    %v1103 = vlaneseq
    %v1104 = vshrl.u32 %v1103, 7
    %v1105 = vsub.s32 %v1102, %v1104
    %v1106 = vrot.slane %v1092, %v1105
    %v1107 = vcombine.low %v1099, %v1106
    %v1109 = vunpack.c.l.s4 1966171168
    %v1110 = vunpack.c.0.s8 %v1109
    %v1111 = vlaneseq
    %v1112 = vshrl.u32 %v1111, 7
    %v1113 = vsub.s32 %v1110, %v1112
    %v1114 = vrot.slane %v1107, %v1113
    %v1116 = vmul.f32 %v1078, %v1114
    %s1117 = scalar_lea.vmem [#allocation17], 1
    %v1118 = vld [vmem:[%s1117] ss:$2 sm:$0xf]
    %v1120 = vlaneseq
    %v1121 = vshrl.u32 %v1120, 7
    %v1122 = vsub.s32 0, %v1121
    %v1123 = vrot.slane %v1116, %v1122
    %v1124 = vlaneseq
    %v1125 = vshrl.u32 %v1124, 7
    %v1126 = vsub.s32 1, %v1125
    %v1127 = vrot.slane %v1116, %v1126
    %v1128 = vlaneseq
    %v1129 = vshrl.u32 %v1128, 7
    %v1130 = vsub.s32 2, %v1129
    %v1131 = vrot.slane %v1116, %v1130
    %v1132 = vlaneseq
    %v1133 = vshrl.u32 %v1132, 7
    %v1134 = vsub.s32 3, %v1133
    %v1135 = vrot.slane %v1116, %v1134
    %v1140 = vmul.f32 %v1034, %v1123
    %v1141 = vmul.f32 %v1035, %v1127
    %v1142 = vmul.f32 %v1036, %v1131
    %v1143 = vmul.f32 %v1037, %v1135
    %v1148 = vcombine.low %v1140, %v1141
    %v1149 = vcombine.low %v1142, %v1143
    %v1151 = vunpack.c.l.s4 1966171168
    %v1152 = vunpack.c.0.s8 %v1151
    %v1153 = vlaneseq
    %v1154 = vshrl.u32 %v1153, 7
    %v1155 = vsub.s32 %v1152, %v1154
    %v1156 = vrot.slane %v1148, %v1155
    %v1158 = vunpack.c.l.s4 1966171168
    %v1159 = vunpack.c.0.s8 %v1158
    %v1160 = vlaneseq
    %v1161 = vshrl.u32 %v1160, 7
    %v1162 = vsub.s32 %v1159, %v1161
    %v1163 = vrot.slane %v1149, %v1162
    %v1164 = vcombine.low %v1156, %v1163
    %v1166 = vunpack.c.l.s4 1966171168
    %v1167 = vunpack.c.0.s8 %v1166
    %v1168 = vlaneseq
    %v1169 = vshrl.u32 %v1168, 7
    %v1170 = vsub.s32 %v1167, %v1169
    %v1171 = vrot.slane %v1164, %v1170
    %v1173 = vsub.f32 %v1118, %v1171
    %v1174 = vmul.f32 %v963, %v1123
    %v1175 = vmul.f32 %v965, %v1127
    %v1176 = vmul.f32 %v1004, %v1131
    %v1177 = vmul.f32 %v1006, %v1135
    %v1179 = vlaneseq
    %v1180 = vshrl.u32 %v1179, 7
    %v1181 = vsub.s32 0, %v1180
    %v1182 = vrot.slane %v1173, %v1181
    %v1183 = vlaneseq
    %v1184 = vshrl.u32 %v1183, 7
    %v1185 = vsub.s32 1, %v1184
    %v1186 = vrot.slane %v1173, %v1185
    %v1187 = vlaneseq
    %v1188 = vshrl.u32 %v1187, 7
    %v1189 = vsub.s32 2, %v1188
    %v1190 = vrot.slane %v1173, %v1189
    %v1191 = vlaneseq
    %v1192 = vshrl.u32 %v1191, 7
    %v1193 = vsub.s32 3, %v1192
    %v1194 = vrot.slane %v1173, %v1193
    %v1199 = vadd.f32 %v1174, %v1182
    %v1200 = vadd.f32 %v1175, %v1186
    %v1201 = vadd.f32 %v1176, %v1190
    %v1202 = vadd.f32 %v1177, %v1194
    %v1203 = vmul.f32 %v1199, 0.2
    %v1204 = vmul.f32 %v1200, 0.2
    %v1205 = vmul.f32 %v1201, 0.2
    %v1206 = vmul.f32 %v1202, 0.2
    %v1207 = vmax.f32 %v1199, %v1203
    %v1208 = vmax.f32 %v1200, %v1204
    %v1209 = vmax.f32 %v1201, %v1205
    %v1210 = vmax.f32 %v1202, %v1206
    %v1211 = vpack.c.bf16 %v1207, %v1207
    %v1212 = vpack.c.bf16 %v1208, %v1208
    %v1213 = vpack.c.bf16 %v1209, %v1209
    %v1214 = vpack.c.bf16 %v1210, %v1210
    %v1215 = vld [vmem:[#allocation10] sm:$0xff]
    %v1216 = vld [vmem:[#allocation10 + $0x8] sm:$0xff]
    %v1217 = vld [vmem:[#allocation10 + $0x10] sm:$0xff]
    %v1218 = vld [vmem:[#allocation10 + $0x18] sm:$0xff]
    %v1219 = vld [vmem:[#allocation10 + $0x20] sm:$0xff]
    %v1220 = vld [vmem:[#allocation10 + $0x28] sm:$0xff]
    %v1221 = vld [vmem:[#allocation10 + $0x30] sm:$0xff]
    %v1222 = vld [vmem:[#allocation10 + $0x38] sm:$0xff]
    %v1223 = vld [vmem:[#allocation10 + $0x40] sm:$0xff]
    %v1224 = vld [vmem:[#allocation10 + $0x48] sm:$0xff]
    %v1225 = vld [vmem:[#allocation10 + $0x50] sm:$0xff]
    %v1226 = vld [vmem:[#allocation10 + $0x58] sm:$0xff]
    %v1227 = vld [vmem:[#allocation10 + $0x60] sm:$0xff]
    %v1228 = vld [vmem:[#allocation10 + $0x68] sm:$0xff]
    %v1229 = vld [vmem:[#allocation10 + $0x70] sm:$0xff]
    %v1230 = vld [vmem:[#allocation10 + $0x78] sm:$0xff]
    %v1231 = vld [vmem:[#allocation10 + $0x80] sm:$0xff]
    %v1232 = vld [vmem:[#allocation10 + $0x88] sm:$0xff]
    %v1233 = vld [vmem:[#allocation10 + $0x90] sm:$0xff]
    %v1234 = vld [vmem:[#allocation10 + $0x98] sm:$0xff]
    %v1235 = vld [vmem:[#allocation10 + $0xa0] sm:$0xff]
    %v1236 = vld [vmem:[#allocation10 + $0xa8] sm:$0xff]
    %v1237 = vld [vmem:[#allocation10 + $0xb0] sm:$0xff]
    %v1238 = vld [vmem:[#allocation10 + $0xb8] sm:$0xff]
    %v1239 = vld [vmem:[#allocation10 + $0xc0] sm:$0xff]
    %v1240 = vld [vmem:[#allocation10 + $0xc8] sm:$0xff]
    %v1241 = vld [vmem:[#allocation10 + $0xd0] sm:$0xff]
    %v1242 = vld [vmem:[#allocation10 + $0xd8] sm:$0xff]
    %v1243 = vld [vmem:[#allocation10 + $0xe0] sm:$0xff]
    %v1244 = vld [vmem:[#allocation10 + $0xe8] sm:$0xff]
    %v1245 = vld [vmem:[#allocation10 + $0xf0] sm:$0xff]
    %v1246 = vld [vmem:[#allocation10 + $0xf8] sm:$0xff]
    %v1247 = vld [vmem:[#allocation10 + $0x100] sm:$0xff]
    %v1248 = vld [vmem:[#allocation10 + $0x108] sm:$0xff]
    %v1249 = vld [vmem:[#allocation10 + $0x110] sm:$0xff]
    %v1250 = vld [vmem:[#allocation10 + $0x118] sm:$0xff]
    %v1251 = vld [vmem:[#allocation10 + $0x120] sm:$0xff]
    %v1252 = vld [vmem:[#allocation10 + $0x128] sm:$0xff]
    %v1253 = vld [vmem:[#allocation10 + $0x130] sm:$0xff]
    %v1254 = vld [vmem:[#allocation10 + $0x138] sm:$0xff]
    %v1255 = vld [vmem:[#allocation10 + $0x140] sm:$0xff]
    %v1256 = vld [vmem:[#allocation10 + $0x148] sm:$0xff]
    %v1257 = vld [vmem:[#allocation10 + $0x150] sm:$0xff]
    %v1258 = vld [vmem:[#allocation10 + $0x158] sm:$0xff]
    %v1259 = vld [vmem:[#allocation10 + $0x160] sm:$0xff]
    %v1260 = vld [vmem:[#allocation10 + $0x168] sm:$0xff]
    %v1261 = vld [vmem:[#allocation10 + $0x170] sm:$0xff]
    %v1262 = vld [vmem:[#allocation10 + $0x178] sm:$0xff]
    %v1263 = vld [vmem:[#allocation10 + $0x180] sm:$0xff]
    %v1264 = vld [vmem:[#allocation10 + $0x188] sm:$0xff]
    %v1265 = vld [vmem:[#allocation10 + $0x190] sm:$0xff]
    %v1266 = vld [vmem:[#allocation10 + $0x198] sm:$0xff]
    %v1267 = vld [vmem:[#allocation10 + $0x1a0] sm:$0xff]
    %v1268 = vld [vmem:[#allocation10 + $0x1a8] sm:$0xff]
    %v1269 = vld [vmem:[#allocation10 + $0x1b0] sm:$0xff]
    %v1270 = vld [vmem:[#allocation10 + $0x1b8] sm:$0xff]
    %v1271 = vld [vmem:[#allocation10 + $0x1c0] sm:$0xff]
    %v1272 = vld [vmem:[#allocation10 + $0x1c8] sm:$0xff]
    %v1273 = vld [vmem:[#allocation10 + $0x1d0] sm:$0xff]
    %v1274 = vld [vmem:[#allocation10 + $0x1d8] sm:$0xff]
    %v1275 = vld [vmem:[#allocation10 + $0x1e0] sm:$0xff]
    %v1276 = vld [vmem:[#allocation10 + $0x1e8] sm:$0xff]
    %v1277 = vld [vmem:[#allocation10 + $0x1f0] sm:$0xff]
    %v1278 = vld [vmem:[#allocation10 + $0x1f8] sm:$0xff]
    %v1279 = vld [vmem:[#allocation10 + $0x200] sm:$0xff]
    %v1280 = vld [vmem:[#allocation10 + $0x208] sm:$0xff]
    %v1281 = vld [vmem:[#allocation10 + $0x210] sm:$0xff]
    %v1282 = vld [vmem:[#allocation10 + $0x218] sm:$0xff]
    %v1283 = vld [vmem:[#allocation10 + $0x220] sm:$0xff]
    %v1284 = vld [vmem:[#allocation10 + $0x228] sm:$0xff]
    %v1285 = vld [vmem:[#allocation10 + $0x230] sm:$0xff]
    %v1286 = vld [vmem:[#allocation10 + $0x238] sm:$0xff]
    %v1287 = vld [vmem:[#allocation10 + $0x240] sm:$0xff]
    %v1288 = vld [vmem:[#allocation10 + $0x248] sm:$0xff]
    %v1289 = vld [vmem:[#allocation10 + $0x250] sm:$0xff]
    %v1290 = vld [vmem:[#allocation10 + $0x258] sm:$0xff]
    %v1291 = vld [vmem:[#allocation10 + $0x260] sm:$0xff]
    %v1292 = vld [vmem:[#allocation10 + $0x268] sm:$0xff]
    %v1293 = vld [vmem:[#allocation10 + $0x270] sm:$0xff]
    %v1294 = vld [vmem:[#allocation10 + $0x278] sm:$0xff]
    %v1295 = vld [vmem:[#allocation10 + $0x280] sm:$0xff]
    %v1296 = vld [vmem:[#allocation10 + $0x288] sm:$0xff]
    %v1297 = vld [vmem:[#allocation10 + $0x290] sm:$0xff]
    %v1298 = vld [vmem:[#allocation10 + $0x298] sm:$0xff]
    %v1299 = vld [vmem:[#allocation10 + $0x2a0] sm:$0xff]
    %v1300 = vld [vmem:[#allocation10 + $0x2a8] sm:$0xff]
    %v1301 = vld [vmem:[#allocation10 + $0x2b0] sm:$0xff]
    %v1302 = vld [vmem:[#allocation10 + $0x2b8] sm:$0xff]
    %v1303 = vld [vmem:[#allocation10 + $0x2c0] sm:$0xff]
    %v1304 = vld [vmem:[#allocation10 + $0x2c8] sm:$0xff]
    %v1305 = vld [vmem:[#allocation10 + $0x2d0] sm:$0xff]
    %v1306 = vld [vmem:[#allocation10 + $0x2d8] sm:$0xff]
    %v1307 = vld [vmem:[#allocation10 + $0x2e0] sm:$0xff]
    %v1308 = vld [vmem:[#allocation10 + $0x2e8] sm:$0xff]
    %v1309 = vld [vmem:[#allocation10 + $0x2f0] sm:$0xff]
    %v1310 = vld [vmem:[#allocation10 + $0x2f8] sm:$0xff]
    %v1311 = vld [vmem:[#allocation10 + $0x300] sm:$0xff]
    %v1312 = vld [vmem:[#allocation10 + $0x308] sm:$0xff]
    %v1313 = vld [vmem:[#allocation10 + $0x310] sm:$0xff]
    %v1314 = vld [vmem:[#allocation10 + $0x318] sm:$0xff]
    %v1315 = vld [vmem:[#allocation10 + $0x320] sm:$0xff]
    %v1316 = vld [vmem:[#allocation10 + $0x328] sm:$0xff]
    %v1317 = vld [vmem:[#allocation10 + $0x330] sm:$0xff]
    %v1318 = vld [vmem:[#allocation10 + $0x338] sm:$0xff]
    %v1319 = vld [vmem:[#allocation10 + $0x340] sm:$0xff]
    %v1320 = vld [vmem:[#allocation10 + $0x348] sm:$0xff]
    %v1321 = vld [vmem:[#allocation10 + $0x350] sm:$0xff]
    %v1322 = vld [vmem:[#allocation10 + $0x358] sm:$0xff]
    %v1323 = vld [vmem:[#allocation10 + $0x360] sm:$0xff]
    %v1324 = vld [vmem:[#allocation10 + $0x368] sm:$0xff]
    %v1325 = vld [vmem:[#allocation10 + $0x370] sm:$0xff]
    %v1326 = vld [vmem:[#allocation10 + $0x378] sm:$0xff]
    %v1327 = vld [vmem:[#allocation10 + $0x380] sm:$0xff]
    %v1328 = vld [vmem:[#allocation10 + $0x388] sm:$0xff]
    %v1329 = vld [vmem:[#allocation10 + $0x390] sm:$0xff]
    %v1330 = vld [vmem:[#allocation10 + $0x398] sm:$0xff]
    %v1331 = vld [vmem:[#allocation10 + $0x3a0] sm:$0xff]
    %v1332 = vld [vmem:[#allocation10 + $0x3a8] sm:$0xff]
    %v1333 = vld [vmem:[#allocation10 + $0x3b0] sm:$0xff]
    %v1334 = vld [vmem:[#allocation10 + $0x3b8] sm:$0xff]
    %v1335 = vld [vmem:[#allocation10 + $0x3c0] sm:$0xff]
    %v1336 = vld [vmem:[#allocation10 + $0x3c8] sm:$0xff]
    %v1337 = vld [vmem:[#allocation10 + $0x3d0] sm:$0xff]
    %v1338 = vld [vmem:[#allocation10 + $0x3d8] sm:$0xff]
    %v1339 = vld [vmem:[#allocation10 + $0x3e0] sm:$0xff]
    %v1340 = vld [vmem:[#allocation10 + $0x3e8] sm:$0xff]
    %v1341 = vld [vmem:[#allocation10 + $0x3f0] sm:$0xff]
    %v1342 = vld [vmem:[#allocation10 + $0x3f8] sm:$0xff]
    %v1343 = vld [vmem:[#allocation10 + $0x400] sm:$0xff]
    %v1344 = vld [vmem:[#allocation10 + $0x408] sm:$0xff]
    %v1345 = vld [vmem:[#allocation10 + $0x410] sm:$0xff]
    %v1346 = vld [vmem:[#allocation10 + $0x418] sm:$0xff]
    %v1347 = vld [vmem:[#allocation10 + $0x420] sm:$0xff]
    %v1348 = vld [vmem:[#allocation10 + $0x428] sm:$0xff]
    %v1349 = vld [vmem:[#allocation10 + $0x430] sm:$0xff]
    %v1350 = vld [vmem:[#allocation10 + $0x438] sm:$0xff]
    %v1351 = vld [vmem:[#allocation10 + $0x440] sm:$0xff]
    %v1352 = vld [vmem:[#allocation10 + $0x448] sm:$0xff]
    %v1353 = vld [vmem:[#allocation10 + $0x450] sm:$0xff]
    %v1354 = vld [vmem:[#allocation10 + $0x458] sm:$0xff]
    %v1355 = vld [vmem:[#allocation10 + $0x460] sm:$0xff]
    %v1356 = vld [vmem:[#allocation10 + $0x468] sm:$0xff]
    %v1357 = vld [vmem:[#allocation10 + $0x470] sm:$0xff]
    %v1358 = vld [vmem:[#allocation10 + $0x478] sm:$0xff]
    %v1359 = vld [vmem:[#allocation10 + $0x480] sm:$0xff]
    %v1360 = vld [vmem:[#allocation10 + $0x488] sm:$0xff]
    %v1361 = vld [vmem:[#allocation10 + $0x490] sm:$0xff]
    %v1362 = vld [vmem:[#allocation10 + $0x498] sm:$0xff]
    %v1363 = vld [vmem:[#allocation10 + $0x4a0] sm:$0xff]
    %v1364 = vld [vmem:[#allocation10 + $0x4a8] sm:$0xff]
    %v1365 = vld [vmem:[#allocation10 + $0x4b0] sm:$0xff]
    %v1366 = vld [vmem:[#allocation10 + $0x4b8] sm:$0xff]
    %v1367 = vld [vmem:[#allocation10 + $0x4c0] sm:$0xff]
    %v1368 = vld [vmem:[#allocation10 + $0x4c8] sm:$0xff]
    %v1369 = vld [vmem:[#allocation10 + $0x4d0] sm:$0xff]
    %v1370 = vld [vmem:[#allocation10 + $0x4d8] sm:$0xff]
    %v1371 = vld [vmem:[#allocation10 + $0x4e0] sm:$0xff]
    %v1372 = vld [vmem:[#allocation10 + $0x4e8] sm:$0xff]
    %v1373 = vld [vmem:[#allocation10 + $0x4f0] sm:$0xff]
    %v1374 = vld [vmem:[#allocation10 + $0x4f8] sm:$0xff]
    %v1375 = vld [vmem:[#allocation10 + $0x500] sm:$0xff]
    %v1376 = vld [vmem:[#allocation10 + $0x508] sm:$0xff]
    %v1377 = vld [vmem:[#allocation10 + $0x510] sm:$0xff]
    %v1378 = vld [vmem:[#allocation10 + $0x518] sm:$0xff]
    %v1379 = vld [vmem:[#allocation10 + $0x520] sm:$0xff]
    %v1380 = vld [vmem:[#allocation10 + $0x528] sm:$0xff]
    %v1381 = vld [vmem:[#allocation10 + $0x530] sm:$0xff]
    %v1382 = vld [vmem:[#allocation10 + $0x538] sm:$0xff]
    %v1383 = vld [vmem:[#allocation10 + $0x540] sm:$0xff]
    %v1384 = vld [vmem:[#allocation10 + $0x548] sm:$0xff]
    %v1385 = vld [vmem:[#allocation10 + $0x550] sm:$0xff]
    %v1386 = vld [vmem:[#allocation10 + $0x558] sm:$0xff]
    %v1387 = vld [vmem:[#allocation10 + $0x560] sm:$0xff]
    %v1388 = vld [vmem:[#allocation10 + $0x568] sm:$0xff]
    %v1389 = vld [vmem:[#allocation10 + $0x570] sm:$0xff]
    %v1390 = vld [vmem:[#allocation10 + $0x578] sm:$0xff]
    %v1391 = vld [vmem:[#allocation10 + $0x580] sm:$0xff]
    %v1392 = vld [vmem:[#allocation10 + $0x588] sm:$0xff]
    %v1393 = vld [vmem:[#allocation10 + $0x590] sm:$0xff]
    %v1394 = vld [vmem:[#allocation10 + $0x598] sm:$0xff]
    %v1395 = vld [vmem:[#allocation10 + $0x5a0] sm:$0xff]
    %v1396 = vld [vmem:[#allocation10 + $0x5a8] sm:$0xff]
    %v1397 = vld [vmem:[#allocation10 + $0x5b0] sm:$0xff]
    %v1398 = vld [vmem:[#allocation10 + $0x5b8] sm:$0xff]
    %v1399 = vld [vmem:[#allocation10 + $0x5c0] sm:$0xff]
    %v1400 = vld [vmem:[#allocation10 + $0x5c8] sm:$0xff]
    %v1401 = vld [vmem:[#allocation10 + $0x5d0] sm:$0xff]
    %v1402 = vld [vmem:[#allocation10 + $0x5d8] sm:$0xff]
    %v1403 = vld [vmem:[#allocation10 + $0x5e0] sm:$0xff]
    %v1404 = vld [vmem:[#allocation10 + $0x5e8] sm:$0xff]
    %v1405 = vld [vmem:[#allocation10 + $0x5f0] sm:$0xff]
    %v1406 = vld [vmem:[#allocation10 + $0x5f8] sm:$0xff]
    %v1407 = vld [vmem:[#allocation10 + $0x600] sm:$0xff]
    %v1408 = vld [vmem:[#allocation10 + $0x608] sm:$0xff]
    %v1409 = vld [vmem:[#allocation10 + $0x610] sm:$0xff]
    %v1410 = vld [vmem:[#allocation10 + $0x618] sm:$0xff]
    %v1411 = vld [vmem:[#allocation10 + $0x620] sm:$0xff]
    %v1412 = vld [vmem:[#allocation10 + $0x628] sm:$0xff]
    %v1413 = vld [vmem:[#allocation10 + $0x630] sm:$0xff]
    %v1414 = vld [vmem:[#allocation10 + $0x638] sm:$0xff]
    %v1415 = vld [vmem:[#allocation10 + $0x640] sm:$0xff]
    %v1416 = vld [vmem:[#allocation10 + $0x648] sm:$0xff]
    %v1417 = vld [vmem:[#allocation10 + $0x650] sm:$0xff]
    %v1418 = vld [vmem:[#allocation10 + $0x658] sm:$0xff]
    %v1419 = vld [vmem:[#allocation10 + $0x660] sm:$0xff]
    %v1420 = vld [vmem:[#allocation10 + $0x668] sm:$0xff]
    %v1421 = vld [vmem:[#allocation10 + $0x670] sm:$0xff]
    %v1422 = vld [vmem:[#allocation10 + $0x678] sm:$0xff]
    %v1423 = vld [vmem:[#allocation10 + $0x680] sm:$0xff]
    %v1424 = vld [vmem:[#allocation10 + $0x688] sm:$0xff]
    %v1425 = vld [vmem:[#allocation10 + $0x690] sm:$0xff]
    %v1426 = vld [vmem:[#allocation10 + $0x698] sm:$0xff]
    %v1427 = vld [vmem:[#allocation10 + $0x6a0] sm:$0xff]
    %v1428 = vld [vmem:[#allocation10 + $0x6a8] sm:$0xff]
    %v1429 = vld [vmem:[#allocation10 + $0x6b0] sm:$0xff]
    %v1430 = vld [vmem:[#allocation10 + $0x6b8] sm:$0xff]
    %v1431 = vld [vmem:[#allocation10 + $0x6c0] sm:$0xff]
    %v1432 = vld [vmem:[#allocation10 + $0x6c8] sm:$0xff]
    %v1433 = vld [vmem:[#allocation10 + $0x6d0] sm:$0xff]
    %v1434 = vld [vmem:[#allocation10 + $0x6d8] sm:$0xff]
    %v1435 = vld [vmem:[#allocation10 + $0x6e0] sm:$0xff]
    %v1436 = vld [vmem:[#allocation10 + $0x6e8] sm:$0xff]
    %v1437 = vld [vmem:[#allocation10 + $0x6f0] sm:$0xff]
    %v1438 = vld [vmem:[#allocation10 + $0x6f8] sm:$0xff]
    %v1439 = vld [vmem:[#allocation10 + $0x700] sm:$0xff]
    %v1440 = vld [vmem:[#allocation10 + $0x708] sm:$0xff]
    %v1441 = vld [vmem:[#allocation10 + $0x710] sm:$0xff]
    %v1442 = vld [vmem:[#allocation10 + $0x718] sm:$0xff]
    %v1443 = vld [vmem:[#allocation10 + $0x720] sm:$0xff]
    %v1444 = vld [vmem:[#allocation10 + $0x728] sm:$0xff]
    %v1445 = vld [vmem:[#allocation10 + $0x730] sm:$0xff]
    %v1446 = vld [vmem:[#allocation10 + $0x738] sm:$0xff]
    %v1447 = vld [vmem:[#allocation10 + $0x740] sm:$0xff]
    %v1448 = vld [vmem:[#allocation10 + $0x748] sm:$0xff]
    %v1449 = vld [vmem:[#allocation10 + $0x750] sm:$0xff]
    %v1450 = vld [vmem:[#allocation10 + $0x758] sm:$0xff]
    %v1451 = vld [vmem:[#allocation10 + $0x760] sm:$0xff]
    %v1452 = vld [vmem:[#allocation10 + $0x768] sm:$0xff]
    %v1453 = vld [vmem:[#allocation10 + $0x770] sm:$0xff]
    %v1454 = vld [vmem:[#allocation10 + $0x778] sm:$0xff]
    %v1455 = vld [vmem:[#allocation10 + $0x780] sm:$0xff]
    %v1456 = vld [vmem:[#allocation10 + $0x788] sm:$0xff]
    %v1457 = vld [vmem:[#allocation10 + $0x790] sm:$0xff]
    %v1458 = vld [vmem:[#allocation10 + $0x798] sm:$0xff]
    %v1459 = vld [vmem:[#allocation10 + $0x7a0] sm:$0xff]
    %v1460 = vld [vmem:[#allocation10 + $0x7a8] sm:$0xff]
    %v1461 = vld [vmem:[#allocation10 + $0x7b0] sm:$0xff]
    %v1462 = vld [vmem:[#allocation10 + $0x7b8] sm:$0xff]
    %v1463 = vld [vmem:[#allocation10 + $0x7c0] sm:$0xff]
    %v1464 = vld [vmem:[#allocation10 + $0x7c8] sm:$0xff]
    %v1465 = vld [vmem:[#allocation10 + $0x7d0] sm:$0xff]
    %v1466 = vld [vmem:[#allocation10 + $0x7d8] sm:$0xff]
    %v1467 = vld [vmem:[#allocation10 + $0x7e0] sm:$0xff]
    %v1468 = vld [vmem:[#allocation10 + $0x7e8] sm:$0xff]
    %v1469 = vld [vmem:[#allocation10 + $0x7f0] sm:$0xff]
    %v1470 = vld [vmem:[#allocation10 + $0x7f8] sm:$0xff]
    %v1727 = vunpack.c.l.b16 %v1215
    %v1728 = vunpack.c.h.b16 %v1215
    %v1729 = vunpack.c.l.b16 %v1216
    %v1730 = vunpack.c.h.b16 %v1216
    %v1731 = vunpack.c.l.b16 %v1217
    %v1732 = vunpack.c.h.b16 %v1217
    %v1733 = vunpack.c.l.b16 %v1218
    %v1734 = vunpack.c.h.b16 %v1218
    %v1735 = vunpack.c.l.b16 %v1219
    %v1736 = vunpack.c.h.b16 %v1219
    %v1737 = vunpack.c.l.b16 %v1220
    %v1738 = vunpack.c.h.b16 %v1220
    %v1739 = vunpack.c.l.b16 %v1221
    %v1740 = vunpack.c.h.b16 %v1221
    %v1741 = vunpack.c.l.b16 %v1222
    %v1742 = vunpack.c.h.b16 %v1222
    %v1743 = vunpack.c.l.b16 %v1223
    %v1744 = vunpack.c.h.b16 %v1223
    %v1745 = vunpack.c.l.b16 %v1224
    %v1746 = vunpack.c.h.b16 %v1224
    %v1747 = vunpack.c.l.b16 %v1225
    %v1748 = vunpack.c.h.b16 %v1225
    %v1749 = vunpack.c.l.b16 %v1226
    %v1750 = vunpack.c.h.b16 %v1226
    %v1751 = vunpack.c.l.b16 %v1227
    %v1752 = vunpack.c.h.b16 %v1227
    %v1753 = vunpack.c.l.b16 %v1228
    %v1754 = vunpack.c.h.b16 %v1228
    %v1755 = vunpack.c.l.b16 %v1229
    %v1756 = vunpack.c.h.b16 %v1229
    %v1757 = vunpack.c.l.b16 %v1230
    %v1758 = vunpack.c.h.b16 %v1230
    %v1759 = vunpack.c.l.b16 %v1231
    %v1760 = vunpack.c.h.b16 %v1231
    %v1761 = vunpack.c.l.b16 %v1232
    %v1762 = vunpack.c.h.b16 %v1232
    %v1763 = vunpack.c.l.b16 %v1233
    %v1764 = vunpack.c.h.b16 %v1233
    %v1765 = vunpack.c.l.b16 %v1234
    %v1766 = vunpack.c.h.b16 %v1234
    %v1767 = vunpack.c.l.b16 %v1235
    %v1768 = vunpack.c.h.b16 %v1235
    %v1769 = vunpack.c.l.b16 %v1236
    %v1770 = vunpack.c.h.b16 %v1236
    %v1771 = vunpack.c.l.b16 %v1237
    %v1772 = vunpack.c.h.b16 %v1237
    %v1773 = vunpack.c.l.b16 %v1238
    %v1774 = vunpack.c.h.b16 %v1238
    %v1775 = vunpack.c.l.b16 %v1239
    %v1776 = vunpack.c.h.b16 %v1239
    %v1777 = vunpack.c.l.b16 %v1240
    %v1778 = vunpack.c.h.b16 %v1240
    %v1779 = vunpack.c.l.b16 %v1241
    %v1780 = vunpack.c.h.b16 %v1241
    %v1781 = vunpack.c.l.b16 %v1242
    %v1782 = vunpack.c.h.b16 %v1242
    %v1783 = vunpack.c.l.b16 %v1243
    %v1784 = vunpack.c.h.b16 %v1243
    %v1785 = vunpack.c.l.b16 %v1244
    %v1786 = vunpack.c.h.b16 %v1244
    %v1787 = vunpack.c.l.b16 %v1245
    %v1788 = vunpack.c.h.b16 %v1245
    %v1789 = vunpack.c.l.b16 %v1246
    %v1790 = vunpack.c.h.b16 %v1246
    %v1791 = vunpack.c.l.b16 %v1247
    %v1792 = vunpack.c.h.b16 %v1247
    %v1793 = vunpack.c.l.b16 %v1248
    %v1794 = vunpack.c.h.b16 %v1248
    %v1795 = vunpack.c.l.b16 %v1249
    %v1796 = vunpack.c.h.b16 %v1249
    %v1797 = vunpack.c.l.b16 %v1250
    %v1798 = vunpack.c.h.b16 %v1250
    %v1799 = vunpack.c.l.b16 %v1251
    %v1800 = vunpack.c.h.b16 %v1251
    %v1801 = vunpack.c.l.b16 %v1252
    %v1802 = vunpack.c.h.b16 %v1252
    %v1803 = vunpack.c.l.b16 %v1253
    %v1804 = vunpack.c.h.b16 %v1253
    %v1805 = vunpack.c.l.b16 %v1254
    %v1806 = vunpack.c.h.b16 %v1254
    %v1807 = vunpack.c.l.b16 %v1255
    %v1808 = vunpack.c.h.b16 %v1255
    %v1809 = vunpack.c.l.b16 %v1256
    %v1810 = vunpack.c.h.b16 %v1256
    %v1811 = vunpack.c.l.b16 %v1257
    %v1812 = vunpack.c.h.b16 %v1257
    %v1813 = vunpack.c.l.b16 %v1258
    %v1814 = vunpack.c.h.b16 %v1258
    %v1815 = vunpack.c.l.b16 %v1259
    %v1816 = vunpack.c.h.b16 %v1259
    %v1817 = vunpack.c.l.b16 %v1260
    %v1818 = vunpack.c.h.b16 %v1260
    %v1819 = vunpack.c.l.b16 %v1261
    %v1820 = vunpack.c.h.b16 %v1261
    %v1821 = vunpack.c.l.b16 %v1262
    %v1822 = vunpack.c.h.b16 %v1262
    %v1823 = vunpack.c.l.b16 %v1263
    %v1824 = vunpack.c.h.b16 %v1263
    %v1825 = vunpack.c.l.b16 %v1264
    %v1826 = vunpack.c.h.b16 %v1264
    %v1827 = vunpack.c.l.b16 %v1265
    %v1828 = vunpack.c.h.b16 %v1265
    %v1829 = vunpack.c.l.b16 %v1266
    %v1830 = vunpack.c.h.b16 %v1266
    %v1831 = vunpack.c.l.b16 %v1267
    %v1832 = vunpack.c.h.b16 %v1267
    %v1833 = vunpack.c.l.b16 %v1268
    %v1834 = vunpack.c.h.b16 %v1268
    %v1835 = vunpack.c.l.b16 %v1269
    %v1836 = vunpack.c.h.b16 %v1269
    %v1837 = vunpack.c.l.b16 %v1270
    %v1838 = vunpack.c.h.b16 %v1270
    %v1839 = vunpack.c.l.b16 %v1271
    %v1840 = vunpack.c.h.b16 %v1271
    %v1841 = vunpack.c.l.b16 %v1272
    %v1842 = vunpack.c.h.b16 %v1272
    %v1843 = vunpack.c.l.b16 %v1273
    %v1844 = vunpack.c.h.b16 %v1273
    %v1845 = vunpack.c.l.b16 %v1274
    %v1846 = vunpack.c.h.b16 %v1274
    %v1847 = vunpack.c.l.b16 %v1275
    %v1848 = vunpack.c.h.b16 %v1275
    %v1849 = vunpack.c.l.b16 %v1276
    %v1850 = vunpack.c.h.b16 %v1276
    %v1851 = vunpack.c.l.b16 %v1277
    %v1852 = vunpack.c.h.b16 %v1277
    %v1853 = vunpack.c.l.b16 %v1278
    %v1854 = vunpack.c.h.b16 %v1278
    %v1855 = vunpack.c.l.b16 %v1279
    %v1856 = vunpack.c.h.b16 %v1279
    %v1857 = vunpack.c.l.b16 %v1280
    %v1858 = vunpack.c.h.b16 %v1280
    %v1859 = vunpack.c.l.b16 %v1281
    %v1860 = vunpack.c.h.b16 %v1281
    %v1861 = vunpack.c.l.b16 %v1282
    %v1862 = vunpack.c.h.b16 %v1282
    %v1863 = vunpack.c.l.b16 %v1283
    %v1864 = vunpack.c.h.b16 %v1283
    %v1865 = vunpack.c.l.b16 %v1284
    %v1866 = vunpack.c.h.b16 %v1284
    %v1867 = vunpack.c.l.b16 %v1285
    %v1868 = vunpack.c.h.b16 %v1285
    %v1869 = vunpack.c.l.b16 %v1286
    %v1870 = vunpack.c.h.b16 %v1286
    %v1871 = vunpack.c.l.b16 %v1287
    %v1872 = vunpack.c.h.b16 %v1287
    %v1873 = vunpack.c.l.b16 %v1288
    %v1874 = vunpack.c.h.b16 %v1288
    %v1875 = vunpack.c.l.b16 %v1289
    %v1876 = vunpack.c.h.b16 %v1289
    %v1877 = vunpack.c.l.b16 %v1290
    %v1878 = vunpack.c.h.b16 %v1290
    %v1879 = vunpack.c.l.b16 %v1291
    %v1880 = vunpack.c.h.b16 %v1291
    %v1881 = vunpack.c.l.b16 %v1292
    %v1882 = vunpack.c.h.b16 %v1292
    %v1883 = vunpack.c.l.b16 %v1293
    %v1884 = vunpack.c.h.b16 %v1293
    %v1885 = vunpack.c.l.b16 %v1294
    %v1886 = vunpack.c.h.b16 %v1294
    %v1887 = vunpack.c.l.b16 %v1295
    %v1888 = vunpack.c.h.b16 %v1295
    %v1889 = vunpack.c.l.b16 %v1296
    %v1890 = vunpack.c.h.b16 %v1296
    %v1891 = vunpack.c.l.b16 %v1297
    %v1892 = vunpack.c.h.b16 %v1297
    %v1893 = vunpack.c.l.b16 %v1298
    %v1894 = vunpack.c.h.b16 %v1298
    %v1895 = vunpack.c.l.b16 %v1299
    %v1896 = vunpack.c.h.b16 %v1299
    %v1897 = vunpack.c.l.b16 %v1300
    %v1898 = vunpack.c.h.b16 %v1300
    %v1899 = vunpack.c.l.b16 %v1301
    %v1900 = vunpack.c.h.b16 %v1301
    %v1901 = vunpack.c.l.b16 %v1302
    %v1902 = vunpack.c.h.b16 %v1302
    %v1903 = vunpack.c.l.b16 %v1303
    %v1904 = vunpack.c.h.b16 %v1303
    %v1905 = vunpack.c.l.b16 %v1304
    %v1906 = vunpack.c.h.b16 %v1304
    %v1907 = vunpack.c.l.b16 %v1305
    %v1908 = vunpack.c.h.b16 %v1305
    %v1909 = vunpack.c.l.b16 %v1306
    %v1910 = vunpack.c.h.b16 %v1306
    %v1911 = vunpack.c.l.b16 %v1307
    %v1912 = vunpack.c.h.b16 %v1307
    %v1913 = vunpack.c.l.b16 %v1308
    %v1914 = vunpack.c.h.b16 %v1308
    %v1915 = vunpack.c.l.b16 %v1309
    %v1916 = vunpack.c.h.b16 %v1309
    %v1917 = vunpack.c.l.b16 %v1310
    %v1918 = vunpack.c.h.b16 %v1310
    %v1919 = vunpack.c.l.b16 %v1311
    %v1920 = vunpack.c.h.b16 %v1311
    %v1921 = vunpack.c.l.b16 %v1312
    %v1922 = vunpack.c.h.b16 %v1312
    %v1923 = vunpack.c.l.b16 %v1313
    %v1924 = vunpack.c.h.b16 %v1313
    %v1925 = vunpack.c.l.b16 %v1314
    %v1926 = vunpack.c.h.b16 %v1314
    %v1927 = vunpack.c.l.b16 %v1315
    %v1928 = vunpack.c.h.b16 %v1315
    %v1929 = vunpack.c.l.b16 %v1316
    %v1930 = vunpack.c.h.b16 %v1316
    %v1931 = vunpack.c.l.b16 %v1317
    %v1932 = vunpack.c.h.b16 %v1317
    %v1933 = vunpack.c.l.b16 %v1318
    %v1934 = vunpack.c.h.b16 %v1318
    %v1935 = vunpack.c.l.b16 %v1319
    %v1936 = vunpack.c.h.b16 %v1319
    %v1937 = vunpack.c.l.b16 %v1320
    %v1938 = vunpack.c.h.b16 %v1320
    %v1939 = vunpack.c.l.b16 %v1321
    %v1940 = vunpack.c.h.b16 %v1321
    %v1941 = vunpack.c.l.b16 %v1322
    %v1942 = vunpack.c.h.b16 %v1322
    %v1943 = vunpack.c.l.b16 %v1323
    %v1944 = vunpack.c.h.b16 %v1323
    %v1945 = vunpack.c.l.b16 %v1324
    %v1946 = vunpack.c.h.b16 %v1324
    %v1947 = vunpack.c.l.b16 %v1325
    %v1948 = vunpack.c.h.b16 %v1325
    %v1949 = vunpack.c.l.b16 %v1326
    %v1950 = vunpack.c.h.b16 %v1326
    %v1951 = vunpack.c.l.b16 %v1327
    %v1952 = vunpack.c.h.b16 %v1327
    %v1953 = vunpack.c.l.b16 %v1328
    %v1954 = vunpack.c.h.b16 %v1328
    %v1955 = vunpack.c.l.b16 %v1329
    %v1956 = vunpack.c.h.b16 %v1329
    %v1957 = vunpack.c.l.b16 %v1330
    %v1958 = vunpack.c.h.b16 %v1330
    %v1959 = vunpack.c.l.b16 %v1331
    %v1960 = vunpack.c.h.b16 %v1331
    %v1961 = vunpack.c.l.b16 %v1332
    %v1962 = vunpack.c.h.b16 %v1332
    %v1963 = vunpack.c.l.b16 %v1333
    %v1964 = vunpack.c.h.b16 %v1333
    %v1965 = vunpack.c.l.b16 %v1334
    %v1966 = vunpack.c.h.b16 %v1334
    %v1967 = vunpack.c.l.b16 %v1335
    %v1968 = vunpack.c.h.b16 %v1335
    %v1969 = vunpack.c.l.b16 %v1336
    %v1970 = vunpack.c.h.b16 %v1336
    %v1971 = vunpack.c.l.b16 %v1337
    %v1972 = vunpack.c.h.b16 %v1337
    %v1973 = vunpack.c.l.b16 %v1338
    %v1974 = vunpack.c.h.b16 %v1338
    %v1975 = vunpack.c.l.b16 %v1339
    %v1976 = vunpack.c.h.b16 %v1339
    %v1977 = vunpack.c.l.b16 %v1340
    %v1978 = vunpack.c.h.b16 %v1340
    %v1979 = vunpack.c.l.b16 %v1341
    %v1980 = vunpack.c.h.b16 %v1341
    %v1981 = vunpack.c.l.b16 %v1342
    %v1982 = vunpack.c.h.b16 %v1342
    %v1983 = vunpack.c.l.b16 %v1343
    %v1984 = vunpack.c.h.b16 %v1343
    %v1985 = vunpack.c.l.b16 %v1344
    %v1986 = vunpack.c.h.b16 %v1344
    %v1987 = vunpack.c.l.b16 %v1345
    %v1988 = vunpack.c.h.b16 %v1345
    %v1989 = vunpack.c.l.b16 %v1346
    %v1990 = vunpack.c.h.b16 %v1346
    %v1991 = vunpack.c.l.b16 %v1347
    %v1992 = vunpack.c.h.b16 %v1347
    %v1993 = vunpack.c.l.b16 %v1348
    %v1994 = vunpack.c.h.b16 %v1348
    %v1995 = vunpack.c.l.b16 %v1349
    %v1996 = vunpack.c.h.b16 %v1349
    %v1997 = vunpack.c.l.b16 %v1350
    %v1998 = vunpack.c.h.b16 %v1350
    %v1999 = vunpack.c.l.b16 %v1351
    %v2000 = vunpack.c.h.b16 %v1351
    %v2001 = vunpack.c.l.b16 %v1352
    %v2002 = vunpack.c.h.b16 %v1352
    %v2003 = vunpack.c.l.b16 %v1353
    %v2004 = vunpack.c.h.b16 %v1353
    %v2005 = vunpack.c.l.b16 %v1354
    %v2006 = vunpack.c.h.b16 %v1354
    %v2007 = vunpack.c.l.b16 %v1355
    %v2008 = vunpack.c.h.b16 %v1355
    %v2009 = vunpack.c.l.b16 %v1356
    %v2010 = vunpack.c.h.b16 %v1356
    %v2011 = vunpack.c.l.b16 %v1357
    %v2012 = vunpack.c.h.b16 %v1357
    %v2013 = vunpack.c.l.b16 %v1358
    %v2014 = vunpack.c.h.b16 %v1358
    %v2015 = vunpack.c.l.b16 %v1359
    %v2016 = vunpack.c.h.b16 %v1359
    %v2017 = vunpack.c.l.b16 %v1360
    %v2018 = vunpack.c.h.b16 %v1360
    %v2019 = vunpack.c.l.b16 %v1361
    %v2020 = vunpack.c.h.b16 %v1361
    %v2021 = vunpack.c.l.b16 %v1362
    %v2022 = vunpack.c.h.b16 %v1362
    %v2023 = vunpack.c.l.b16 %v1363
    %v2024 = vunpack.c.h.b16 %v1363
    %v2025 = vunpack.c.l.b16 %v1364
    %v2026 = vunpack.c.h.b16 %v1364
    %v2027 = vunpack.c.l.b16 %v1365
    %v2028 = vunpack.c.h.b16 %v1365
    %v2029 = vunpack.c.l.b16 %v1366
    %v2030 = vunpack.c.h.b16 %v1366
    %v2031 = vunpack.c.l.b16 %v1367
    %v2032 = vunpack.c.h.b16 %v1367
    %v2033 = vunpack.c.l.b16 %v1368
    %v2034 = vunpack.c.h.b16 %v1368
    %v2035 = vunpack.c.l.b16 %v1369
    %v2036 = vunpack.c.h.b16 %v1369
    %v2037 = vunpack.c.l.b16 %v1370
    %v2038 = vunpack.c.h.b16 %v1370
    %v2039 = vunpack.c.l.b16 %v1371
    %v2040 = vunpack.c.h.b16 %v1371
    %v2041 = vunpack.c.l.b16 %v1372
    %v2042 = vunpack.c.h.b16 %v1372
    %v2043 = vunpack.c.l.b16 %v1373
    %v2044 = vunpack.c.h.b16 %v1373
    %v2045 = vunpack.c.l.b16 %v1374
    %v2046 = vunpack.c.h.b16 %v1374
    %v2047 = vunpack.c.l.b16 %v1375
    %v2048 = vunpack.c.h.b16 %v1375
    %v2049 = vunpack.c.l.b16 %v1376
    %v2050 = vunpack.c.h.b16 %v1376
    %v2051 = vunpack.c.l.b16 %v1377
    %v2052 = vunpack.c.h.b16 %v1377
    %v2053 = vunpack.c.l.b16 %v1378
    %v2054 = vunpack.c.h.b16 %v1378
    %v2055 = vunpack.c.l.b16 %v1379
    %v2056 = vunpack.c.h.b16 %v1379
    %v2057 = vunpack.c.l.b16 %v1380
    %v2058 = vunpack.c.h.b16 %v1380
    %v2059 = vunpack.c.l.b16 %v1381
    %v2060 = vunpack.c.h.b16 %v1381
    %v2061 = vunpack.c.l.b16 %v1382
    %v2062 = vunpack.c.h.b16 %v1382
    %v2063 = vunpack.c.l.b16 %v1383
    %v2064 = vunpack.c.h.b16 %v1383
    %v2065 = vunpack.c.l.b16 %v1384
    %v2066 = vunpack.c.h.b16 %v1384
    %v2067 = vunpack.c.l.b16 %v1385
    %v2068 = vunpack.c.h.b16 %v1385
    %v2069 = vunpack.c.l.b16 %v1386
    %v2070 = vunpack.c.h.b16 %v1386
    %v2071 = vunpack.c.l.b16 %v1387
    %v2072 = vunpack.c.h.b16 %v1387
    %v2073 = vunpack.c.l.b16 %v1388
    %v2074 = vunpack.c.h.b16 %v1388
    %v2075 = vunpack.c.l.b16 %v1389
    %v2076 = vunpack.c.h.b16 %v1389
    %v2077 = vunpack.c.l.b16 %v1390
    %v2078 = vunpack.c.h.b16 %v1390
    %v2079 = vunpack.c.l.b16 %v1391
    %v2080 = vunpack.c.h.b16 %v1391
    %v2081 = vunpack.c.l.b16 %v1392
    %v2082 = vunpack.c.h.b16 %v1392
    %v2083 = vunpack.c.l.b16 %v1393
    %v2084 = vunpack.c.h.b16 %v1393
    %v2085 = vunpack.c.l.b16 %v1394
    %v2086 = vunpack.c.h.b16 %v1394
    %v2087 = vunpack.c.l.b16 %v1395
    %v2088 = vunpack.c.h.b16 %v1395
    %v2089 = vunpack.c.l.b16 %v1396
    %v2090 = vunpack.c.h.b16 %v1396
    %v2091 = vunpack.c.l.b16 %v1397
    %v2092 = vunpack.c.h.b16 %v1397
    %v2093 = vunpack.c.l.b16 %v1398
    %v2094 = vunpack.c.h.b16 %v1398
    %v2095 = vunpack.c.l.b16 %v1399
    %v2096 = vunpack.c.h.b16 %v1399
    %v2097 = vunpack.c.l.b16 %v1400
    %v2098 = vunpack.c.h.b16 %v1400
    %v2099 = vunpack.c.l.b16 %v1401
    %v2100 = vunpack.c.h.b16 %v1401
    %v2101 = vunpack.c.l.b16 %v1402
    %v2102 = vunpack.c.h.b16 %v1402
    %v2103 = vunpack.c.l.b16 %v1403
    %v2104 = vunpack.c.h.b16 %v1403
    %v2105 = vunpack.c.l.b16 %v1404
    %v2106 = vunpack.c.h.b16 %v1404
    %v2107 = vunpack.c.l.b16 %v1405
    %v2108 = vunpack.c.h.b16 %v1405
    %v2109 = vunpack.c.l.b16 %v1406
    %v2110 = vunpack.c.h.b16 %v1406
    %v2111 = vunpack.c.l.b16 %v1407
    %v2112 = vunpack.c.h.b16 %v1407
    %v2113 = vunpack.c.l.b16 %v1408
    %v2114 = vunpack.c.h.b16 %v1408
    %v2115 = vunpack.c.l.b16 %v1409
    %v2116 = vunpack.c.h.b16 %v1409
    %v2117 = vunpack.c.l.b16 %v1410
    %v2118 = vunpack.c.h.b16 %v1410
    %v2119 = vunpack.c.l.b16 %v1411
    %v2120 = vunpack.c.h.b16 %v1411
    %v2121 = vunpack.c.l.b16 %v1412
    %v2122 = vunpack.c.h.b16 %v1412
    %v2123 = vunpack.c.l.b16 %v1413
    %v2124 = vunpack.c.h.b16 %v1413
    %v2125 = vunpack.c.l.b16 %v1414
    %v2126 = vunpack.c.h.b16 %v1414
    %v2127 = vunpack.c.l.b16 %v1415
    %v2128 = vunpack.c.h.b16 %v1415
    %v2129 = vunpack.c.l.b16 %v1416
    %v2130 = vunpack.c.h.b16 %v1416
    %v2131 = vunpack.c.l.b16 %v1417
    %v2132 = vunpack.c.h.b16 %v1417
    %v2133 = vunpack.c.l.b16 %v1418
    %v2134 = vunpack.c.h.b16 %v1418
    %v2135 = vunpack.c.l.b16 %v1419
    %v2136 = vunpack.c.h.b16 %v1419
    %v2137 = vunpack.c.l.b16 %v1420
    %v2138 = vunpack.c.h.b16 %v1420
    %v2139 = vunpack.c.l.b16 %v1421
    %v2140 = vunpack.c.h.b16 %v1421
    %v2141 = vunpack.c.l.b16 %v1422
    %v2142 = vunpack.c.h.b16 %v1422
    %v2143 = vunpack.c.l.b16 %v1423
    %v2144 = vunpack.c.h.b16 %v1423
    %v2145 = vunpack.c.l.b16 %v1424
    %v2146 = vunpack.c.h.b16 %v1424
    %v2147 = vunpack.c.l.b16 %v1425
    %v2148 = vunpack.c.h.b16 %v1425
    %v2149 = vunpack.c.l.b16 %v1426
    %v2150 = vunpack.c.h.b16 %v1426
    %v2151 = vunpack.c.l.b16 %v1427
    %v2152 = vunpack.c.h.b16 %v1427
    %v2153 = vunpack.c.l.b16 %v1428
    %v2154 = vunpack.c.h.b16 %v1428
    %v2155 = vunpack.c.l.b16 %v1429
    %v2156 = vunpack.c.h.b16 %v1429
    %v2157 = vunpack.c.l.b16 %v1430
    %v2158 = vunpack.c.h.b16 %v1430
    %v2159 = vunpack.c.l.b16 %v1431
    %v2160 = vunpack.c.h.b16 %v1431
    %v2161 = vunpack.c.l.b16 %v1432
    %v2162 = vunpack.c.h.b16 %v1432
    %v2163 = vunpack.c.l.b16 %v1433
    %v2164 = vunpack.c.h.b16 %v1433
    %v2165 = vunpack.c.l.b16 %v1434
    %v2166 = vunpack.c.h.b16 %v1434
    %v2167 = vunpack.c.l.b16 %v1435
    %v2168 = vunpack.c.h.b16 %v1435
    %v2169 = vunpack.c.l.b16 %v1436
    %v2170 = vunpack.c.h.b16 %v1436
    %v2171 = vunpack.c.l.b16 %v1437
    %v2172 = vunpack.c.h.b16 %v1437
    %v2173 = vunpack.c.l.b16 %v1438
    %v2174 = vunpack.c.h.b16 %v1438
    %v2175 = vunpack.c.l.b16 %v1439
    %v2176 = vunpack.c.h.b16 %v1439
    %v2177 = vunpack.c.l.b16 %v1440
    %v2178 = vunpack.c.h.b16 %v1440
    %v2179 = vunpack.c.l.b16 %v1441
    %v2180 = vunpack.c.h.b16 %v1441
    %v2181 = vunpack.c.l.b16 %v1442
    %v2182 = vunpack.c.h.b16 %v1442
    %v2183 = vunpack.c.l.b16 %v1443
    %v2184 = vunpack.c.h.b16 %v1443
    %v2185 = vunpack.c.l.b16 %v1444
    %v2186 = vunpack.c.h.b16 %v1444
    %v2187 = vunpack.c.l.b16 %v1445
    %v2188 = vunpack.c.h.b16 %v1445
    %v2189 = vunpack.c.l.b16 %v1446
    %v2190 = vunpack.c.h.b16 %v1446
    %v2191 = vunpack.c.l.b16 %v1447
    %v2192 = vunpack.c.h.b16 %v1447
    %v2193 = vunpack.c.l.b16 %v1448
    %v2194 = vunpack.c.h.b16 %v1448
    %v2195 = vunpack.c.l.b16 %v1449
    %v2196 = vunpack.c.h.b16 %v1449
    %v2197 = vunpack.c.l.b16 %v1450
    %v2198 = vunpack.c.h.b16 %v1450
    %v2199 = vunpack.c.l.b16 %v1451
    %v2200 = vunpack.c.h.b16 %v1451
    %v2201 = vunpack.c.l.b16 %v1452
    %v2202 = vunpack.c.h.b16 %v1452
    %v2203 = vunpack.c.l.b16 %v1453
    %v2204 = vunpack.c.h.b16 %v1453
    %v2205 = vunpack.c.l.b16 %v1454
    %v2206 = vunpack.c.h.b16 %v1454
    %v2207 = vunpack.c.l.b16 %v1455
    %v2208 = vunpack.c.h.b16 %v1455
    %v2209 = vunpack.c.l.b16 %v1456
    %v2210 = vunpack.c.h.b16 %v1456
    %v2211 = vunpack.c.l.b16 %v1457
    %v2212 = vunpack.c.h.b16 %v1457
    %v2213 = vunpack.c.l.b16 %v1458
    %v2214 = vunpack.c.h.b16 %v1458
    %v2215 = vunpack.c.l.b16 %v1459
    %v2216 = vunpack.c.h.b16 %v1459
    %v2217 = vunpack.c.l.b16 %v1460
    %v2218 = vunpack.c.h.b16 %v1460
    %v2219 = vunpack.c.l.b16 %v1461
    %v2220 = vunpack.c.h.b16 %v1461
    %v2221 = vunpack.c.l.b16 %v1462
    %v2222 = vunpack.c.h.b16 %v1462
    %v2223 = vunpack.c.l.b16 %v1463
    %v2224 = vunpack.c.h.b16 %v1463
    %v2225 = vunpack.c.l.b16 %v1464
    %v2226 = vunpack.c.h.b16 %v1464
    %v2227 = vunpack.c.l.b16 %v1465
    %v2228 = vunpack.c.h.b16 %v1465
    %v2229 = vunpack.c.l.b16 %v1466
    %v2230 = vunpack.c.h.b16 %v1466
    %v2231 = vunpack.c.l.b16 %v1467
    %v2232 = vunpack.c.h.b16 %v1467
    %v2233 = vunpack.c.l.b16 %v1468
    %v2234 = vunpack.c.h.b16 %v1468
    %v2235 = vunpack.c.l.b16 %v1469
    %v2236 = vunpack.c.h.b16 %v1469
    %v2237 = vunpack.c.l.b16 %v1470
    %v2238 = vunpack.c.h.b16 %v1470
    %v2239 = vpack.c.b16 %v1735, %v1727
    %v2240 = vpack.c.b16 %v1736, %v1728
    %v2241 = vpack.c.b16 %v1737, %v1729
    %v2242 = vpack.c.b16 %v1738, %v1730
    %v2243 = vpack.c.b16 %v1739, %v1731
    %v2244 = vpack.c.b16 %v1740, %v1732
    %v2245 = vpack.c.b16 %v1741, %v1733
    %v2246 = vpack.c.b16 %v1742, %v1734
    %v2247 = vpack.c.b16 %v1751, %v1743
    %v2248 = vpack.c.b16 %v1752, %v1744
    %v2249 = vpack.c.b16 %v1753, %v1745
    %v2250 = vpack.c.b16 %v1754, %v1746
    %v2251 = vpack.c.b16 %v1755, %v1747
    %v2252 = vpack.c.b16 %v1756, %v1748
    %v2253 = vpack.c.b16 %v1757, %v1749
    %v2254 = vpack.c.b16 %v1758, %v1750
    %v2255 = vpack.c.b16 %v1767, %v1759
    %v2256 = vpack.c.b16 %v1768, %v1760
    %v2257 = vpack.c.b16 %v1769, %v1761
    %v2258 = vpack.c.b16 %v1770, %v1762
    %v2259 = vpack.c.b16 %v1771, %v1763
    %v2260 = vpack.c.b16 %v1772, %v1764
    %v2261 = vpack.c.b16 %v1773, %v1765
    %v2262 = vpack.c.b16 %v1774, %v1766
    %v2263 = vpack.c.b16 %v1783, %v1775
    %v2264 = vpack.c.b16 %v1784, %v1776
    %v2265 = vpack.c.b16 %v1785, %v1777
    %v2266 = vpack.c.b16 %v1786, %v1778
    %v2267 = vpack.c.b16 %v1787, %v1779
    %v2268 = vpack.c.b16 %v1788, %v1780
    %v2269 = vpack.c.b16 %v1789, %v1781
    %v2270 = vpack.c.b16 %v1790, %v1782
    %v2271 = vpack.c.b16 %v1799, %v1791
    %v2272 = vpack.c.b16 %v1800, %v1792
    %v2273 = vpack.c.b16 %v1801, %v1793
    %v2274 = vpack.c.b16 %v1802, %v1794
    %v2275 = vpack.c.b16 %v1803, %v1795
    %v2276 = vpack.c.b16 %v1804, %v1796
    %v2277 = vpack.c.b16 %v1805, %v1797
    %v2278 = vpack.c.b16 %v1806, %v1798
    %v2279 = vpack.c.b16 %v1815, %v1807
    %v2280 = vpack.c.b16 %v1816, %v1808
    %v2281 = vpack.c.b16 %v1817, %v1809
    %v2282 = vpack.c.b16 %v1818, %v1810
    %v2283 = vpack.c.b16 %v1819, %v1811
    %v2284 = vpack.c.b16 %v1820, %v1812
    %v2285 = vpack.c.b16 %v1821, %v1813
    %v2286 = vpack.c.b16 %v1822, %v1814
    %v2287 = vpack.c.b16 %v1831, %v1823
    %v2288 = vpack.c.b16 %v1832, %v1824
    %v2289 = vpack.c.b16 %v1833, %v1825
    %v2290 = vpack.c.b16 %v1834, %v1826
    %v2291 = vpack.c.b16 %v1835, %v1827
    %v2292 = vpack.c.b16 %v1836, %v1828
    %v2293 = vpack.c.b16 %v1837, %v1829
    %v2294 = vpack.c.b16 %v1838, %v1830
    %v2295 = vpack.c.b16 %v1847, %v1839
    %v2296 = vpack.c.b16 %v1848, %v1840
    %v2297 = vpack.c.b16 %v1849, %v1841
    %v2298 = vpack.c.b16 %v1850, %v1842
    %v2299 = vpack.c.b16 %v1851, %v1843
    %v2300 = vpack.c.b16 %v1852, %v1844
    %v2301 = vpack.c.b16 %v1853, %v1845
    %v2302 = vpack.c.b16 %v1854, %v1846
    %v2303 = vpack.c.b16 %v1863, %v1855
    %v2304 = vpack.c.b16 %v1864, %v1856
    %v2305 = vpack.c.b16 %v1865, %v1857
    %v2306 = vpack.c.b16 %v1866, %v1858
    %v2307 = vpack.c.b16 %v1867, %v1859
    %v2308 = vpack.c.b16 %v1868, %v1860
    %v2309 = vpack.c.b16 %v1869, %v1861
    %v2310 = vpack.c.b16 %v1870, %v1862
    %v2311 = vpack.c.b16 %v1879, %v1871
    %v2312 = vpack.c.b16 %v1880, %v1872
    %v2313 = vpack.c.b16 %v1881, %v1873
    %v2314 = vpack.c.b16 %v1882, %v1874
    %v2315 = vpack.c.b16 %v1883, %v1875
    %v2316 = vpack.c.b16 %v1884, %v1876
    %v2317 = vpack.c.b16 %v1885, %v1877
    %v2318 = vpack.c.b16 %v1886, %v1878
    %v2319 = vpack.c.b16 %v1895, %v1887
    %v2320 = vpack.c.b16 %v1896, %v1888
    %v2321 = vpack.c.b16 %v1897, %v1889
    %v2322 = vpack.c.b16 %v1898, %v1890
    %v2323 = vpack.c.b16 %v1899, %v1891
    %v2324 = vpack.c.b16 %v1900, %v1892
    %v2325 = vpack.c.b16 %v1901, %v1893
    %v2326 = vpack.c.b16 %v1902, %v1894
    %v2327 = vpack.c.b16 %v1911, %v1903
    %v2328 = vpack.c.b16 %v1912, %v1904
    %v2329 = vpack.c.b16 %v1913, %v1905
    %v2330 = vpack.c.b16 %v1914, %v1906
    %v2331 = vpack.c.b16 %v1915, %v1907
    %v2332 = vpack.c.b16 %v1916, %v1908
    %v2333 = vpack.c.b16 %v1917, %v1909
    %v2334 = vpack.c.b16 %v1918, %v1910
    %v2335 = vpack.c.b16 %v1927, %v1919
    %v2336 = vpack.c.b16 %v1928, %v1920
    %v2337 = vpack.c.b16 %v1929, %v1921
    %v2338 = vpack.c.b16 %v1930, %v1922
    %v2339 = vpack.c.b16 %v1931, %v1923
    %v2340 = vpack.c.b16 %v1932, %v1924
    %v2341 = vpack.c.b16 %v1933, %v1925
    %v2342 = vpack.c.b16 %v1934, %v1926
    %v2343 = vpack.c.b16 %v1943, %v1935
    %v2344 = vpack.c.b16 %v1944, %v1936
    %v2345 = vpack.c.b16 %v1945, %v1937
    %v2346 = vpack.c.b16 %v1946, %v1938
    %v2347 = vpack.c.b16 %v1947, %v1939
    %v2348 = vpack.c.b16 %v1948, %v1940
    %v2349 = vpack.c.b16 %v1949, %v1941
    %v2350 = vpack.c.b16 %v1950, %v1942
    %v2351 = vpack.c.b16 %v1959, %v1951
    %v2352 = vpack.c.b16 %v1960, %v1952
    %v2353 = vpack.c.b16 %v1961, %v1953
    %v2354 = vpack.c.b16 %v1962, %v1954
    %v2355 = vpack.c.b16 %v1963, %v1955
    %v2356 = vpack.c.b16 %v1964, %v1956
    %v2357 = vpack.c.b16 %v1965, %v1957
    %v2358 = vpack.c.b16 %v1966, %v1958
    %v2359 = vpack.c.b16 %v1975, %v1967
    %v2360 = vpack.c.b16 %v1976, %v1968
    %v2361 = vpack.c.b16 %v1977, %v1969
    %v2362 = vpack.c.b16 %v1978, %v1970
    %v2363 = vpack.c.b16 %v1979, %v1971
    %v2364 = vpack.c.b16 %v1980, %v1972
    %v2365 = vpack.c.b16 %v1981, %v1973
    %v2366 = vpack.c.b16 %v1982, %v1974
    %v2367 = vpack.c.b16 %v1991, %v1983
    %v2368 = vpack.c.b16 %v1992, %v1984
    %v2369 = vpack.c.b16 %v1993, %v1985
    %v2370 = vpack.c.b16 %v1994, %v1986
    %v2371 = vpack.c.b16 %v1995, %v1987
    %v2372 = vpack.c.b16 %v1996, %v1988
    %v2373 = vpack.c.b16 %v1997, %v1989
    %v2374 = vpack.c.b16 %v1998, %v1990
    %v2375 = vpack.c.b16 %v2007, %v1999
    %v2376 = vpack.c.b16 %v2008, %v2000
    %v2377 = vpack.c.b16 %v2009, %v2001
    %v2378 = vpack.c.b16 %v2010, %v2002
    %v2379 = vpack.c.b16 %v2011, %v2003
    %v2380 = vpack.c.b16 %v2012, %v2004
    %v2381 = vpack.c.b16 %v2013, %v2005
    %v2382 = vpack.c.b16 %v2014, %v2006
    %v2383 = vpack.c.b16 %v2023, %v2015
    %v2384 = vpack.c.b16 %v2024, %v2016
    %v2385 = vpack.c.b16 %v2025, %v2017
    %v2386 = vpack.c.b16 %v2026, %v2018
    %v2387 = vpack.c.b16 %v2027, %v2019
    %v2388 = vpack.c.b16 %v2028, %v2020
    %v2389 = vpack.c.b16 %v2029, %v2021
    %v2390 = vpack.c.b16 %v2030, %v2022
    %v2391 = vpack.c.b16 %v2039, %v2031
    %v2392 = vpack.c.b16 %v2040, %v2032
    %v2393 = vpack.c.b16 %v2041, %v2033
    %v2394 = vpack.c.b16 %v2042, %v2034
    %v2395 = vpack.c.b16 %v2043, %v2035
    %v2396 = vpack.c.b16 %v2044, %v2036
    %v2397 = vpack.c.b16 %v2045, %v2037
    %v2398 = vpack.c.b16 %v2046, %v2038
    %v2399 = vpack.c.b16 %v2055, %v2047
    %v2400 = vpack.c.b16 %v2056, %v2048
    %v2401 = vpack.c.b16 %v2057, %v2049
    %v2402 = vpack.c.b16 %v2058, %v2050
    %v2403 = vpack.c.b16 %v2059, %v2051
    %v2404 = vpack.c.b16 %v2060, %v2052
    %v2405 = vpack.c.b16 %v2061, %v2053
    %v2406 = vpack.c.b16 %v2062, %v2054
    %v2407 = vpack.c.b16 %v2071, %v2063
    %v2408 = vpack.c.b16 %v2072, %v2064
    %v2409 = vpack.c.b16 %v2073, %v2065
    %v2410 = vpack.c.b16 %v2074, %v2066
    %v2411 = vpack.c.b16 %v2075, %v2067
    %v2412 = vpack.c.b16 %v2076, %v2068
    %v2413 = vpack.c.b16 %v2077, %v2069
    %v2414 = vpack.c.b16 %v2078, %v2070
    %v2415 = vpack.c.b16 %v2087, %v2079
    %v2416 = vpack.c.b16 %v2088, %v2080
    %v2417 = vpack.c.b16 %v2089, %v2081
    %v2418 = vpack.c.b16 %v2090, %v2082
    %v2419 = vpack.c.b16 %v2091, %v2083
    %v2420 = vpack.c.b16 %v2092, %v2084
    %v2421 = vpack.c.b16 %v2093, %v2085
    %v2422 = vpack.c.b16 %v2094, %v2086
    %v2423 = vpack.c.b16 %v2103, %v2095
    %v2424 = vpack.c.b16 %v2104, %v2096
    %v2425 = vpack.c.b16 %v2105, %v2097
    %v2426 = vpack.c.b16 %v2106, %v2098
    %v2427 = vpack.c.b16 %v2107, %v2099
    %v2428 = vpack.c.b16 %v2108, %v2100
    %v2429 = vpack.c.b16 %v2109, %v2101
    %v2430 = vpack.c.b16 %v2110, %v2102
    %v2431 = vpack.c.b16 %v2119, %v2111
    %v2432 = vpack.c.b16 %v2120, %v2112
    %v2433 = vpack.c.b16 %v2121, %v2113
    %v2434 = vpack.c.b16 %v2122, %v2114
    %v2435 = vpack.c.b16 %v2123, %v2115
    %v2436 = vpack.c.b16 %v2124, %v2116
    %v2437 = vpack.c.b16 %v2125, %v2117
    %v2438 = vpack.c.b16 %v2126, %v2118
    %v2439 = vpack.c.b16 %v2135, %v2127
    %v2440 = vpack.c.b16 %v2136, %v2128
    %v2441 = vpack.c.b16 %v2137, %v2129
    %v2442 = vpack.c.b16 %v2138, %v2130
    %v2443 = vpack.c.b16 %v2139, %v2131
    %v2444 = vpack.c.b16 %v2140, %v2132
    %v2445 = vpack.c.b16 %v2141, %v2133
    %v2446 = vpack.c.b16 %v2142, %v2134
    %v2447 = vpack.c.b16 %v2151, %v2143
    %v2448 = vpack.c.b16 %v2152, %v2144
    %v2449 = vpack.c.b16 %v2153, %v2145
    %v2450 = vpack.c.b16 %v2154, %v2146
    %v2451 = vpack.c.b16 %v2155, %v2147
    %v2452 = vpack.c.b16 %v2156, %v2148
    %v2453 = vpack.c.b16 %v2157, %v2149
    %v2454 = vpack.c.b16 %v2158, %v2150
    %v2455 = vpack.c.b16 %v2167, %v2159
    %v2456 = vpack.c.b16 %v2168, %v2160
    %v2457 = vpack.c.b16 %v2169, %v2161
    %v2458 = vpack.c.b16 %v2170, %v2162
    %v2459 = vpack.c.b16 %v2171, %v2163
    %v2460 = vpack.c.b16 %v2172, %v2164
    %v2461 = vpack.c.b16 %v2173, %v2165
    %v2462 = vpack.c.b16 %v2174, %v2166
    %v2463 = vpack.c.b16 %v2183, %v2175
    %v2464 = vpack.c.b16 %v2184, %v2176
    %v2465 = vpack.c.b16 %v2185, %v2177
    %v2466 = vpack.c.b16 %v2186, %v2178
    %v2467 = vpack.c.b16 %v2187, %v2179
    %v2468 = vpack.c.b16 %v2188, %v2180
    %v2469 = vpack.c.b16 %v2189, %v2181
    %v2470 = vpack.c.b16 %v2190, %v2182
    %v2471 = vpack.c.b16 %v2199, %v2191
    %v2472 = vpack.c.b16 %v2200, %v2192
    %v2473 = vpack.c.b16 %v2201, %v2193
    %v2474 = vpack.c.b16 %v2202, %v2194
    %v2475 = vpack.c.b16 %v2203, %v2195
    %v2476 = vpack.c.b16 %v2204, %v2196
    %v2477 = vpack.c.b16 %v2205, %v2197
    %v2478 = vpack.c.b16 %v2206, %v2198
    %v2479 = vpack.c.b16 %v2215, %v2207
    %v2480 = vpack.c.b16 %v2216, %v2208
    %v2481 = vpack.c.b16 %v2217, %v2209
    %v2482 = vpack.c.b16 %v2218, %v2210
    %v2483 = vpack.c.b16 %v2219, %v2211
    %v2484 = vpack.c.b16 %v2220, %v2212
    %v2485 = vpack.c.b16 %v2221, %v2213
    %v2486 = vpack.c.b16 %v2222, %v2214
    %v2487 = vpack.c.b16 %v2231, %v2223
    %v2488 = vpack.c.b16 %v2232, %v2224
    %v2489 = vpack.c.b16 %v2233, %v2225
    %v2490 = vpack.c.b16 %v2234, %v2226
    %v2491 = vpack.c.b16 %v2235, %v2227
    %v2492 = vpack.c.b16 %v2236, %v2228
    %v2493 = vpack.c.b16 %v2237, %v2229
    %v2494 = vpack.c.b16 %v2238, %v2230
    %2751 = vmatprep.subr.bf16.mxu0 %v2240
    %2752 = vmatpush1.bf16.msra.mxu0 %v2239
    %2753 = vmatprep.subr.bf16.mxu0 %v2248
    %2754 = vmatpush1.bf16.msra.mxu0 %v2247
    %2755 = vmatprep.subr.bf16.mxu0 %v2256
    %2756 = vmatpush1.bf16.msra.mxu0 %v2255
    %2757 = vmatprep.subr.bf16.mxu0 %v2264
    %2758 = vmatpush1.bf16.msra.mxu0 %v2263
    %2759 = vmatprep.subr.bf16.mxu0 %v2272
    %2760 = vmatpush1.bf16.msra.mxu0 %v2271
    %2761 = vmatprep.subr.bf16.mxu0 %v2280
    %2762 = vmatpush1.bf16.msra.mxu0 %v2279
    %2763 = vmatprep.subr.bf16.mxu0 %v2288
    %2764 = vmatpush1.bf16.msra.mxu0 %v2287
    %2765 = vmatprep.subr.bf16.mxu0 %v2296
    %2766 = vmatpush1.bf16.msra.mxu0 %v2295
    %2767 = vmatprep.subr.bf16.mxu0 %v2304
    %2768 = vmatpush1.bf16.msra.mxu0 %v2303
    %2769 = vmatprep.subr.bf16.mxu0 %v2312
    %2770 = vmatpush1.bf16.msra.mxu0 %v2311
    %2771 = vmatprep.subr.bf16.mxu0 %v2320
    %2772 = vmatpush1.bf16.msra.mxu0 %v2319
    %2773 = vmatprep.subr.bf16.mxu0 %v2328
    %2774 = vmatpush1.bf16.msra.mxu0 %v2327
    %2775 = vmatprep.subr.bf16.mxu0 %v2336
    %2776 = vmatpush1.bf16.msra.mxu0 %v2335
    %2777 = vmatprep.subr.bf16.mxu0 %v2344
    %2778 = vmatpush1.bf16.msra.mxu0 %v2343
    %2779 = vmatprep.subr.bf16.mxu0 %v2352
    %2780 = vmatpush1.bf16.msra.mxu0 %v2351
    %2781 = vmatprep.subr.bf16.mxu0 %v2360
    %2782 = vmatpush1.bf16.msra.mxu0 %v2359
    %2783 = vmatprep.mubr.bf16.mxu0 %v1212
    %2784 = vmatmul.mubr.bf16.gmra.mrb[0].mxu0 %v1211
    %v2785 = vpop.f32.mrb[0].mxu0
    %v2786 = vadd.f32 0.0, %v2785
    %v2787 = vpop.f32.mrb[0].mxu0
    %v2788 = vadd.f32 0.0, %v2787
    %v2789 = vpop.f32.mrb[0].mxu0
    %v2790 = vpop.f32.mrb[0].mxu0
    %2791 = vdwg.mxu0
    %2792 = vmatprep.subr.bf16.mxu0 %v2368
    %2793 = vmatpush1.bf16.msra.mxu0 %v2367
    %2794 = vmatprep.subr.bf16.mxu0 %v2376
    %2795 = vmatpush1.bf16.msra.mxu0 %v2375
    %2796 = vmatprep.subr.bf16.mxu0 %v2384
    %2797 = vmatpush1.bf16.msra.mxu0 %v2383
    %2798 = vmatprep.subr.bf16.mxu0 %v2392
    %2799 = vmatpush1.bf16.msra.mxu0 %v2391
    %2800 = vmatprep.subr.bf16.mxu0 %v2400
    %2801 = vmatpush1.bf16.msra.mxu0 %v2399
    %2802 = vmatprep.subr.bf16.mxu0 %v2408
    %2803 = vmatpush1.bf16.msra.mxu0 %v2407
    %2804 = vmatprep.subr.bf16.mxu0 %v2416
    %2805 = vmatpush1.bf16.msra.mxu0 %v2415
    %2806 = vmatprep.subr.bf16.mxu0 %v2424
    %2807 = vmatpush1.bf16.msra.mxu0 %v2423
    %2808 = vmatprep.subr.bf16.mxu0 %v2432
    %2809 = vmatpush1.bf16.msra.mxu0 %v2431
    %2810 = vmatprep.subr.bf16.mxu0 %v2440
    %2811 = vmatpush1.bf16.msra.mxu0 %v2439
    %2812 = vmatprep.subr.bf16.mxu0 %v2448
    %2813 = vmatpush1.bf16.msra.mxu0 %v2447
    %2814 = vmatprep.subr.bf16.mxu0 %v2456
    %2815 = vmatpush1.bf16.msra.mxu0 %v2455
    %2816 = vmatprep.subr.bf16.mxu0 %v2464
    %2817 = vmatpush1.bf16.msra.mxu0 %v2463
    %2818 = vmatprep.subr.bf16.mxu0 %v2472
    %2819 = vmatpush1.bf16.msra.mxu0 %v2471
    %2820 = vmatprep.subr.bf16.mxu0 %v2480
    %2821 = vmatpush1.bf16.msra.mxu0 %v2479
    %2822 = vmatprep.subr.bf16.mxu0 %v2488
    %2823 = vmatpush1.bf16.msra.mxu0 %v2487
    %2824 = vmatprep.mubr.bf16.mxu0 %v1214
    %2825 = vmatmul.mubr.bf16.gmra.mrb[0].mxu0 %v1213
    %v2826 = vpop.f32.mrb[0].mxu0
    %v2827 = vadd.f32 %v2786, %v2826
    %v2828 = vpop.f32.mrb[0].mxu0
    %v2829 = vadd.f32 %v2788, %v2828
    %v2830 = vpop.f32.mrb[0].mxu0
    %v2831 = vpop.f32.mrb[0].mxu0
    %2832 = vdwg.mxu0
    %2833 = vmatprep.subr.bf16.mxu0 %v2242
    %2834 = vmatpush1.bf16.msra.mxu0 %v2241
    %2835 = vmatprep.subr.bf16.mxu0 %v2250
    %2836 = vmatpush1.bf16.msra.mxu0 %v2249
    %2837 = vmatprep.subr.bf16.mxu0 %v2258
    %2838 = vmatpush1.bf16.msra.mxu0 %v2257
    %2839 = vmatprep.subr.bf16.mxu0 %v2266
    %2840 = vmatpush1.bf16.msra.mxu0 %v2265
    %2841 = vmatprep.subr.bf16.mxu0 %v2274
    %2842 = vmatpush1.bf16.msra.mxu0 %v2273
    %2843 = vmatprep.subr.bf16.mxu0 %v2282
    %2844 = vmatpush1.bf16.msra.mxu0 %v2281
    %2845 = vmatprep.subr.bf16.mxu0 %v2290
    %2846 = vmatpush1.bf16.msra.mxu0 %v2289
    %2847 = vmatprep.subr.bf16.mxu0 %v2298
    %2848 = vmatpush1.bf16.msra.mxu0 %v2297
    %2849 = vmatprep.subr.bf16.mxu0 %v2306
    %2850 = vmatpush1.bf16.msra.mxu0 %v2305
    %2851 = vmatprep.subr.bf16.mxu0 %v2314
    %2852 = vmatpush1.bf16.msra.mxu0 %v2313
    %2853 = vmatprep.subr.bf16.mxu0 %v2322
    %2854 = vmatpush1.bf16.msra.mxu0 %v2321
    %2855 = vmatprep.subr.bf16.mxu0 %v2330
    %2856 = vmatpush1.bf16.msra.mxu0 %v2329
    %2857 = vmatprep.subr.bf16.mxu0 %v2338
    %2858 = vmatpush1.bf16.msra.mxu0 %v2337
    %2859 = vmatprep.subr.bf16.mxu0 %v2346
    %2860 = vmatpush1.bf16.msra.mxu0 %v2345
    %2861 = vmatprep.subr.bf16.mxu0 %v2354
    %2862 = vmatpush1.bf16.msra.mxu0 %v2353
    %2863 = vmatprep.subr.bf16.mxu0 %v2362
    %2864 = vmatpush1.bf16.msra.mxu0 %v2361
    %2865 = vmatprep.mubr.bf16.mxu0 %v1212
    %2866 = vmatmul.mubr.bf16.gmra.mrb[0].mxu0 %v1211
    %v2867 = vpop.f32.mrb[0].mxu0
    %v2868 = vadd.f32 0.0, %v2867
    %v2869 = vpop.f32.mrb[0].mxu0
    %v2870 = vadd.f32 0.0, %v2869
    %v2871 = vpop.f32.mrb[0].mxu0
    %v2872 = vpop.f32.mrb[0].mxu0
    %2873 = vdwg.mxu0
    %2874 = vmatprep.subr.bf16.mxu0 %v2370
    %2875 = vmatpush1.bf16.msra.mxu0 %v2369
    %2876 = vmatprep.subr.bf16.mxu0 %v2378
    %2877 = vmatpush1.bf16.msra.mxu0 %v2377
    %2878 = vmatprep.subr.bf16.mxu0 %v2386
    %2879 = vmatpush1.bf16.msra.mxu0 %v2385
    %2880 = vmatprep.subr.bf16.mxu0 %v2394
    %2881 = vmatpush1.bf16.msra.mxu0 %v2393
    %2882 = vmatprep.subr.bf16.mxu0 %v2402
    %2883 = vmatpush1.bf16.msra.mxu0 %v2401
    %2884 = vmatprep.subr.bf16.mxu0 %v2410
    %2885 = vmatpush1.bf16.msra.mxu0 %v2409
    %2886 = vmatprep.subr.bf16.mxu0 %v2418
    %2887 = vmatpush1.bf16.msra.mxu0 %v2417
    %2888 = vmatprep.subr.bf16.mxu0 %v2426
    %2889 = vmatpush1.bf16.msra.mxu0 %v2425
    %2890 = vmatprep.subr.bf16.mxu0 %v2434
    %2891 = vmatpush1.bf16.msra.mxu0 %v2433
    %2892 = vmatprep.subr.bf16.mxu0 %v2442
    %2893 = vmatpush1.bf16.msra.mxu0 %v2441
    %2894 = vmatprep.subr.bf16.mxu0 %v2450
    %2895 = vmatpush1.bf16.msra.mxu0 %v2449
    %2896 = vmatprep.subr.bf16.mxu0 %v2458
    %2897 = vmatpush1.bf16.msra.mxu0 %v2457
    %2898 = vmatprep.subr.bf16.mxu0 %v2466
    %2899 = vmatpush1.bf16.msra.mxu0 %v2465
    %2900 = vmatprep.subr.bf16.mxu0 %v2474
    %2901 = vmatpush1.bf16.msra.mxu0 %v2473
    %2902 = vmatprep.subr.bf16.mxu0 %v2482
    %2903 = vmatpush1.bf16.msra.mxu0 %v2481
    %2904 = vmatprep.subr.bf16.mxu0 %v2490
    %2905 = vmatpush1.bf16.msra.mxu0 %v2489
    %2906 = vmatprep.mubr.bf16.mxu0 %v1214
    %2907 = vmatmul.mubr.bf16.gmra.mrb[0].mxu0 %v1213
    %v2908 = vpop.f32.mrb[0].mxu0
    %v2909 = vadd.f32 %v2868, %v2908
    %v2910 = vpop.f32.mrb[0].mxu0
    %v2911 = vadd.f32 %v2870, %v2910
    %v2912 = vpop.f32.mrb[0].mxu0
    %v2913 = vpop.f32.mrb[0].mxu0
    %2914 = vdwg.mxu0
    %2915 = vmatprep.subr.bf16.mxu0 %v2244
    %2916 = vmatpush1.bf16.msra.mxu0 %v2243
    %2917 = vmatprep.subr.bf16.mxu0 %v2252
    %2918 = vmatpush1.bf16.msra.mxu0 %v2251
    %2919 = vmatprep.subr.bf16.mxu0 %v2260
    %2920 = vmatpush1.bf16.msra.mxu0 %v2259
    %2921 = vmatprep.subr.bf16.mxu0 %v2268
    %2922 = vmatpush1.bf16.msra.mxu0 %v2267
    %2923 = vmatprep.subr.bf16.mxu0 %v2276
    %2924 = vmatpush1.bf16.msra.mxu0 %v2275
    %2925 = vmatprep.subr.bf16.mxu0 %v2284
    %2926 = vmatpush1.bf16.msra.mxu0 %v2283
    %2927 = vmatprep.subr.bf16.mxu0 %v2292
    %2928 = vmatpush1.bf16.msra.mxu0 %v2291
    %2929 = vmatprep.subr.bf16.mxu0 %v2300
    %2930 = vmatpush1.bf16.msra.mxu0 %v2299
    %2931 = vmatprep.subr.bf16.mxu0 %v2308
    %2932 = vmatpush1.bf16.msra.mxu0 %v2307
    %2933 = vmatprep.subr.bf16.mxu0 %v2316
    %2934 = vmatpush1.bf16.msra.mxu0 %v2315
    %2935 = vmatprep.subr.bf16.mxu0 %v2324
    %2936 = vmatpush1.bf16.msra.mxu0 %v2323
    %2937 = vmatprep.subr.bf16.mxu0 %v2332
    %2938 = vmatpush1.bf16.msra.mxu0 %v2331
    %2939 = vmatprep.subr.bf16.mxu0 %v2340
    %2940 = vmatpush1.bf16.msra.mxu0 %v2339
    %2941 = vmatprep.subr.bf16.mxu0 %v2348
    %2942 = vmatpush1.bf16.msra.mxu0 %v2347
    %2943 = vmatprep.subr.bf16.mxu0 %v2356
    %2944 = vmatpush1.bf16.msra.mxu0 %v2355
    %2945 = vmatprep.subr.bf16.mxu0 %v2364
    %2946 = vmatpush1.bf16.msra.mxu0 %v2363
    %2947 = vmatprep.mubr.bf16.mxu0 %v1212
    %2948 = vmatmul.mubr.bf16.gmra.mrb[0].mxu0 %v1211
    %v2949 = vpop.f32.mrb[0].mxu0
    %v2950 = vadd.f32 0.0, %v2949
    %v2951 = vpop.f32.mrb[0].mxu0
    %v2952 = vadd.f32 0.0, %v2951
    %v2953 = vpop.f32.mrb[0].mxu0
    %v2954 = vpop.f32.mrb[0].mxu0
    %2955 = vdwg.mxu0
    %2956 = vmatprep.subr.bf16.mxu0 %v2372
    %2957 = vmatpush1.bf16.msra.mxu0 %v2371
    %2958 = vmatprep.subr.bf16.mxu0 %v2380
    %2959 = vmatpush1.bf16.msra.mxu0 %v2379
    %2960 = vmatprep.subr.bf16.mxu0 %v2388
    %2961 = vmatpush1.bf16.msra.mxu0 %v2387
    %2962 = vmatprep.subr.bf16.mxu0 %v2396
    %2963 = vmatpush1.bf16.msra.mxu0 %v2395
    %2964 = vmatprep.subr.bf16.mxu0 %v2404
    %2965 = vmatpush1.bf16.msra.mxu0 %v2403
    %2966 = vmatprep.subr.bf16.mxu0 %v2412
    %2967 = vmatpush1.bf16.msra.mxu0 %v2411
    %2968 = vmatprep.subr.bf16.mxu0 %v2420
    %2969 = vmatpush1.bf16.msra.mxu0 %v2419
    %2970 = vmatprep.subr.bf16.mxu0 %v2428
    %2971 = vmatpush1.bf16.msra.mxu0 %v2427
    %2972 = vmatprep.subr.bf16.mxu0 %v2436
    %2973 = vmatpush1.bf16.msra.mxu0 %v2435
    %2974 = vmatprep.subr.bf16.mxu0 %v2444
    %2975 = vmatpush1.bf16.msra.mxu0 %v2443
    %2976 = vmatprep.subr.bf16.mxu0 %v2452
    %2977 = vmatpush1.bf16.msra.mxu0 %v2451
    %2978 = vmatprep.subr.bf16.mxu0 %v2460
    %2979 = vmatpush1.bf16.msra.mxu0 %v2459
    %2980 = vmatprep.subr.bf16.mxu0 %v2468
    %2981 = vmatpush1.bf16.msra.mxu0 %v2467
    %2982 = vmatprep.subr.bf16.mxu0 %v2476
    %2983 = vmatpush1.bf16.msra.mxu0 %v2475
    %2984 = vmatprep.subr.bf16.mxu0 %v2484
    %2985 = vmatpush1.bf16.msra.mxu0 %v2483
    %2986 = vmatprep.subr.bf16.mxu0 %v2492
    %2987 = vmatpush1.bf16.msra.mxu0 %v2491
    %2988 = vmatprep.mubr.bf16.mxu0 %v1214
    %2989 = vmatmul.mubr.bf16.gmra.mrb[0].mxu0 %v1213
    %v2990 = vpop.f32.mrb[0].mxu0
    %v2991 = vadd.f32 %v2950, %v2990
    %v2992 = vpop.f32.mrb[0].mxu0
    %v2993 = vadd.f32 %v2952, %v2992
    %v2994 = vpop.f32.mrb[0].mxu0
    %v2995 = vpop.f32.mrb[0].mxu0
    %2996 = vdwg.mxu0
    %2997 = vmatprep.subr.bf16.mxu0 %v2246
    %2998 = vmatpush1.bf16.msra.mxu0 %v2245
    %2999 = vmatprep.subr.bf16.mxu0 %v2254
    %3000 = vmatpush1.bf16.msra.mxu0 %v2253
    %3001 = vmatprep.subr.bf16.mxu0 %v2262
    %3002 = vmatpush1.bf16.msra.mxu0 %v2261
    %3003 = vmatprep.subr.bf16.mxu0 %v2270
    %3004 = vmatpush1.bf16.msra.mxu0 %v2269
    %3005 = vmatprep.subr.bf16.mxu0 %v2278
    %3006 = vmatpush1.bf16.msra.mxu0 %v2277
    %3007 = vmatprep.subr.bf16.mxu0 %v2286
    %3008 = vmatpush1.bf16.msra.mxu0 %v2285
    %3009 = vmatprep.subr.bf16.mxu0 %v2294
    %3010 = vmatpush1.bf16.msra.mxu0 %v2293
    %3011 = vmatprep.subr.bf16.mxu0 %v2302
    %3012 = vmatpush1.bf16.msra.mxu0 %v2301
    %3013 = vmatprep.subr.bf16.mxu0 %v2310
    %3014 = vmatpush1.bf16.msra.mxu0 %v2309
    %3015 = vmatprep.subr.bf16.mxu0 %v2318
    %3016 = vmatpush1.bf16.msra.mxu0 %v2317
    %3017 = vmatprep.subr.bf16.mxu0 %v2326
    %3018 = vmatpush1.bf16.msra.mxu0 %v2325
    %3019 = vmatprep.subr.bf16.mxu0 %v2334
    %3020 = vmatpush1.bf16.msra.mxu0 %v2333
    %3021 = vmatprep.subr.bf16.mxu0 %v2342
    %3022 = vmatpush1.bf16.msra.mxu0 %v2341
    %3023 = vmatprep.subr.bf16.mxu0 %v2350
    %3024 = vmatpush1.bf16.msra.mxu0 %v2349
    %3025 = vmatprep.subr.bf16.mxu0 %v2358
    %3026 = vmatpush1.bf16.msra.mxu0 %v2357
    %3027 = vmatprep.subr.bf16.mxu0 %v2366
    %3028 = vmatpush1.bf16.msra.mxu0 %v2365
    %3029 = vmatprep.mubr.bf16.mxu0 %v1212
    %3030 = vmatmul.mubr.bf16.gmra.mrb[0].mxu0 %v1211
    %v3031 = vpop.f32.mrb[0].mxu0
    %v3032 = vadd.f32 0.0, %v3031
    %v3033 = vpop.f32.mrb[0].mxu0
    %v3034 = vadd.f32 0.0, %v3033
    %v3035 = vpop.f32.mrb[0].mxu0
    %v3036 = vpop.f32.mrb[0].mxu0
    %3037 = vdwg.mxu0
    %3038 = vmatprep.subr.bf16.mxu0 %v2374
    %3039 = vmatpush1.bf16.msra.mxu0 %v2373
    %3040 = vmatprep.subr.bf16.mxu0 %v2382
    %3041 = vmatpush1.bf16.msra.mxu0 %v2381
    %3042 = vmatprep.subr.bf16.mxu0 %v2390
    %3043 = vmatpush1.bf16.msra.mxu0 %v2389
    %3044 = vmatprep.subr.bf16.mxu0 %v2398
    %3045 = vmatpush1.bf16.msra.mxu0 %v2397
    %3046 = vmatprep.subr.bf16.mxu0 %v2406
    %3047 = vmatpush1.bf16.msra.mxu0 %v2405
    %3048 = vmatprep.subr.bf16.mxu0 %v2414
    %3049 = vmatpush1.bf16.msra.mxu0 %v2413
    %3050 = vmatprep.subr.bf16.mxu0 %v2422
    %3051 = vmatpush1.bf16.msra.mxu0 %v2421
    %3052 = vmatprep.subr.bf16.mxu0 %v2430
    %3053 = vmatpush1.bf16.msra.mxu0 %v2429
    %3054 = vmatprep.subr.bf16.mxu0 %v2438
    %3055 = vmatpush1.bf16.msra.mxu0 %v2437
    %3056 = vmatprep.subr.bf16.mxu0 %v2446
    %3057 = vmatpush1.bf16.msra.mxu0 %v2445
    %3058 = vmatprep.subr.bf16.mxu0 %v2454
    %3059 = vmatpush1.bf16.msra.mxu0 %v2453
    %3060 = vmatprep.subr.bf16.mxu0 %v2462
    %3061 = vmatpush1.bf16.msra.mxu0 %v2461
    %3062 = vmatprep.subr.bf16.mxu0 %v2470
    %3063 = vmatpush1.bf16.msra.mxu0 %v2469
    %3064 = vmatprep.subr.bf16.mxu0 %v2478
    %3065 = vmatpush1.bf16.msra.mxu0 %v2477
    %3066 = vmatprep.subr.bf16.mxu0 %v2486
    %3067 = vmatpush1.bf16.msra.mxu0 %v2485
    %3068 = vmatprep.subr.bf16.mxu0 %v2494
    %3069 = vmatpush1.bf16.msra.mxu0 %v2493
    %3070 = vmatprep.mubr.bf16.mxu0 %v1214
    %3071 = vmatmul.mubr.bf16.gmra.mrb[0].mxu0 %v1213
    %v3072 = vpop.f32.mrb[0].mxu0
    %v3073 = vadd.f32 %v3032, %v3072
    %v3074 = vpop.f32.mrb[0].mxu0
    %v3075 = vadd.f32 %v3034, %v3074
    %v3076 = vpop.f32.mrb[0].mxu0
    %v3077 = vpop.f32.mrb[0].mxu0
    %3078 = vdwg.mxu0
    %v3079 = vrot.slane %v2827, 4
    %v3080 = vadd.f32 %v2827, %v3079
    %v3081 = vrot.slane %v3080, 2
    %v3082 = vadd.f32 %v3080, %v3081
    %v3083 = vrot.slane %v3082, 1
    %v3084 = vadd.f32 %v3082, %v3083
    %v3085 = vrot.slane %v2829, 4
    %v3086 = vadd.f32 %v2829, %v3085
    %v3087 = vrot.slane %v3086, 2
    %v3088 = vadd.f32 %v3086, %v3087
    %v3089 = vrot.slane %v3088, 1
    %v3090 = vadd.f32 %v3088, %v3089
    %v3091 = vrot.slane %v2909, 4
    %v3092 = vadd.f32 %v2909, %v3091
    %v3093 = vrot.slane %v3092, 2
    %v3094 = vadd.f32 %v3092, %v3093
    %v3095 = vrot.slane %v3094, 1
    %v3096 = vadd.f32 %v3094, %v3095
    %v3097 = vrot.slane %v2911, 4
    %v3098 = vadd.f32 %v2911, %v3097
    %v3099 = vrot.slane %v3098, 2
    %v3100 = vadd.f32 %v3098, %v3099
    %v3101 = vrot.slane %v3100, 1
    %v3102 = vadd.f32 %v3100, %v3101
    %v3103 = vrot.slane %v2991, 4
    %v3104 = vadd.f32 %v2991, %v3103
    %v3105 = vrot.slane %v3104, 2
    %v3106 = vadd.f32 %v3104, %v3105
    %v3107 = vrot.slane %v3106, 1
    %v3108 = vadd.f32 %v3106, %v3107
    %v3109 = vrot.slane %v2993, 4
    %v3110 = vadd.f32 %v2993, %v3109
    %v3111 = vrot.slane %v3110, 2
    %v3112 = vadd.f32 %v3110, %v3111
    %v3113 = vrot.slane %v3112, 1
    %v3114 = vadd.f32 %v3112, %v3113
    %v3115 = vrot.slane %v3073, 4
    %v3116 = vadd.f32 %v3073, %v3115
    %v3117 = vrot.slane %v3116, 2
    %v3118 = vadd.f32 %v3116, %v3117
    %v3119 = vrot.slane %v3118, 1
    %v3120 = vadd.f32 %v3118, %v3119
    %v3121 = vrot.slane %v3075, 4
    %v3122 = vadd.f32 %v3075, %v3121
    %v3123 = vrot.slane %v3122, 2
    %v3124 = vadd.f32 %v3122, %v3123
    %v3125 = vrot.slane %v3124, 1
    %v3126 = vadd.f32 %v3124, %v3125
    %v3127 = vmul.f32 %v3084, %v442
    %v3128 = vmul.f32 %v3090, %v442
    %v3129 = vmul.f32 %v3096, %v442
    %v3130 = vmul.f32 %v3102, %v442
    %v3131 = vmul.f32 %v3108, %v442
    %v3132 = vmul.f32 %v3114, %v442
    %v3133 = vmul.f32 %v3120, %v442
    %v3134 = vmul.f32 %v3126, %v442
    %v3135 = vmul.f32 %v2827, %v2827
    %v3136 = vmul.f32 %v2829, %v2829
    %v3137 = vmul.f32 %v2909, %v2909
    %v3138 = vmul.f32 %v2911, %v2911
    %v3139 = vmul.f32 %v2991, %v2991
    %v3140 = vmul.f32 %v2993, %v2993
    %v3141 = vmul.f32 %v3073, %v3073
    %v3142 = vmul.f32 %v3075, %v3075
    %v3143 = vrot.slane %v3135, 4
    %v3144 = vadd.f32 %v3135, %v3143
    %v3145 = vrot.slane %v3144, 2
    %v3146 = vadd.f32 %v3144, %v3145
    %v3147 = vrot.slane %v3146, 1
    %v3148 = vadd.f32 %v3146, %v3147
    %v3149 = vrot.slane %v3136, 4
    %v3150 = vadd.f32 %v3136, %v3149
    %v3151 = vrot.slane %v3150, 2
    %v3152 = vadd.f32 %v3150, %v3151
    %v3153 = vrot.slane %v3152, 1
    %v3154 = vadd.f32 %v3152, %v3153
    %v3155 = vrot.slane %v3137, 4
    %v3156 = vadd.f32 %v3137, %v3155
    %v3157 = vrot.slane %v3156, 2
    %v3158 = vadd.f32 %v3156, %v3157
    %v3159 = vrot.slane %v3158, 1
    %v3160 = vadd.f32 %v3158, %v3159
    %v3161 = vrot.slane %v3138, 4
    %v3162 = vadd.f32 %v3138, %v3161
    %v3163 = vrot.slane %v3162, 2
    %v3164 = vadd.f32 %v3162, %v3163
    %v3165 = vrot.slane %v3164, 1
    %v3166 = vadd.f32 %v3164, %v3165
    %v3167 = vrot.slane %v3139, 4
    %v3168 = vadd.f32 %v3139, %v3167
    %v3169 = vrot.slane %v3168, 2
    %v3170 = vadd.f32 %v3168, %v3169
    %v3171 = vrot.slane %v3170, 1
    %v3172 = vadd.f32 %v3170, %v3171
    %v3173 = vrot.slane %v3140, 4
    %v3174 = vadd.f32 %v3140, %v3173
    %v3175 = vrot.slane %v3174, 2
    %v3176 = vadd.f32 %v3174, %v3175
    %v3177 = vrot.slane %v3176, 1
    %v3178 = vadd.f32 %v3176, %v3177
    %v3179 = vrot.slane %v3141, 4
    %v3180 = vadd.f32 %v3141, %v3179
    %v3181 = vrot.slane %v3180, 2
    %v3182 = vadd.f32 %v3180, %v3181
    %v3183 = vrot.slane %v3182, 1
    %v3184 = vadd.f32 %v3182, %v3183
    %v3185 = vrot.slane %v3142, 4
    %v3186 = vadd.f32 %v3142, %v3185
    %v3187 = vrot.slane %v3186, 2
    %v3188 = vadd.f32 %v3186, %v3187
    %v3189 = vrot.slane %v3188, 1
    %v3190 = vadd.f32 %v3188, %v3189
    %v3191 = vmul.f32 %v3148, %v442
    %v3192 = vmul.f32 %v3154, %v442
    %v3193 = vmul.f32 %v3160, %v442
    %v3194 = vmul.f32 %v3166, %v442
    %v3195 = vmul.f32 %v3172, %v442
    %v3196 = vmul.f32 %v3178, %v442
    %v3197 = vmul.f32 %v3184, %v442
    %v3198 = vmul.f32 %v3190, %v442
    %v3199 = vmul.f32 %v3127, %v3127
    %v3200 = vmul.f32 %v3128, %v3128
    %v3201 = vmul.f32 %v3129, %v3129
    %v3202 = vmul.f32 %v3130, %v3130
    %v3203 = vmul.f32 %v3131, %v3131
    %v3204 = vmul.f32 %v3132, %v3132
    %v3205 = vmul.f32 %v3133, %v3133
    %v3206 = vmul.f32 %v3134, %v3134
    %v3207 = vsub.f32 %v3191, %v3199
    %v3208 = vsub.f32 %v3192, %v3200
    %v3209 = vsub.f32 %v3193, %v3201
    %v3210 = vsub.f32 %v3194, %v3202
    %v3211 = vsub.f32 %v3195, %v3203
    %v3212 = vsub.f32 %v3196, %v3204
    %v3213 = vsub.f32 %v3197, %v3205
    %v3214 = vsub.f32 %v3198, %v3206
    %v3215 = vld [vmem:[#allocation19] ss:$2 sm:$0xff]
    %v3216 = vadd.f32 %v3207, 1e-05
    %v3217 = vadd.f32 %v3208, 1e-05
    %v3218 = vadd.f32 %v3209, 1e-05
    %v3219 = vadd.f32 %v3210, 1e-05
    %v3220 = vadd.f32 %v3211, 1e-05
    %v3221 = vadd.f32 %v3212, 1e-05
    %v3222 = vadd.f32 %v3213, 1e-05
    %v3223 = vadd.f32 %v3214, 1e-05
    %v3224 = vrsqrt.pop %v3216
    %v3225 = vrsqrt.pop %v3217
    %v3226 = vrsqrt.pop %v3218
    %v3227 = vrsqrt.pop %v3219
    %v3228 = vrsqrt.pop %v3220
    %v3229 = vrsqrt.pop %v3221
    %v3230 = vrsqrt.pop %v3222
    %v3231 = vrsqrt.pop %v3223
    %v3240 = vcombine.low %v3224, %v3225
    %v3241 = vcombine.low %v3226, %v3227
    %v3242 = vcombine.low %v3228, %v3229
    %v3243 = vcombine.low %v3230, %v3231
    %v3245 = vunpack.c.l.s4 1966171168
    %v3246 = vunpack.c.0.s8 %v3245
    %v3247 = vlaneseq
    %v3248 = vshrl.u32 %v3247, 7
    %v3249 = vsub.s32 %v3246, %v3248
    %v3250 = vrot.slane %v3240, %v3249
    %v3252 = vunpack.c.l.s4 1966171168
    %v3253 = vunpack.c.0.s8 %v3252
    %v3254 = vlaneseq
    %v3255 = vshrl.u32 %v3254, 7
    %v3256 = vsub.s32 %v3253, %v3255
    %v3257 = vrot.slane %v3241, %v3256
    %v3259 = vunpack.c.l.s4 1966171168
    %v3260 = vunpack.c.0.s8 %v3259
    %v3261 = vlaneseq
    %v3262 = vshrl.u32 %v3261, 7
    %v3263 = vsub.s32 %v3260, %v3262
    %v3264 = vrot.slane %v3242, %v3263
    %v3266 = vunpack.c.l.s4 1966171168
    %v3267 = vunpack.c.0.s8 %v3266
    %v3268 = vlaneseq
    %v3269 = vshrl.u32 %v3268, 7
    %v3270 = vsub.s32 %v3267, %v3269
    %v3271 = vrot.slane %v3243, %v3270
    %v3272 = vcombine.low %v3250, %v3257
    %v3273 = vcombine.low %v3264, %v3271
    %v3275 = vunpack.c.l.s4 1966171168
    %v3276 = vunpack.c.0.s8 %v3275
    %v3277 = vlaneseq
    %v3278 = vshrl.u32 %v3277, 7
    %v3279 = vsub.s32 %v3276, %v3278
    %v3280 = vrot.slane %v3272, %v3279
    %v3282 = vunpack.c.l.s4 1966171168
    %v3283 = vunpack.c.0.s8 %v3282
    %v3284 = vlaneseq
    %v3285 = vshrl.u32 %v3284, 7
    %v3286 = vsub.s32 %v3283, %v3285
    %v3287 = vrot.slane %v3273, %v3286
    %v3288 = vcombine.low %v3280, %v3287
    %v3290 = vmul.f32 %v3215, %v3288
    %s3291 = scalar_lea.vmem [#allocation19], 1
    %v3292 = vld [vmem:[%s3291] ss:$2 sm:$0xff]
    %v3294 = vlaneseq
    %v3295 = vshrl.u32 %v3294, 7
    %v3296 = vsub.s32 0, %v3295
    %v3297 = vrot.slane %v3290, %v3296
    %v3298 = vlaneseq
    %v3299 = vshrl.u32 %v3298, 7
    %v3300 = vsub.s32 1, %v3299
    %v3301 = vrot.slane %v3290, %v3300
    %v3302 = vlaneseq
    %v3303 = vshrl.u32 %v3302, 7
    %v3304 = vsub.s32 2, %v3303
    %v3305 = vrot.slane %v3290, %v3304
    %v3306 = vlaneseq
    %v3307 = vshrl.u32 %v3306, 7
    %v3308 = vsub.s32 3, %v3307
    %v3309 = vrot.slane %v3290, %v3308
    %v3310 = vlaneseq
    %v3311 = vshrl.u32 %v3310, 7
    %v3312 = vsub.s32 4, %v3311
    %v3313 = vrot.slane %v3290, %v3312
    %v3314 = vlaneseq
    %v3315 = vshrl.u32 %v3314, 7
    %v3316 = vsub.s32 5, %v3315
    %v3317 = vrot.slane %v3290, %v3316
    %v3318 = vlaneseq
    %v3319 = vshrl.u32 %v3318, 7
    %v3320 = vsub.s32 6, %v3319
    %v3321 = vrot.slane %v3290, %v3320
    %v3322 = vlaneseq
    %v3323 = vshrl.u32 %v3322, 7
    %v3324 = vsub.s32 7, %v3323
    %v3325 = vrot.slane %v3290, %v3324
    %v3334 = vmul.f32 %v3127, %v3297
    %v3335 = vmul.f32 %v3128, %v3301
    %v3336 = vmul.f32 %v3129, %v3305
    %v3337 = vmul.f32 %v3130, %v3309
    %v3338 = vmul.f32 %v3131, %v3313
    %v3339 = vmul.f32 %v3132, %v3317
    %v3340 = vmul.f32 %v3133, %v3321
    %v3341 = vmul.f32 %v3134, %v3325
    %v3350 = vcombine.low %v3334, %v3335
    %v3351 = vcombine.low %v3336, %v3337
    %v3352 = vcombine.low %v3338, %v3339
    %v3353 = vcombine.low %v3340, %v3341
    %v3355 = vunpack.c.l.s4 1966171168
    %v3356 = vunpack.c.0.s8 %v3355
    %v3357 = vlaneseq
    %v3358 = vshrl.u32 %v3357, 7
    %v3359 = vsub.s32 %v3356, %v3358
    %v3360 = vrot.slane %v3350, %v3359
    %v3362 = vunpack.c.l.s4 1966171168
    %v3363 = vunpack.c.0.s8 %v3362
    %v3364 = vlaneseq
    %v3365 = vshrl.u32 %v3364, 7
    %v3366 = vsub.s32 %v3363, %v3365
    %v3367 = vrot.slane %v3351, %v3366
    %v3369 = vunpack.c.l.s4 1966171168
    %v3370 = vunpack.c.0.s8 %v3369
    %v3371 = vlaneseq
    %v3372 = vshrl.u32 %v3371, 7
    %v3373 = vsub.s32 %v3370, %v3372
    %v3374 = vrot.slane %v3352, %v3373
    %v3376 = vunpack.c.l.s4 1966171168
    %v3377 = vunpack.c.0.s8 %v3376
    %v3378 = vlaneseq
    %v3379 = vshrl.u32 %v3378, 7
    %v3380 = vsub.s32 %v3377, %v3379
    %v3381 = vrot.slane %v3353, %v3380
    %v3382 = vcombine.low %v3360, %v3367
    %v3383 = vcombine.low %v3374, %v3381
    %v3385 = vunpack.c.l.s4 1966171168
    %v3386 = vunpack.c.0.s8 %v3385
    %v3387 = vlaneseq
    %v3388 = vshrl.u32 %v3387, 7
    %v3389 = vsub.s32 %v3386, %v3388
    %v3390 = vrot.slane %v3382, %v3389
    %v3392 = vunpack.c.l.s4 1966171168
    %v3393 = vunpack.c.0.s8 %v3392
    %v3394 = vlaneseq
    %v3395 = vshrl.u32 %v3394, 7
    %v3396 = vsub.s32 %v3393, %v3395
    %v3397 = vrot.slane %v3383, %v3396
    %v3398 = vcombine.low %v3390, %v3397
    %v3400 = vsub.f32 %v3292, %v3398
    %v3401 = vmul.f32 %v2827, %v3297
    %v3402 = vmul.f32 %v2829, %v3301
    %v3403 = vmul.f32 %v2909, %v3305
    %v3404 = vmul.f32 %v2911, %v3309
    %v3405 = vmul.f32 %v2991, %v3313
    %v3406 = vmul.f32 %v2993, %v3317
    %v3407 = vmul.f32 %v3073, %v3321
    %v3408 = vmul.f32 %v3075, %v3325
    %v3410 = vlaneseq
    %v3411 = vshrl.u32 %v3410, 7
    %v3412 = vsub.s32 0, %v3411
    %v3413 = vrot.slane %v3400, %v3412
    %v3414 = vlaneseq
    %v3415 = vshrl.u32 %v3414, 7
    %v3416 = vsub.s32 1, %v3415
    %v3417 = vrot.slane %v3400, %v3416
    %v3418 = vlaneseq
    %v3419 = vshrl.u32 %v3418, 7
    %v3420 = vsub.s32 2, %v3419
    %v3421 = vrot.slane %v3400, %v3420
    %v3422 = vlaneseq
    %v3423 = vshrl.u32 %v3422, 7
    %v3424 = vsub.s32 3, %v3423
    %v3425 = vrot.slane %v3400, %v3424
    %v3426 = vlaneseq
    %v3427 = vshrl.u32 %v3426, 7
    %v3428 = vsub.s32 4, %v3427
    %v3429 = vrot.slane %v3400, %v3428
    %v3430 = vlaneseq
    %v3431 = vshrl.u32 %v3430, 7
    %v3432 = vsub.s32 5, %v3431
    %v3433 = vrot.slane %v3400, %v3432
    %v3434 = vlaneseq
    %v3435 = vshrl.u32 %v3434, 7
    %v3436 = vsub.s32 6, %v3435
    %v3437 = vrot.slane %v3400, %v3436
    %v3438 = vlaneseq
    %v3439 = vshrl.u32 %v3438, 7
    %v3440 = vsub.s32 7, %v3439
    %v3441 = vrot.slane %v3400, %v3440
    %v3450 = vadd.f32 %v3401, %v3413
    %v3451 = vadd.f32 %v3402, %v3417
    %v3452 = vadd.f32 %v3403, %v3421
    %v3453 = vadd.f32 %v3404, %v3425
    %v3454 = vadd.f32 %v3405, %v3429
    %v3455 = vadd.f32 %v3406, %v3433
    %v3456 = vadd.f32 %v3407, %v3437
    %v3457 = vadd.f32 %v3408, %v3441
    %v3458 = vmul.f32 %v3450, 0.2
    %v3459 = vmul.f32 %v3451, 0.2
    %v3460 = vmul.f32 %v3452, 0.2
    %v3461 = vmul.f32 %v3453, 0.2
    %v3462 = vmul.f32 %v3454, 0.2
    %v3463 = vmul.f32 %v3455, 0.2
    %v3464 = vmul.f32 %v3456, 0.2
    %v3465 = vmul.f32 %v3457, 0.2
    %v3466 = vmax.f32 %v3450, %v3458
    %v3467 = vmax.f32 %v3451, %v3459
    %v3468 = vmax.f32 %v3452, %v3460
    %v3469 = vmax.f32 %v3453, %v3461
    %v3470 = vmax.f32 %v3454, %v3462
    %v3471 = vmax.f32 %v3455, %v3463
    %v3472 = vmax.f32 %v3456, %v3464
    %v3473 = vmax.f32 %v3457, %v3465
    %v3474 = vpack.c.bf16 %v3466, %v3466
    %v3475 = vpack.c.bf16 %v3467, %v3467
    %v3476 = vpack.c.bf16 %v3468, %v3468
    %v3477 = vpack.c.bf16 %v3469, %v3469
    %v3478 = vpack.c.bf16 %v3470, %v3470
    %v3479 = vpack.c.bf16 %v3471, %v3471
    %v3480 = vpack.c.bf16 %v3472, %v3472
    %v3481 = vpack.c.bf16 %v3473, %v3473
    %v3482 = vld [vmem:[#allocation11] sm:$0xff]
    %v3483 = vld [vmem:[#allocation11 + $0x8] sm:$0xff]
    %v3484 = vld [vmem:[#allocation11 + $0x10] sm:$0xff]
    %v3485 = vld [vmem:[#allocation11 + $0x18] sm:$0xf]
    %v3486 = vld [vmem:[#allocation11 + $0x1c] sm:$0xff]
    %v3487 = vld [vmem:[#allocation11 + $0x24] sm:$0xff]
    %v3488 = vld [vmem:[#allocation11 + $0x2c] sm:$0xff]
    %v3489 = vld [vmem:[#allocation11 + $0x34] sm:$0xf]
    %v3490 = vld [vmem:[#allocation11 + $0x38] sm:$0xff]
    %v3491 = vld [vmem:[#allocation11 + $0x40] sm:$0xff]
    %v3492 = vld [vmem:[#allocation11 + $0x48] sm:$0xff]
    %v3493 = vld [vmem:[#allocation11 + $0x50] sm:$0xf]
    %v3494 = vld [vmem:[#allocation11 + $0x54] sm:$0xff]
    %v3495 = vld [vmem:[#allocation11 + $0x5c] sm:$0xff]
    %v3496 = vld [vmem:[#allocation11 + $0x64] sm:$0xff]
    %v3497 = vld [vmem:[#allocation11 + $0x6c] sm:$0xf]
    %v3498 = vld [vmem:[#allocation11 + $0x70] sm:$0xff]
    %v3499 = vld [vmem:[#allocation11 + $0x78] sm:$0xff]
    %v3500 = vld [vmem:[#allocation11 + $0x80] sm:$0xff]
    %v3501 = vld [vmem:[#allocation11 + $0x88] sm:$0xf]
    %v3502 = vld [vmem:[#allocation11 + $0x8c] sm:$0xff]
    %v3503 = vld [vmem:[#allocation11 + $0x94] sm:$0xff]
    %v3504 = vld [vmem:[#allocation11 + $0x9c] sm:$0xff]
    %v3505 = vld [vmem:[#allocation11 + $0xa4] sm:$0xf]
    %v3506 = vld [vmem:[#allocation11 + $0xa8] sm:$0xff]
    %v3507 = vld [vmem:[#allocation11 + $0xb0] sm:$0xff]
    %v3508 = vld [vmem:[#allocation11 + $0xb8] sm:$0xff]
    %v3509 = vld [vmem:[#allocation11 + $0xc0] sm:$0xf]
    %v3510 = vld [vmem:[#allocation11 + $0xc4] sm:$0xff]
    %v3511 = vld [vmem:[#allocation11 + $0xcc] sm:$0xff]
    %v3512 = vld [vmem:[#allocation11 + $0xd4] sm:$0xff]
    %v3513 = vld [vmem:[#allocation11 + $0xdc] sm:$0xf]
    %v3514 = vld [vmem:[#allocation11 + $0xe0] sm:$0xff]
    %v3515 = vld [vmem:[#allocation11 + $0xe8] sm:$0xff]
    %v3516 = vld [vmem:[#allocation11 + $0xf0] sm:$0xff]
    %v3517 = vld [vmem:[#allocation11 + $0xf8] sm:$0xf]
    %v3518 = vld [vmem:[#allocation11 + $0xfc] sm:$0xff]
    %v3519 = vld [vmem:[#allocation11 + $0x104] sm:$0xff]
    %v3520 = vld [vmem:[#allocation11 + $0x10c] sm:$0xff]
    %v3521 = vld [vmem:[#allocation11 + $0x114] sm:$0xf]
    %v3522 = vld [vmem:[#allocation11 + $0x118] sm:$0xff]
    %v3523 = vld [vmem:[#allocation11 + $0x120] sm:$0xff]
    %v3524 = vld [vmem:[#allocation11 + $0x128] sm:$0xff]
    %v3525 = vld [vmem:[#allocation11 + $0x130] sm:$0xf]
    %v3526 = vld [vmem:[#allocation11 + $0x134] sm:$0xff]
    %v3527 = vld [vmem:[#allocation11 + $0x13c] sm:$0xff]
    %v3528 = vld [vmem:[#allocation11 + $0x144] sm:$0xff]
    %v3529 = vld [vmem:[#allocation11 + $0x14c] sm:$0xf]
    %v3530 = vld [vmem:[#allocation11 + $0x150] sm:$0xff]
    %v3531 = vld [vmem:[#allocation11 + $0x158] sm:$0xff]
    %v3532 = vld [vmem:[#allocation11 + $0x160] sm:$0xff]
    %v3533 = vld [vmem:[#allocation11 + $0x168] sm:$0xf]
    %v3534 = vld [vmem:[#allocation11 + $0x16c] sm:$0xff]
    %v3535 = vld [vmem:[#allocation11 + $0x174] sm:$0xff]
    %v3536 = vld [vmem:[#allocation11 + $0x17c] sm:$0xff]
    %v3537 = vld [vmem:[#allocation11 + $0x184] sm:$0xf]
    %v3538 = vld [vmem:[#allocation11 + $0x188] sm:$0xff]
    %v3539 = vld [vmem:[#allocation11 + $0x190] sm:$0xff]
    %v3540 = vld [vmem:[#allocation11 + $0x198] sm:$0xff]
    %v3541 = vld [vmem:[#allocation11 + $0x1a0] sm:$0xf]
    %v3542 = vld [vmem:[#allocation11 + $0x1a4] sm:$0xff]
    %v3543 = vld [vmem:[#allocation11 + $0x1ac] sm:$0xff]
    %v3544 = vld [vmem:[#allocation11 + $0x1b4] sm:$0xff]
    %v3545 = vld [vmem:[#allocation11 + $0x1bc] sm:$0xf]
    %v3546 = vld [vmem:[#allocation11 + $0x1c0] sm:$0xff]
    %v3547 = vld [vmem:[#allocation11 + $0x1c8] sm:$0xff]
    %v3548 = vld [vmem:[#allocation11 + $0x1d0] sm:$0xff]
    %v3549 = vld [vmem:[#allocation11 + $0x1d8] sm:$0xf]
    %v3550 = vld [vmem:[#allocation11 + $0x1dc] sm:$0xff]
    %v3551 = vld [vmem:[#allocation11 + $0x1e4] sm:$0xff]
    %v3552 = vld [vmem:[#allocation11 + $0x1ec] sm:$0xff]
    %v3553 = vld [vmem:[#allocation11 + $0x1f4] sm:$0xf]
    %v3554 = vld [vmem:[#allocation11 + $0x1f8] sm:$0xff]
    %v3555 = vld [vmem:[#allocation11 + $0x200] sm:$0xff]
    %v3556 = vld [vmem:[#allocation11 + $0x208] sm:$0xff]
    %v3557 = vld [vmem:[#allocation11 + $0x210] sm:$0xf]
    %v3558 = vld [vmem:[#allocation11 + $0x214] sm:$0xff]
    %v3559 = vld [vmem:[#allocation11 + $0x21c] sm:$0xff]
    %v3560 = vld [vmem:[#allocation11 + $0x224] sm:$0xff]
    %v3561 = vld [vmem:[#allocation11 + $0x22c] sm:$0xf]
    %v3562 = vld [vmem:[#allocation11 + $0x230] sm:$0xff]
    %v3563 = vld [vmem:[#allocation11 + $0x238] sm:$0xff]
    %v3564 = vld [vmem:[#allocation11 + $0x240] sm:$0xff]
    %v3565 = vld [vmem:[#allocation11 + $0x248] sm:$0xf]
    %v3566 = vld [vmem:[#allocation11 + $0x24c] sm:$0xff]
    %v3567 = vld [vmem:[#allocation11 + $0x254] sm:$0xff]
    %v3568 = vld [vmem:[#allocation11 + $0x25c] sm:$0xff]
    %v3569 = vld [vmem:[#allocation11 + $0x264] sm:$0xf]
    %v3570 = vld [vmem:[#allocation11 + $0x268] sm:$0xff]
    %v3571 = vld [vmem:[#allocation11 + $0x270] sm:$0xff]
    %v3572 = vld [vmem:[#allocation11 + $0x278] sm:$0xff]
    %v3573 = vld [vmem:[#allocation11 + $0x280] sm:$0xf]
    %v3574 = vld [vmem:[#allocation11 + $0x284] sm:$0xff]
    %v3575 = vld [vmem:[#allocation11 + $0x28c] sm:$0xff]
    %v3576 = vld [vmem:[#allocation11 + $0x294] sm:$0xff]
    %v3577 = vld [vmem:[#allocation11 + $0x29c] sm:$0xf]
    %v3578 = vld [vmem:[#allocation11 + $0x2a0] sm:$0xff]
    %v3579 = vld [vmem:[#allocation11 + $0x2a8] sm:$0xff]
    %v3580 = vld [vmem:[#allocation11 + $0x2b0] sm:$0xff]
    %v3581 = vld [vmem:[#allocation11 + $0x2b8] sm:$0xf]
    %v3582 = vld [vmem:[#allocation11 + $0x2bc] sm:$0xff]
    %v3583 = vld [vmem:[#allocation11 + $0x2c4] sm:$0xff]
    %v3584 = vld [vmem:[#allocation11 + $0x2cc] sm:$0xff]
    %v3585 = vld [vmem:[#allocation11 + $0x2d4] sm:$0xf]
    %v3586 = vld [vmem:[#allocation11 + $0x2d8] sm:$0xff]
    %v3587 = vld [vmem:[#allocation11 + $0x2e0] sm:$0xff]
    %v3588 = vld [vmem:[#allocation11 + $0x2e8] sm:$0xff]
    %v3589 = vld [vmem:[#allocation11 + $0x2f0] sm:$0xf]
    %v3590 = vld [vmem:[#allocation11 + $0x2f4] sm:$0xff]
    %v3591 = vld [vmem:[#allocation11 + $0x2fc] sm:$0xff]
    %v3592 = vld [vmem:[#allocation11 + $0x304] sm:$0xff]
    %v3593 = vld [vmem:[#allocation11 + $0x30c] sm:$0xf]
    %v3594 = vld [vmem:[#allocation11 + $0x310] sm:$0xff]
    %v3595 = vld [vmem:[#allocation11 + $0x318] sm:$0xff]
    %v3596 = vld [vmem:[#allocation11 + $0x320] sm:$0xff]
    %v3597 = vld [vmem:[#allocation11 + $0x328] sm:$0xf]
    %v3598 = vld [vmem:[#allocation11 + $0x32c] sm:$0xff]
    %v3599 = vld [vmem:[#allocation11 + $0x334] sm:$0xff]
    %v3600 = vld [vmem:[#allocation11 + $0x33c] sm:$0xff]
    %v3601 = vld [vmem:[#allocation11 + $0x344] sm:$0xf]
    %v3602 = vld [vmem:[#allocation11 + $0x348] sm:$0xff]
    %v3603 = vld [vmem:[#allocation11 + $0x350] sm:$0xff]
    %v3604 = vld [vmem:[#allocation11 + $0x358] sm:$0xff]
    %v3605 = vld [vmem:[#allocation11 + $0x360] sm:$0xf]
    %v3606 = vld [vmem:[#allocation11 + $0x364] sm:$0xff]
    %v3607 = vld [vmem:[#allocation11 + $0x36c] sm:$0xff]
    %v3608 = vld [vmem:[#allocation11 + $0x374] sm:$0xff]
    %v3609 = vld [vmem:[#allocation11 + $0x37c] sm:$0xf]
    %v3610 = vld [vmem:[#allocation11 + $0x380] sm:$0xff]
    %v3611 = vld [vmem:[#allocation11 + $0x388] sm:$0xff]
    %v3612 = vld [vmem:[#allocation11 + $0x390] sm:$0xff]
    %v3613 = vld [vmem:[#allocation11 + $0x398] sm:$0xf]
    %v3614 = vld [vmem:[#allocation11 + $0x39c] sm:$0xff]
    %v3615 = vld [vmem:[#allocation11 + $0x3a4] sm:$0xff]
    %v3616 = vld [vmem:[#allocation11 + $0x3ac] sm:$0xff]
    %v3617 = vld [vmem:[#allocation11 + $0x3b4] sm:$0xf]
    %v3618 = vld [vmem:[#allocation11 + $0x3b8] sm:$0xff]
    %v3619 = vld [vmem:[#allocation11 + $0x3c0] sm:$0xff]
    %v3620 = vld [vmem:[#allocation11 + $0x3c8] sm:$0xff]
    %v3621 = vld [vmem:[#allocation11 + $0x3d0] sm:$0xf]
    %v3622 = vld [vmem:[#allocation11 + $0x3d4] sm:$0xff]
    %v3623 = vld [vmem:[#allocation11 + $0x3dc] sm:$0xff]
    %v3624 = vld [vmem:[#allocation11 + $0x3e4] sm:$0xff]
    %v3625 = vld [vmem:[#allocation11 + $0x3ec] sm:$0xf]
    %v3626 = vld [vmem:[#allocation11 + $0x3f0] sm:$0xff]
    %v3627 = vld [vmem:[#allocation11 + $0x3f8] sm:$0xff]
    %v3628 = vld [vmem:[#allocation11 + $0x400] sm:$0xff]
    %v3629 = vld [vmem:[#allocation11 + $0x408] sm:$0xf]
    %v3630 = vld [vmem:[#allocation11 + $0x40c] sm:$0xff]
    %v3631 = vld [vmem:[#allocation11 + $0x414] sm:$0xff]
    %v3632 = vld [vmem:[#allocation11 + $0x41c] sm:$0xff]
    %v3633 = vld [vmem:[#allocation11 + $0x424] sm:$0xf]
    %v3634 = vld [vmem:[#allocation11 + $0x428] sm:$0xff]
    %v3635 = vld [vmem:[#allocation11 + $0x430] sm:$0xff]
    %v3636 = vld [vmem:[#allocation11 + $0x438] sm:$0xff]
    %v3637 = vld [vmem:[#allocation11 + $0x440] sm:$0xf]
    %v3638 = vld [vmem:[#allocation11 + $0x444] sm:$0xff]
    %v3639 = vld [vmem:[#allocation11 + $0x44c] sm:$0xff]
    %v3640 = vld [vmem:[#allocation11 + $0x454] sm:$0xff]
    %v3641 = vld [vmem:[#allocation11 + $0x45c] sm:$0xf]
    %v3642 = vld [vmem:[#allocation11 + $0x460] sm:$0xff]
    %v3643 = vld [vmem:[#allocation11 + $0x468] sm:$0xff]
    %v3644 = vld [vmem:[#allocation11 + $0x470] sm:$0xff]
    %v3645 = vld [vmem:[#allocation11 + $0x478] sm:$0xf]
    %v3646 = vld [vmem:[#allocation11 + $0x47c] sm:$0xff]
    %v3647 = vld [vmem:[#allocation11 + $0x484] sm:$0xff]
    %v3648 = vld [vmem:[#allocation11 + $0x48c] sm:$0xff]
    %v3649 = vld [vmem:[#allocation11 + $0x494] sm:$0xf]
    %v3650 = vld [vmem:[#allocation11 + $0x498] sm:$0xff]
    %v3651 = vld [vmem:[#allocation11 + $0x4a0] sm:$0xff]
    %v3652 = vld [vmem:[#allocation11 + $0x4a8] sm:$0xff]
    %v3653 = vld [vmem:[#allocation11 + $0x4b0] sm:$0xf]
    %v3654 = vld [vmem:[#allocation11 + $0x4b4] sm:$0xff]
    %v3655 = vld [vmem:[#allocation11 + $0x4bc] sm:$0xff]
    %v3656 = vld [vmem:[#allocation11 + $0x4c4] sm:$0xff]
    %v3657 = vld [vmem:[#allocation11 + $0x4cc] sm:$0xf]
    %v3658 = vld [vmem:[#allocation11 + $0x4d0] sm:$0xff]
    %v3659 = vld [vmem:[#allocation11 + $0x4d8] sm:$0xff]
    %v3660 = vld [vmem:[#allocation11 + $0x4e0] sm:$0xff]
    %v3661 = vld [vmem:[#allocation11 + $0x4e8] sm:$0xf]
    %v3662 = vld [vmem:[#allocation11 + $0x4ec] sm:$0xff]
    %v3663 = vld [vmem:[#allocation11 + $0x4f4] sm:$0xff]
    %v3664 = vld [vmem:[#allocation11 + $0x4fc] sm:$0xff]
    %v3665 = vld [vmem:[#allocation11 + $0x504] sm:$0xf]
    %v3666 = vld [vmem:[#allocation11 + $0x508] sm:$0xff]
    %v3667 = vld [vmem:[#allocation11 + $0x510] sm:$0xff]
    %v3668 = vld [vmem:[#allocation11 + $0x518] sm:$0xff]
    %v3669 = vld [vmem:[#allocation11 + $0x520] sm:$0xf]
    %v3670 = vld [vmem:[#allocation11 + $0x524] sm:$0xff]
    %v3671 = vld [vmem:[#allocation11 + $0x52c] sm:$0xff]
    %v3672 = vld [vmem:[#allocation11 + $0x534] sm:$0xff]
    %v3673 = vld [vmem:[#allocation11 + $0x53c] sm:$0xf]
    %v3674 = vld [vmem:[#allocation11 + $0x540] sm:$0xff]
    %v3675 = vld [vmem:[#allocation11 + $0x548] sm:$0xff]
    %v3676 = vld [vmem:[#allocation11 + $0x550] sm:$0xff]
    %v3677 = vld [vmem:[#allocation11 + $0x558] sm:$0xf]
    %v3678 = vld [vmem:[#allocation11 + $0x55c] sm:$0xff]
    %v3679 = vld [vmem:[#allocation11 + $0x564] sm:$0xff]
    %v3680 = vld [vmem:[#allocation11 + $0x56c] sm:$0xff]
    %v3681 = vld [vmem:[#allocation11 + $0x574] sm:$0xf]
    %v3682 = vld [vmem:[#allocation11 + $0x578] sm:$0xff]
    %v3683 = vld [vmem:[#allocation11 + $0x580] sm:$0xff]
    %v3684 = vld [vmem:[#allocation11 + $0x588] sm:$0xff]
    %v3685 = vld [vmem:[#allocation11 + $0x590] sm:$0xf]
    %v3686 = vld [vmem:[#allocation11 + $0x594] sm:$0xff]
    %v3687 = vld [vmem:[#allocation11 + $0x59c] sm:$0xff]
    %v3688 = vld [vmem:[#allocation11 + $0x5a4] sm:$0xff]
    %v3689 = vld [vmem:[#allocation11 + $0x5ac] sm:$0xf]
    %v3690 = vld [vmem:[#allocation11 + $0x5b0] sm:$0xff]
    %v3691 = vld [vmem:[#allocation11 + $0x5b8] sm:$0xff]
    %v3692 = vld [vmem:[#allocation11 + $0x5c0] sm:$0xff]
    %v3693 = vld [vmem:[#allocation11 + $0x5c8] sm:$0xf]
    %v3694 = vld [vmem:[#allocation11 + $0x5cc] sm:$0xff]
    %v3695 = vld [vmem:[#allocation11 + $0x5d4] sm:$0xff]
    %v3696 = vld [vmem:[#allocation11 + $0x5dc] sm:$0xff]
    %v3697 = vld [vmem:[#allocation11 + $0x5e4] sm:$0xf]
    %v3698 = vld [vmem:[#allocation11 + $0x5e8] sm:$0xff]
    %v3699 = vld [vmem:[#allocation11 + $0x5f0] sm:$0xff]
    %v3700 = vld [vmem:[#allocation11 + $0x5f8] sm:$0xff]
    %v3701 = vld [vmem:[#allocation11 + $0x600] sm:$0xf]
    %v3702 = vld [vmem:[#allocation11 + $0x604] sm:$0xff]
    %v3703 = vld [vmem:[#allocation11 + $0x60c] sm:$0xff]
    %v3704 = vld [vmem:[#allocation11 + $0x614] sm:$0xff]
    %v3705 = vld [vmem:[#allocation11 + $0x61c] sm:$0xf]
    %v3706 = vld [vmem:[#allocation11 + $0x620] sm:$0xff]
    %v3707 = vld [vmem:[#allocation11 + $0x628] sm:$0xff]
    %v3708 = vld [vmem:[#allocation11 + $0x630] sm:$0xff]
    %v3709 = vld [vmem:[#allocation11 + $0x638] sm:$0xf]
    %v3710 = vld [vmem:[#allocation11 + $0x63c] sm:$0xff]
    %v3711 = vld [vmem:[#allocation11 + $0x644] sm:$0xff]
    %v3712 = vld [vmem:[#allocation11 + $0x64c] sm:$0xff]
    %v3713 = vld [vmem:[#allocation11 + $0x654] sm:$0xf]
    %v3714 = vld [vmem:[#allocation11 + $0x658] sm:$0xff]
    %v3715 = vld [vmem:[#allocation11 + $0x660] sm:$0xff]
    %v3716 = vld [vmem:[#allocation11 + $0x668] sm:$0xff]
    %v3717 = vld [vmem:[#allocation11 + $0x670] sm:$0xf]
    %v3718 = vld [vmem:[#allocation11 + $0x674] sm:$0xff]
    %v3719 = vld [vmem:[#allocation11 + $0x67c] sm:$0xff]
    %v3720 = vld [vmem:[#allocation11 + $0x684] sm:$0xff]
    %v3721 = vld [vmem:[#allocation11 + $0x68c] sm:$0xf]
    %v3722 = vld [vmem:[#allocation11 + $0x690] sm:$0xff]
    %v3723 = vld [vmem:[#allocation11 + $0x698] sm:$0xff]
    %v3724 = vld [vmem:[#allocation11 + $0x6a0] sm:$0xff]
    %v3725 = vld [vmem:[#allocation11 + $0x6a8] sm:$0xf]
    %v3726 = vld [vmem:[#allocation11 + $0x6ac] sm:$0xff]
    %v3727 = vld [vmem:[#allocation11 + $0x6b4] sm:$0xff]
    %v3728 = vld [vmem:[#allocation11 + $0x6bc] sm:$0xff]
    %v3729 = vld [vmem:[#allocation11 + $0x6c4] sm:$0xf]
    %v3730 = vld [vmem:[#allocation11 + $0x6c8] sm:$0xff]
    %v3731 = vld [vmem:[#allocation11 + $0x6d0] sm:$0xff]
    %v3732 = vld [vmem:[#allocation11 + $0x6d8] sm:$0xff]
    %v3733 = vld [vmem:[#allocation11 + $0x6e0] sm:$0xf]
    %v3734 = vld [vmem:[#allocation11 + $0x6e4] sm:$0xff]
    %v3735 = vld [vmem:[#allocation11 + $0x6ec] sm:$0xff]
    %v3736 = vld [vmem:[#allocation11 + $0x6f4] sm:$0xff]
    %v3737 = vld [vmem:[#allocation11 + $0x6fc] sm:$0xf]
    %v3738 = vld [vmem:[#allocation11 + $0x700] sm:$0xff]
    %v3739 = vld [vmem:[#allocation11 + $0x708] sm:$0xff]
    %v3740 = vld [vmem:[#allocation11 + $0x710] sm:$0xff]
    %v3741 = vld [vmem:[#allocation11 + $0x718] sm:$0xf]
    %v3742 = vld [vmem:[#allocation11 + $0x71c] sm:$0xff]
    %v3743 = vld [vmem:[#allocation11 + $0x724] sm:$0xff]
    %v3744 = vld [vmem:[#allocation11 + $0x72c] sm:$0xff]
    %v3745 = vld [vmem:[#allocation11 + $0x734] sm:$0xf]
    %v3746 = vld [vmem:[#allocation11 + $0x738] sm:$0xff]
    %v3747 = vld [vmem:[#allocation11 + $0x740] sm:$0xff]
    %v3748 = vld [vmem:[#allocation11 + $0x748] sm:$0xff]
    %v3749 = vld [vmem:[#allocation11 + $0x750] sm:$0xf]
    %v3750 = vld [vmem:[#allocation11 + $0x754] sm:$0xff]
    %v3751 = vld [vmem:[#allocation11 + $0x75c] sm:$0xff]
    %v3752 = vld [vmem:[#allocation11 + $0x764] sm:$0xff]
    %v3753 = vld [vmem:[#allocation11 + $0x76c] sm:$0xf]
    %v3754 = vld [vmem:[#allocation11 + $0x770] sm:$0xff]
    %v3755 = vld [vmem:[#allocation11 + $0x778] sm:$0xff]
    %v3756 = vld [vmem:[#allocation11 + $0x780] sm:$0xff]
    %v3757 = vld [vmem:[#allocation11 + $0x788] sm:$0xf]
    %v3758 = vld [vmem:[#allocation11 + $0x78c] sm:$0xff]
    %v3759 = vld [vmem:[#allocation11 + $0x794] sm:$0xff]
    %v3760 = vld [vmem:[#allocation11 + $0x79c] sm:$0xff]
    %v3761 = vld [vmem:[#allocation11 + $0x7a4] sm:$0xf]
    %v3762 = vld [vmem:[#allocation11 + $0x7a8] sm:$0xff]
    %v3763 = vld [vmem:[#allocation11 + $0x7b0] sm:$0xff]
    %v3764 = vld [vmem:[#allocation11 + $0x7b8] sm:$0xff]
    %v3765 = vld [vmem:[#allocation11 + $0x7c0] sm:$0xf]
    %v3766 = vld [vmem:[#allocation11 + $0x7c4] sm:$0xff]
    %v3767 = vld [vmem:[#allocation11 + $0x7cc] sm:$0xff]
    %v3768 = vld [vmem:[#allocation11 + $0x7d4] sm:$0xff]
    %v3769 = vld [vmem:[#allocation11 + $0x7dc] sm:$0xf]
    %v3770 = vld [vmem:[#allocation11 + $0x7e0] sm:$0xff]
    %v3771 = vld [vmem:[#allocation11 + $0x7e8] sm:$0xff]
    %v3772 = vld [vmem:[#allocation11 + $0x7f0] sm:$0xff]
    %v3773 = vld [vmem:[#allocation11 + $0x7f8] sm:$0xf]
    %v3774 = vld [vmem:[#allocation11 + $0x7fc] sm:$0xff]
    %v3775 = vld [vmem:[#allocation11 + $0x804] sm:$0xff]
    %v3776 = vld [vmem:[#allocation11 + $0x80c] sm:$0xff]
    %v3777 = vld [vmem:[#allocation11 + $0x814] sm:$0xf]
    %v3778 = vld [vmem:[#allocation11 + $0x818] sm:$0xff]
    %v3779 = vld [vmem:[#allocation11 + $0x820] sm:$0xff]
    %v3780 = vld [vmem:[#allocation11 + $0x828] sm:$0xff]
    %v3781 = vld [vmem:[#allocation11 + $0x830] sm:$0xf]
    %v3782 = vld [vmem:[#allocation11 + $0x834] sm:$0xff]
    %v3783 = vld [vmem:[#allocation11 + $0x83c] sm:$0xff]
    %v3784 = vld [vmem:[#allocation11 + $0x844] sm:$0xff]
    %v3785 = vld [vmem:[#allocation11 + $0x84c] sm:$0xf]
    %v3786 = vld [vmem:[#allocation11 + $0x850] sm:$0xff]
    %v3787 = vld [vmem:[#allocation11 + $0x858] sm:$0xff]
    %v3788 = vld [vmem:[#allocation11 + $0x860] sm:$0xff]
    %v3789 = vld [vmem:[#allocation11 + $0x868] sm:$0xf]
    %v3790 = vld [vmem:[#allocation11 + $0x86c] sm:$0xff]
    %v3791 = vld [vmem:[#allocation11 + $0x874] sm:$0xff]
    %v3792 = vld [vmem:[#allocation11 + $0x87c] sm:$0xff]
    %v3793 = vld [vmem:[#allocation11 + $0x884] sm:$0xf]
    %v3794 = vld [vmem:[#allocation11 + $0x888] sm:$0xff]
    %v3795 = vld [vmem:[#allocation11 + $0x890] sm:$0xff]
    %v3796 = vld [vmem:[#allocation11 + $0x898] sm:$0xff]
    %v3797 = vld [vmem:[#allocation11 + $0x8a0] sm:$0xf]
    %v3798 = vld [vmem:[#allocation11 + $0x8a4] sm:$0xff]
    %v3799 = vld [vmem:[#allocation11 + $0x8ac] sm:$0xff]
    %v3800 = vld [vmem:[#allocation11 + $0x8b4] sm:$0xff]
    %v3801 = vld [vmem:[#allocation11 + $0x8bc] sm:$0xf]
    %v3802 = vld [vmem:[#allocation11 + $0x8c0] sm:$0xff]
    %v3803 = vld [vmem:[#allocation11 + $0x8c8] sm:$0xff]
    %v3804 = vld [vmem:[#allocation11 + $0x8d0] sm:$0xff]
    %v3805 = vld [vmem:[#allocation11 + $0x8d8] sm:$0xf]
    %v3806 = vld [vmem:[#allocation11 + $0x8dc] sm:$0xff]
    %v3807 = vld [vmem:[#allocation11 + $0x8e4] sm:$0xff]
    %v3808 = vld [vmem:[#allocation11 + $0x8ec] sm:$0xff]
    %v3809 = vld [vmem:[#allocation11 + $0x8f4] sm:$0xf]
    %v3810 = vld [vmem:[#allocation11 + $0x8f8] sm:$0xff]
    %v3811 = vld [vmem:[#allocation11 + $0x900] sm:$0xff]
    %v3812 = vld [vmem:[#allocation11 + $0x908] sm:$0xff]
    %v3813 = vld [vmem:[#allocation11 + $0x910] sm:$0xf]
    %v3814 = vld [vmem:[#allocation11 + $0x914] sm:$0xff]
    %v3815 = vld [vmem:[#allocation11 + $0x91c] sm:$0xff]
    %v3816 = vld [vmem:[#allocation11 + $0x924] sm:$0xff]
    %v3817 = vld [vmem:[#allocation11 + $0x92c] sm:$0xf]
    %v3818 = vld [vmem:[#allocation11 + $0x930] sm:$0xff]
    %v3819 = vld [vmem:[#allocation11 + $0x938] sm:$0xff]
    %v3820 = vld [vmem:[#allocation11 + $0x940] sm:$0xff]
    %v3821 = vld [vmem:[#allocation11 + $0x948] sm:$0xf]
    %v3822 = vld [vmem:[#allocation11 + $0x94c] sm:$0xff]
    %v3823 = vld [vmem:[#allocation11 + $0x954] sm:$0xff]
    %v3824 = vld [vmem:[#allocation11 + $0x95c] sm:$0xff]
    %v3825 = vld [vmem:[#allocation11 + $0x964] sm:$0xf]
    %v3826 = vld [vmem:[#allocation11 + $0x968] sm:$0xff]
    %v3827 = vld [vmem:[#allocation11 + $0x970] sm:$0xff]
    %v3828 = vld [vmem:[#allocation11 + $0x978] sm:$0xff]
    %v3829 = vld [vmem:[#allocation11 + $0x980] sm:$0xf]
    %v3830 = vld [vmem:[#allocation11 + $0x984] sm:$0xff]
    %v3831 = vld [vmem:[#allocation11 + $0x98c] sm:$0xff]
    %v3832 = vld [vmem:[#allocation11 + $0x994] sm:$0xff]
    %v3833 = vld [vmem:[#allocation11 + $0x99c] sm:$0xf]
    %v3834 = vld [vmem:[#allocation11 + $0x9a0] sm:$0xff]
    %v3835 = vld [vmem:[#allocation11 + $0x9a8] sm:$0xff]
    %v3836 = vld [vmem:[#allocation11 + $0x9b0] sm:$0xff]
    %v3837 = vld [vmem:[#allocation11 + $0x9b8] sm:$0xf]
    %v3838 = vld [vmem:[#allocation11 + $0x9bc] sm:$0xff]
    %v3839 = vld [vmem:[#allocation11 + $0x9c4] sm:$0xff]
    %v3840 = vld [vmem:[#allocation11 + $0x9cc] sm:$0xff]
    %v3841 = vld [vmem:[#allocation11 + $0x9d4] sm:$0xf]
    %v3842 = vld [vmem:[#allocation11 + $0x9d8] sm:$0xff]
    %v3843 = vld [vmem:[#allocation11 + $0x9e0] sm:$0xff]
    %v3844 = vld [vmem:[#allocation11 + $0x9e8] sm:$0xff]
    %v3845 = vld [vmem:[#allocation11 + $0x9f0] sm:$0xf]
    %v3846 = vld [vmem:[#allocation11 + $0x9f4] sm:$0xff]
    %v3847 = vld [vmem:[#allocation11 + $0x9fc] sm:$0xff]
    %v3848 = vld [vmem:[#allocation11 + $0xa04] sm:$0xff]
    %v3849 = vld [vmem:[#allocation11 + $0xa0c] sm:$0xf]
    %v3850 = vld [vmem:[#allocation11 + $0xa10] sm:$0xff]
    %v3851 = vld [vmem:[#allocation11 + $0xa18] sm:$0xff]
    %v3852 = vld [vmem:[#allocation11 + $0xa20] sm:$0xff]
    %v3853 = vld [vmem:[#allocation11 + $0xa28] sm:$0xf]
    %v3854 = vld [vmem:[#allocation11 + $0xa2c] sm:$0xff]
    %v3855 = vld [vmem:[#allocation11 + $0xa34] sm:$0xff]
    %v3856 = vld [vmem:[#allocation11 + $0xa3c] sm:$0xff]
    %v3857 = vld [vmem:[#allocation11 + $0xa44] sm:$0xf]
    %v3858 = vld [vmem:[#allocation11 + $0xa48] sm:$0xff]
    %v3859 = vld [vmem:[#allocation11 + $0xa50] sm:$0xff]
    %v3860 = vld [vmem:[#allocation11 + $0xa58] sm:$0xff]
    %v3861 = vld [vmem:[#allocation11 + $0xa60] sm:$0xf]
    %v3862 = vld [vmem:[#allocation11 + $0xa64] sm:$0xff]
    %v3863 = vld [vmem:[#allocation11 + $0xa6c] sm:$0xff]
    %v3864 = vld [vmem:[#allocation11 + $0xa74] sm:$0xff]
    %v3865 = vld [vmem:[#allocation11 + $0xa7c] sm:$0xf]
    %v3866 = vld [vmem:[#allocation11 + $0xa80] sm:$0xff]
    %v3867 = vld [vmem:[#allocation11 + $0xa88] sm:$0xff]
    %v3868 = vld [vmem:[#allocation11 + $0xa90] sm:$0xff]
    %v3869 = vld [vmem:[#allocation11 + $0xa98] sm:$0xf]
    %v3870 = vld [vmem:[#allocation11 + $0xa9c] sm:$0xff]
    %v3871 = vld [vmem:[#allocation11 + $0xaa4] sm:$0xff]
    %v3872 = vld [vmem:[#allocation11 + $0xaac] sm:$0xff]
    %v3873 = vld [vmem:[#allocation11 + $0xab4] sm:$0xf]
    %v3874 = vld [vmem:[#allocation11 + $0xab8] sm:$0xff]
    %v3875 = vld [vmem:[#allocation11 + $0xac0] sm:$0xff]
    %v3876 = vld [vmem:[#allocation11 + $0xac8] sm:$0xff]
    %v3877 = vld [vmem:[#allocation11 + $0xad0] sm:$0xf]
    %v3878 = vld [vmem:[#allocation11 + $0xad4] sm:$0xff]
    %v3879 = vld [vmem:[#allocation11 + $0xadc] sm:$0xff]
    %v3880 = vld [vmem:[#allocation11 + $0xae4] sm:$0xff]
    %v3881 = vld [vmem:[#allocation11 + $0xaec] sm:$0xf]
    %v3882 = vld [vmem:[#allocation11 + $0xaf0] sm:$0xff]
    %v3883 = vld [vmem:[#allocation11 + $0xaf8] sm:$0xff]
    %v3884 = vld [vmem:[#allocation11 + $0xb00] sm:$0xff]
    %v3885 = vld [vmem:[#allocation11 + $0xb08] sm:$0xf]
    %v3886 = vld [vmem:[#allocation11 + $0xb0c] sm:$0xff]
    %v3887 = vld [vmem:[#allocation11 + $0xb14] sm:$0xff]
    %v3888 = vld [vmem:[#allocation11 + $0xb1c] sm:$0xff]
    %v3889 = vld [vmem:[#allocation11 + $0xb24] sm:$0xf]
    %v3890 = vld [vmem:[#allocation11 + $0xb28] sm:$0xff]
    %v3891 = vld [vmem:[#allocation11 + $0xb30] sm:$0xff]
    %v3892 = vld [vmem:[#allocation11 + $0xb38] sm:$0xff]
    %v3893 = vld [vmem:[#allocation11 + $0xb40] sm:$0xf]
    %v3894 = vld [vmem:[#allocation11 + $0xb44] sm:$0xff]
    %v3895 = vld [vmem:[#allocation11 + $0xb4c] sm:$0xff]
    %v3896 = vld [vmem:[#allocation11 + $0xb54] sm:$0xff]
    %v3897 = vld [vmem:[#allocation11 + $0xb5c] sm:$0xf]
    %v3898 = vld [vmem:[#allocation11 + $0xb60] sm:$0xff]
    %v3899 = vld [vmem:[#allocation11 + $0xb68] sm:$0xff]
    %v3900 = vld [vmem:[#allocation11 + $0xb70] sm:$0xff]
    %v3901 = vld [vmem:[#allocation11 + $0xb78] sm:$0xf]
    %v3902 = vld [vmem:[#allocation11 + $0xb7c] sm:$0xff]
    %v3903 = vld [vmem:[#allocation11 + $0xb84] sm:$0xff]
    %v3904 = vld [vmem:[#allocation11 + $0xb8c] sm:$0xff]
    %v3905 = vld [vmem:[#allocation11 + $0xb94] sm:$0xf]
    %v3906 = vld [vmem:[#allocation11 + $0xb98] sm:$0xff]
    %v3907 = vld [vmem:[#allocation11 + $0xba0] sm:$0xff]
    %v3908 = vld [vmem:[#allocation11 + $0xba8] sm:$0xff]
    %v3909 = vld [vmem:[#allocation11 + $0xbb0] sm:$0xf]
    %v3910 = vld [vmem:[#allocation11 + $0xbb4] sm:$0xff]
    %v3911 = vld [vmem:[#allocation11 + $0xbbc] sm:$0xff]
    %v3912 = vld [vmem:[#allocation11 + $0xbc4] sm:$0xff]
    %v3913 = vld [vmem:[#allocation11 + $0xbcc] sm:$0xf]
    %v3914 = vld [vmem:[#allocation11 + $0xbd0] sm:$0xff]
    %v3915 = vld [vmem:[#allocation11 + $0xbd8] sm:$0xff]
    %v3916 = vld [vmem:[#allocation11 + $0xbe0] sm:$0xff]
    %v3917 = vld [vmem:[#allocation11 + $0xbe8] sm:$0xf]
    %v3918 = vld [vmem:[#allocation11 + $0xbec] sm:$0xff]
    %v3919 = vld [vmem:[#allocation11 + $0xbf4] sm:$0xff]
    %v3920 = vld [vmem:[#allocation11 + $0xbfc] sm:$0xff]
    %v3921 = vld [vmem:[#allocation11 + $0xc04] sm:$0xf]
    %v3922 = vld [vmem:[#allocation11 + $0xc08] sm:$0xff]
    %v3923 = vld [vmem:[#allocation11 + $0xc10] sm:$0xff]
    %v3924 = vld [vmem:[#allocation11 + $0xc18] sm:$0xff]
    %v3925 = vld [vmem:[#allocation11 + $0xc20] sm:$0xf]
    %v3926 = vld [vmem:[#allocation11 + $0xc24] sm:$0xff]
    %v3927 = vld [vmem:[#allocation11 + $0xc2c] sm:$0xff]
    %v3928 = vld [vmem:[#allocation11 + $0xc34] sm:$0xff]
    %v3929 = vld [vmem:[#allocation11 + $0xc3c] sm:$0xf]
    %v3930 = vld [vmem:[#allocation11 + $0xc40] sm:$0xff]
    %v3931 = vld [vmem:[#allocation11 + $0xc48] sm:$0xff]
    %v3932 = vld [vmem:[#allocation11 + $0xc50] sm:$0xff]
    %v3933 = vld [vmem:[#allocation11 + $0xc58] sm:$0xf]
    %v3934 = vld [vmem:[#allocation11 + $0xc5c] sm:$0xff]
    %v3935 = vld [vmem:[#allocation11 + $0xc64] sm:$0xff]
    %v3936 = vld [vmem:[#allocation11 + $0xc6c] sm:$0xff]
    %v3937 = vld [vmem:[#allocation11 + $0xc74] sm:$0xf]
    %v3938 = vld [vmem:[#allocation11 + $0xc78] sm:$0xff]
    %v3939 = vld [vmem:[#allocation11 + $0xc80] sm:$0xff]
    %v3940 = vld [vmem:[#allocation11 + $0xc88] sm:$0xff]
    %v3941 = vld [vmem:[#allocation11 + $0xc90] sm:$0xf]
    %v3942 = vld [vmem:[#allocation11 + $0xc94] sm:$0xff]
    %v3943 = vld [vmem:[#allocation11 + $0xc9c] sm:$0xff]
    %v3944 = vld [vmem:[#allocation11 + $0xca4] sm:$0xff]
    %v3945 = vld [vmem:[#allocation11 + $0xcac] sm:$0xf]
    %v3946 = vld [vmem:[#allocation11 + $0xcb0] sm:$0xff]
    %v3947 = vld [vmem:[#allocation11 + $0xcb8] sm:$0xff]
    %v3948 = vld [vmem:[#allocation11 + $0xcc0] sm:$0xff]
    %v3949 = vld [vmem:[#allocation11 + $0xcc8] sm:$0xf]
    %v3950 = vld [vmem:[#allocation11 + $0xccc] sm:$0xff]
    %v3951 = vld [vmem:[#allocation11 + $0xcd4] sm:$0xff]
    %v3952 = vld [vmem:[#allocation11 + $0xcdc] sm:$0xff]
    %v3953 = vld [vmem:[#allocation11 + $0xce4] sm:$0xf]
    %v3954 = vld [vmem:[#allocation11 + $0xce8] sm:$0xff]
    %v3955 = vld [vmem:[#allocation11 + $0xcf0] sm:$0xff]
    %v3956 = vld [vmem:[#allocation11 + $0xcf8] sm:$0xff]
    %v3957 = vld [vmem:[#allocation11 + $0xd00] sm:$0xf]
    %v3958 = vld [vmem:[#allocation11 + $0xd04] sm:$0xff]
    %v3959 = vld [vmem:[#allocation11 + $0xd0c] sm:$0xff]
    %v3960 = vld [vmem:[#allocation11 + $0xd14] sm:$0xff]
    %v3961 = vld [vmem:[#allocation11 + $0xd1c] sm:$0xf]
    %v3962 = vld [vmem:[#allocation11 + $0xd20] sm:$0xff]
    %v3963 = vld [vmem:[#allocation11 + $0xd28] sm:$0xff]
    %v3964 = vld [vmem:[#allocation11 + $0xd30] sm:$0xff]
    %v3965 = vld [vmem:[#allocation11 + $0xd38] sm:$0xf]
    %v3966 = vld [vmem:[#allocation11 + $0xd3c] sm:$0xff]
    %v3967 = vld [vmem:[#allocation11 + $0xd44] sm:$0xff]
    %v3968 = vld [vmem:[#allocation11 + $0xd4c] sm:$0xff]
    %v3969 = vld [vmem:[#allocation11 + $0xd54] sm:$0xf]
    %v3970 = vld [vmem:[#allocation11 + $0xd58] sm:$0xff]
    %v3971 = vld [vmem:[#allocation11 + $0xd60] sm:$0xff]
    %v3972 = vld [vmem:[#allocation11 + $0xd68] sm:$0xff]
    %v3973 = vld [vmem:[#allocation11 + $0xd70] sm:$0xf]
    %v3974 = vld [vmem:[#allocation11 + $0xd74] sm:$0xff]
    %v3975 = vld [vmem:[#allocation11 + $0xd7c] sm:$0xff]
    %v3976 = vld [vmem:[#allocation11 + $0xd84] sm:$0xff]
    %v3977 = vld [vmem:[#allocation11 + $0xd8c] sm:$0xf]
    %v3978 = vld [vmem:[#allocation11 + $0xd90] sm:$0xff]
    %v3979 = vld [vmem:[#allocation11 + $0xd98] sm:$0xff]
    %v3980 = vld [vmem:[#allocation11 + $0xda0] sm:$0xff]
    %v3981 = vld [vmem:[#allocation11 + $0xda8] sm:$0xf]
    %v3982 = vld [vmem:[#allocation11 + $0xdac] sm:$0xff]
    %v3983 = vld [vmem:[#allocation11 + $0xdb4] sm:$0xff]
    %v3984 = vld [vmem:[#allocation11 + $0xdbc] sm:$0xff]
    %v3985 = vld [vmem:[#allocation11 + $0xdc4] sm:$0xf]
    %v3986 = vld [vmem:[#allocation11 + $0xdc8] sm:$0xff]
    %v3987 = vld [vmem:[#allocation11 + $0xdd0] sm:$0xff]
    %v3988 = vld [vmem:[#allocation11 + $0xdd8] sm:$0xff]
    %v3989 = vld [vmem:[#allocation11 + $0xde0] sm:$0xf]
    %v3990 = vld [vmem:[#allocation11 + $0xde4] sm:$0xff]
    %v3991 = vld [vmem:[#allocation11 + $0xdec] sm:$0xff]
    %v3992 = vld [vmem:[#allocation11 + $0xdf4] sm:$0xff]
    %v3993 = vld [vmem:[#allocation11 + $0xdfc] sm:$0xf]
    %v3994 = vld [vmem:[#allocation14] sm:$0xff]
    %v3996 = vlaneseq
    %v3997 = vshrl.u32 %v3996, 7
    %v3998 = vsub.s32 0, %v3997
    %v3999 = vrot.slane %v3994, %v3998
    %v4000 = vlaneseq
    %v4001 = vshrl.u32 %v4000, 7
    %v4002 = vsub.s32 1, %v4001
    %v4003 = vrot.slane %v3994, %v4002
    %v4004 = vlaneseq
    %v4005 = vshrl.u32 %v4004, 7
    %v4006 = vsub.s32 2, %v4005
    %v4007 = vrot.slane %v3994, %v4006
    %v4008 = vlaneseq
    %v4009 = vshrl.u32 %v4008, 7
    %v4010 = vsub.s32 3, %v4009
    %v4011 = vrot.slane %v3994, %v4010
    %v4012 = vlaneseq
    %v4013 = vshrl.u32 %v4012, 7
    %v4014 = vsub.s32 4, %v4013
    %v4015 = vrot.slane %v3994, %v4014
    %v4016 = vlaneseq
    %v4017 = vshrl.u32 %v4016, 7
    %v4018 = vsub.s32 5, %v4017
    %v4019 = vrot.slane %v3994, %v4018
    %v4020 = vlaneseq
    %v4021 = vshrl.u32 %v4020, 7
    %v4022 = vsub.s32 6, %v4021
    %v4023 = vrot.slane %v3994, %v4022
    %v4543 = vunpack.c.l.b16 %v3482
    %v4544 = vunpack.c.h.b16 %v3482
    %v4545 = vunpack.c.l.b16 %v3483
    %v4546 = vunpack.c.h.b16 %v3483
    %v4547 = vunpack.c.l.b16 %v3484
    %v4548 = vunpack.c.h.b16 %v3484
    %v4549 = vunpack.c.l.b16 %v3485
    %v4550 = vunpack.c.l.b16 %v3486
    %v4551 = vunpack.c.h.b16 %v3486
    %v4552 = vunpack.c.l.b16 %v3487
    %v4553 = vunpack.c.h.b16 %v3487
    %v4554 = vunpack.c.l.b16 %v3488
    %v4555 = vunpack.c.h.b16 %v3488
    %v4556 = vunpack.c.l.b16 %v3489
    %v4557 = vunpack.c.l.b16 %v3490
    %v4558 = vunpack.c.h.b16 %v3490
    %v4559 = vunpack.c.l.b16 %v3491
    %v4560 = vunpack.c.h.b16 %v3491
    %v4561 = vunpack.c.l.b16 %v3492
    %v4562 = vunpack.c.h.b16 %v3492
    %v4563 = vunpack.c.l.b16 %v3493
    %v4564 = vunpack.c.l.b16 %v3494
    %v4565 = vunpack.c.h.b16 %v3494
    %v4566 = vunpack.c.l.b16 %v3495
    %v4567 = vunpack.c.h.b16 %v3495
    %v4568 = vunpack.c.l.b16 %v3496
    %v4569 = vunpack.c.h.b16 %v3496
    %v4570 = vunpack.c.l.b16 %v3497
    %v4571 = vunpack.c.l.b16 %v3498
    %v4572 = vunpack.c.h.b16 %v3498
    %v4573 = vunpack.c.l.b16 %v3499
    %v4574 = vunpack.c.h.b16 %v3499
    %v4575 = vunpack.c.l.b16 %v3500
    %v4576 = vunpack.c.h.b16 %v3500
    %v4577 = vunpack.c.l.b16 %v3501
    %v4578 = vunpack.c.l.b16 %v3502
    %v4579 = vunpack.c.h.b16 %v3502
    %v4580 = vunpack.c.l.b16 %v3503
    %v4581 = vunpack.c.h.b16 %v3503
    %v4582 = vunpack.c.l.b16 %v3504
    %v4583 = vunpack.c.h.b16 %v3504
    %v4584 = vunpack.c.l.b16 %v3505
    %v4585 = vunpack.c.l.b16 %v3506
    %v4586 = vunpack.c.h.b16 %v3506
    %v4587 = vunpack.c.l.b16 %v3507
    %v4588 = vunpack.c.h.b16 %v3507
    %v4589 = vunpack.c.l.b16 %v3508
    %v4590 = vunpack.c.h.b16 %v3508
    %v4591 = vunpack.c.l.b16 %v3509
    %v4592 = vunpack.c.l.b16 %v3510
    %v4593 = vunpack.c.h.b16 %v3510
    %v4594 = vunpack.c.l.b16 %v3511
    %v4595 = vunpack.c.h.b16 %v3511
    %v4596 = vunpack.c.l.b16 %v3512
    %v4597 = vunpack.c.h.b16 %v3512
    %v4598 = vunpack.c.l.b16 %v3513
    %v4599 = vunpack.c.l.b16 %v3514
    %v4600 = vunpack.c.h.b16 %v3514
    %v4601 = vunpack.c.l.b16 %v3515
    %v4602 = vunpack.c.h.b16 %v3515
    %v4603 = vunpack.c.l.b16 %v3516
    %v4604 = vunpack.c.h.b16 %v3516
    %v4605 = vunpack.c.l.b16 %v3517
    %v4606 = vunpack.c.l.b16 %v3518
    %v4607 = vunpack.c.h.b16 %v3518
    %v4608 = vunpack.c.l.b16 %v3519
    %v4609 = vunpack.c.h.b16 %v3519
    %v4610 = vunpack.c.l.b16 %v3520
    %v4611 = vunpack.c.h.b16 %v3520
    %v4612 = vunpack.c.l.b16 %v3521
    %v4613 = vunpack.c.l.b16 %v3522
    %v4614 = vunpack.c.h.b16 %v3522
    %v4615 = vunpack.c.l.b16 %v3523
    %v4616 = vunpack.c.h.b16 %v3523
    %v4617 = vunpack.c.l.b16 %v3524
    %v4618 = vunpack.c.h.b16 %v3524
    %v4619 = vunpack.c.l.b16 %v3525
    %v4620 = vunpack.c.l.b16 %v3526
    %v4621 = vunpack.c.h.b16 %v3526
    %v4622 = vunpack.c.l.b16 %v3527
    %v4623 = vunpack.c.h.b16 %v3527
    %v4624 = vunpack.c.l.b16 %v3528
    %v4625 = vunpack.c.h.b16 %v3528
    %v4626 = vunpack.c.l.b16 %v3529
    %v4627 = vunpack.c.l.b16 %v3530
    %v4628 = vunpack.c.h.b16 %v3530
    %v4629 = vunpack.c.l.b16 %v3531
    %v4630 = vunpack.c.h.b16 %v3531
    %v4631 = vunpack.c.l.b16 %v3532
    %v4632 = vunpack.c.h.b16 %v3532
    %v4633 = vunpack.c.l.b16 %v3533
    %v4634 = vunpack.c.l.b16 %v3534
    %v4635 = vunpack.c.h.b16 %v3534
    %v4636 = vunpack.c.l.b16 %v3535
    %v4637 = vunpack.c.h.b16 %v3535
    %v4638 = vunpack.c.l.b16 %v3536
    %v4639 = vunpack.c.h.b16 %v3536
    %v4640 = vunpack.c.l.b16 %v3537
    %v4641 = vunpack.c.l.b16 %v3538
    %v4642 = vunpack.c.h.b16 %v3538
    %v4643 = vunpack.c.l.b16 %v3539
    %v4644 = vunpack.c.h.b16 %v3539
    %v4645 = vunpack.c.l.b16 %v3540
    %v4646 = vunpack.c.h.b16 %v3540
    %v4647 = vunpack.c.l.b16 %v3541
    %v4648 = vunpack.c.l.b16 %v3542
    %v4649 = vunpack.c.h.b16 %v3542
    %v4650 = vunpack.c.l.b16 %v3543
    %v4651 = vunpack.c.h.b16 %v3543
    %v4652 = vunpack.c.l.b16 %v3544
    %v4653 = vunpack.c.h.b16 %v3544
    %v4654 = vunpack.c.l.b16 %v3545
    %v4655 = vunpack.c.l.b16 %v3546
    %v4656 = vunpack.c.h.b16 %v3546
    %v4657 = vunpack.c.l.b16 %v3547
    %v4658 = vunpack.c.h.b16 %v3547
    %v4659 = vunpack.c.l.b16 %v3548
    %v4660 = vunpack.c.h.b16 %v3548
    %v4661 = vunpack.c.l.b16 %v3549
    %v4662 = vunpack.c.l.b16 %v3550
    %v4663 = vunpack.c.h.b16 %v3550
    %v4664 = vunpack.c.l.b16 %v3551
    %v4665 = vunpack.c.h.b16 %v3551
    %v4666 = vunpack.c.l.b16 %v3552
    %v4667 = vunpack.c.h.b16 %v3552
    %v4668 = vunpack.c.l.b16 %v3553
    %v4669 = vunpack.c.l.b16 %v3554
    %v4670 = vunpack.c.h.b16 %v3554
    %v4671 = vunpack.c.l.b16 %v3555
    %v4672 = vunpack.c.h.b16 %v3555
    %v4673 = vunpack.c.l.b16 %v3556
    %v4674 = vunpack.c.h.b16 %v3556
    %v4675 = vunpack.c.l.b16 %v3557
    %v4676 = vunpack.c.l.b16 %v3558
    %v4677 = vunpack.c.h.b16 %v3558
    %v4678 = vunpack.c.l.b16 %v3559
    %v4679 = vunpack.c.h.b16 %v3559
    %v4680 = vunpack.c.l.b16 %v3560
    %v4681 = vunpack.c.h.b16 %v3560
    %v4682 = vunpack.c.l.b16 %v3561
    %v4683 = vunpack.c.l.b16 %v3562
    %v4684 = vunpack.c.h.b16 %v3562
    %v4685 = vunpack.c.l.b16 %v3563
    %v4686 = vunpack.c.h.b16 %v3563
    %v4687 = vunpack.c.l.b16 %v3564
    %v4688 = vunpack.c.h.b16 %v3564
    %v4689 = vunpack.c.l.b16 %v3565
    %v4690 = vunpack.c.l.b16 %v3566
    %v4691 = vunpack.c.h.b16 %v3566
    %v4692 = vunpack.c.l.b16 %v3567
    %v4693 = vunpack.c.h.b16 %v3567
    %v4694 = vunpack.c.l.b16 %v3568
    %v4695 = vunpack.c.h.b16 %v3568
    %v4696 = vunpack.c.l.b16 %v3569
    %v4697 = vunpack.c.l.b16 %v3570
    %v4698 = vunpack.c.h.b16 %v3570
    %v4699 = vunpack.c.l.b16 %v3571
    %v4700 = vunpack.c.h.b16 %v3571
    %v4701 = vunpack.c.l.b16 %v3572
    %v4702 = vunpack.c.h.b16 %v3572
    %v4703 = vunpack.c.l.b16 %v3573
    %v4704 = vunpack.c.l.b16 %v3574
    %v4705 = vunpack.c.h.b16 %v3574
    %v4706 = vunpack.c.l.b16 %v3575
    %v4707 = vunpack.c.h.b16 %v3575
    %v4708 = vunpack.c.l.b16 %v3576
    %v4709 = vunpack.c.h.b16 %v3576
    %v4710 = vunpack.c.l.b16 %v3577
    %v4711 = vunpack.c.l.b16 %v3578
    %v4712 = vunpack.c.h.b16 %v3578
    %v4713 = vunpack.c.l.b16 %v3579
    %v4714 = vunpack.c.h.b16 %v3579
    %v4715 = vunpack.c.l.b16 %v3580
    %v4716 = vunpack.c.h.b16 %v3580
    %v4717 = vunpack.c.l.b16 %v3581
    %v4718 = vunpack.c.l.b16 %v3582
    %v4719 = vunpack.c.h.b16 %v3582
    %v4720 = vunpack.c.l.b16 %v3583
    %v4721 = vunpack.c.h.b16 %v3583
    %v4722 = vunpack.c.l.b16 %v3584
    %v4723 = vunpack.c.h.b16 %v3584
    %v4724 = vunpack.c.l.b16 %v3585
    %v4725 = vunpack.c.l.b16 %v3586
    %v4726 = vunpack.c.h.b16 %v3586
    %v4727 = vunpack.c.l.b16 %v3587
    %v4728 = vunpack.c.h.b16 %v3587
    %v4729 = vunpack.c.l.b16 %v3588
    %v4730 = vunpack.c.h.b16 %v3588
    %v4731 = vunpack.c.l.b16 %v3589
    %v4732 = vunpack.c.l.b16 %v3590
    %v4733 = vunpack.c.h.b16 %v3590
    %v4734 = vunpack.c.l.b16 %v3591
    %v4735 = vunpack.c.h.b16 %v3591
    %v4736 = vunpack.c.l.b16 %v3592
    %v4737 = vunpack.c.h.b16 %v3592
    %v4738 = vunpack.c.l.b16 %v3593
    %v4739 = vunpack.c.l.b16 %v3594
    %v4740 = vunpack.c.h.b16 %v3594
    %v4741 = vunpack.c.l.b16 %v3595
    %v4742 = vunpack.c.h.b16 %v3595
    %v4743 = vunpack.c.l.b16 %v3596
    %v4744 = vunpack.c.h.b16 %v3596
    %v4745 = vunpack.c.l.b16 %v3597
    %v4746 = vunpack.c.l.b16 %v3598
    %v4747 = vunpack.c.h.b16 %v3598
    %v4748 = vunpack.c.l.b16 %v3599
    %v4749 = vunpack.c.h.b16 %v3599
    %v4750 = vunpack.c.l.b16 %v3600
    %v4751 = vunpack.c.h.b16 %v3600
    %v4752 = vunpack.c.l.b16 %v3601
    %v4753 = vunpack.c.l.b16 %v3602
    %v4754 = vunpack.c.h.b16 %v3602
    %v4755 = vunpack.c.l.b16 %v3603
    %v4756 = vunpack.c.h.b16 %v3603
    %v4757 = vunpack.c.l.b16 %v3604
    %v4758 = vunpack.c.h.b16 %v3604
    %v4759 = vunpack.c.l.b16 %v3605
    %v4760 = vunpack.c.l.b16 %v3606
    %v4761 = vunpack.c.h.b16 %v3606
    %v4762 = vunpack.c.l.b16 %v3607
    %v4763 = vunpack.c.h.b16 %v3607
    %v4764 = vunpack.c.l.b16 %v3608
    %v4765 = vunpack.c.h.b16 %v3608
    %v4766 = vunpack.c.l.b16 %v3609
    %v4767 = vunpack.c.l.b16 %v3610
    %v4768 = vunpack.c.h.b16 %v3610
    %v4769 = vunpack.c.l.b16 %v3611
    %v4770 = vunpack.c.h.b16 %v3611
    %v4771 = vunpack.c.l.b16 %v3612
    %v4772 = vunpack.c.h.b16 %v3612
    %v4773 = vunpack.c.l.b16 %v3613
    %v4774 = vunpack.c.l.b16 %v3614
    %v4775 = vunpack.c.h.b16 %v3614
    %v4776 = vunpack.c.l.b16 %v3615
    %v4777 = vunpack.c.h.b16 %v3615
    %v4778 = vunpack.c.l.b16 %v3616
    %v4779 = vunpack.c.h.b16 %v3616
    %v4780 = vunpack.c.l.b16 %v3617
    %v4781 = vunpack.c.l.b16 %v3618
    %v4782 = vunpack.c.h.b16 %v3618
    %v4783 = vunpack.c.l.b16 %v3619
    %v4784 = vunpack.c.h.b16 %v3619
    %v4785 = vunpack.c.l.b16 %v3620
    %v4786 = vunpack.c.h.b16 %v3620
    %v4787 = vunpack.c.l.b16 %v3621
    %v4788 = vunpack.c.l.b16 %v3622
    %v4789 = vunpack.c.h.b16 %v3622
    %v4790 = vunpack.c.l.b16 %v3623
    %v4791 = vunpack.c.h.b16 %v3623
    %v4792 = vunpack.c.l.b16 %v3624
    %v4793 = vunpack.c.h.b16 %v3624
    %v4794 = vunpack.c.l.b16 %v3625
    %v4795 = vunpack.c.l.b16 %v3626
    %v4796 = vunpack.c.h.b16 %v3626
    %v4797 = vunpack.c.l.b16 %v3627
    %v4798 = vunpack.c.h.b16 %v3627
    %v4799 = vunpack.c.l.b16 %v3628
    %v4800 = vunpack.c.h.b16 %v3628
    %v4801 = vunpack.c.l.b16 %v3629
    %v4802 = vunpack.c.l.b16 %v3630
    %v4803 = vunpack.c.h.b16 %v3630
    %v4804 = vunpack.c.l.b16 %v3631
    %v4805 = vunpack.c.h.b16 %v3631
    %v4806 = vunpack.c.l.b16 %v3632
    %v4807 = vunpack.c.h.b16 %v3632
    %v4808 = vunpack.c.l.b16 %v3633
    %v4809 = vunpack.c.l.b16 %v3634
    %v4810 = vunpack.c.h.b16 %v3634
    %v4811 = vunpack.c.l.b16 %v3635
    %v4812 = vunpack.c.h.b16 %v3635
    %v4813 = vunpack.c.l.b16 %v3636
    %v4814 = vunpack.c.h.b16 %v3636
    %v4815 = vunpack.c.l.b16 %v3637
    %v4816 = vunpack.c.l.b16 %v3638
    %v4817 = vunpack.c.h.b16 %v3638
    %v4818 = vunpack.c.l.b16 %v3639
    %v4819 = vunpack.c.h.b16 %v3639
    %v4820 = vunpack.c.l.b16 %v3640
    %v4821 = vunpack.c.h.b16 %v3640
    %v4822 = vunpack.c.l.b16 %v3641
    %v4823 = vunpack.c.l.b16 %v3642
    %v4824 = vunpack.c.h.b16 %v3642
    %v4825 = vunpack.c.l.b16 %v3643
    %v4826 = vunpack.c.h.b16 %v3643
    %v4827 = vunpack.c.l.b16 %v3644
    %v4828 = vunpack.c.h.b16 %v3644
    %v4829 = vunpack.c.l.b16 %v3645
    %v4830 = vunpack.c.l.b16 %v3646
    %v4831 = vunpack.c.h.b16 %v3646
    %v4832 = vunpack.c.l.b16 %v3647
    %v4833 = vunpack.c.h.b16 %v3647
    %v4834 = vunpack.c.l.b16 %v3648
    %v4835 = vunpack.c.h.b16 %v3648
    %v4836 = vunpack.c.l.b16 %v3649
    %v4837 = vunpack.c.l.b16 %v3650
    %v4838 = vunpack.c.h.b16 %v3650
    %v4839 = vunpack.c.l.b16 %v3651
    %v4840 = vunpack.c.h.b16 %v3651
    %v4841 = vunpack.c.l.b16 %v3652
    %v4842 = vunpack.c.h.b16 %v3652
    %v4843 = vunpack.c.l.b16 %v3653
    %v4844 = vunpack.c.l.b16 %v3654
    %v4845 = vunpack.c.h.b16 %v3654
    %v4846 = vunpack.c.l.b16 %v3655
    %v4847 = vunpack.c.h.b16 %v3655
    %v4848 = vunpack.c.l.b16 %v3656
    %v4849 = vunpack.c.h.b16 %v3656
    %v4850 = vunpack.c.l.b16 %v3657
    %v4851 = vunpack.c.l.b16 %v3658
    %v4852 = vunpack.c.h.b16 %v3658
    %v4853 = vunpack.c.l.b16 %v3659
    %v4854 = vunpack.c.h.b16 %v3659
    %v4855 = vunpack.c.l.b16 %v3660
    %v4856 = vunpack.c.h.b16 %v3660
    %v4857 = vunpack.c.l.b16 %v3661
    %v4858 = vunpack.c.l.b16 %v3662
    %v4859 = vunpack.c.h.b16 %v3662
    %v4860 = vunpack.c.l.b16 %v3663
    %v4861 = vunpack.c.h.b16 %v3663
    %v4862 = vunpack.c.l.b16 %v3664
    %v4863 = vunpack.c.h.b16 %v3664
    %v4864 = vunpack.c.l.b16 %v3665
    %v4865 = vunpack.c.l.b16 %v3666
    %v4866 = vunpack.c.h.b16 %v3666
    %v4867 = vunpack.c.l.b16 %v3667
    %v4868 = vunpack.c.h.b16 %v3667
    %v4869 = vunpack.c.l.b16 %v3668
    %v4870 = vunpack.c.h.b16 %v3668
    %v4871 = vunpack.c.l.b16 %v3669
    %v4872 = vunpack.c.l.b16 %v3670
    %v4873 = vunpack.c.h.b16 %v3670
    %v4874 = vunpack.c.l.b16 %v3671
    %v4875 = vunpack.c.h.b16 %v3671
    %v4876 = vunpack.c.l.b16 %v3672
    %v4877 = vunpack.c.h.b16 %v3672
    %v4878 = vunpack.c.l.b16 %v3673
    %v4879 = vunpack.c.l.b16 %v3674
    %v4880 = vunpack.c.h.b16 %v3674
    %v4881 = vunpack.c.l.b16 %v3675
    %v4882 = vunpack.c.h.b16 %v3675
    %v4883 = vunpack.c.l.b16 %v3676
    %v4884 = vunpack.c.h.b16 %v3676
    %v4885 = vunpack.c.l.b16 %v3677
    %v4886 = vunpack.c.l.b16 %v3678
    %v4887 = vunpack.c.h.b16 %v3678
    %v4888 = vunpack.c.l.b16 %v3679
    %v4889 = vunpack.c.h.b16 %v3679
    %v4890 = vunpack.c.l.b16 %v3680
    %v4891 = vunpack.c.h.b16 %v3680
    %v4892 = vunpack.c.l.b16 %v3681
    %v4893 = vunpack.c.l.b16 %v3682
    %v4894 = vunpack.c.h.b16 %v3682
    %v4895 = vunpack.c.l.b16 %v3683
    %v4896 = vunpack.c.h.b16 %v3683
    %v4897 = vunpack.c.l.b16 %v3684
    %v4898 = vunpack.c.h.b16 %v3684
    %v4899 = vunpack.c.l.b16 %v3685
    %v4900 = vunpack.c.l.b16 %v3686
    %v4901 = vunpack.c.h.b16 %v3686
    %v4902 = vunpack.c.l.b16 %v3687
    %v4903 = vunpack.c.h.b16 %v3687
    %v4904 = vunpack.c.l.b16 %v3688
    %v4905 = vunpack.c.h.b16 %v3688
    %v4906 = vunpack.c.l.b16 %v3689
    %v4907 = vunpack.c.l.b16 %v3690
    %v4908 = vunpack.c.h.b16 %v3690
    %v4909 = vunpack.c.l.b16 %v3691
    %v4910 = vunpack.c.h.b16 %v3691
    %v4911 = vunpack.c.l.b16 %v3692
    %v4912 = vunpack.c.h.b16 %v3692
    %v4913 = vunpack.c.l.b16 %v3693
    %v4914 = vunpack.c.l.b16 %v3694
    %v4915 = vunpack.c.h.b16 %v3694
    %v4916 = vunpack.c.l.b16 %v3695
    %v4917 = vunpack.c.h.b16 %v3695
    %v4918 = vunpack.c.l.b16 %v3696
    %v4919 = vunpack.c.h.b16 %v3696
    %v4920 = vunpack.c.l.b16 %v3697
    %v4921 = vunpack.c.l.b16 %v3698
    %v4922 = vunpack.c.h.b16 %v3698
    %v4923 = vunpack.c.l.b16 %v3699
    %v4924 = vunpack.c.h.b16 %v3699
    %v4925 = vunpack.c.l.b16 %v3700
    %v4926 = vunpack.c.h.b16 %v3700
    %v4927 = vunpack.c.l.b16 %v3701
    %v4928 = vunpack.c.l.b16 %v3702
    %v4929 = vunpack.c.h.b16 %v3702
    %v4930 = vunpack.c.l.b16 %v3703
    %v4931 = vunpack.c.h.b16 %v3703
    %v4932 = vunpack.c.l.b16 %v3704
    %v4933 = vunpack.c.h.b16 %v3704
    %v4934 = vunpack.c.l.b16 %v3705
    %v4935 = vunpack.c.l.b16 %v3706
    %v4936 = vunpack.c.h.b16 %v3706
    %v4937 = vunpack.c.l.b16 %v3707
    %v4938 = vunpack.c.h.b16 %v3707
    %v4939 = vunpack.c.l.b16 %v3708
    %v4940 = vunpack.c.h.b16 %v3708
    %v4941 = vunpack.c.l.b16 %v3709
    %v4942 = vunpack.c.l.b16 %v3710
    %v4943 = vunpack.c.h.b16 %v3710
    %v4944 = vunpack.c.l.b16 %v3711
    %v4945 = vunpack.c.h.b16 %v3711
    %v4946 = vunpack.c.l.b16 %v3712
    %v4947 = vunpack.c.h.b16 %v3712
    %v4948 = vunpack.c.l.b16 %v3713
    %v4949 = vunpack.c.l.b16 %v3714
    %v4950 = vunpack.c.h.b16 %v3714
    %v4951 = vunpack.c.l.b16 %v3715
    %v4952 = vunpack.c.h.b16 %v3715
    %v4953 = vunpack.c.l.b16 %v3716
    %v4954 = vunpack.c.h.b16 %v3716
    %v4955 = vunpack.c.l.b16 %v3717
    %v4956 = vunpack.c.l.b16 %v3718
    %v4957 = vunpack.c.h.b16 %v3718
    %v4958 = vunpack.c.l.b16 %v3719
    %v4959 = vunpack.c.h.b16 %v3719
    %v4960 = vunpack.c.l.b16 %v3720
    %v4961 = vunpack.c.h.b16 %v3720
    %v4962 = vunpack.c.l.b16 %v3721
    %v4963 = vunpack.c.l.b16 %v3722
    %v4964 = vunpack.c.h.b16 %v3722
    %v4965 = vunpack.c.l.b16 %v3723
    %v4966 = vunpack.c.h.b16 %v3723
    %v4967 = vunpack.c.l.b16 %v3724
    %v4968 = vunpack.c.h.b16 %v3724
    %v4969 = vunpack.c.l.b16 %v3725
    %v4970 = vunpack.c.l.b16 %v3726
    %v4971 = vunpack.c.h.b16 %v3726
    %v4972 = vunpack.c.l.b16 %v3727
    %v4973 = vunpack.c.h.b16 %v3727
    %v4974 = vunpack.c.l.b16 %v3728
    %v4975 = vunpack.c.h.b16 %v3728
    %v4976 = vunpack.c.l.b16 %v3729
    %v4977 = vunpack.c.l.b16 %v3730
    %v4978 = vunpack.c.h.b16 %v3730
    %v4979 = vunpack.c.l.b16 %v3731
    %v4980 = vunpack.c.h.b16 %v3731
    %v4981 = vunpack.c.l.b16 %v3732
    %v4982 = vunpack.c.h.b16 %v3732
    %v4983 = vunpack.c.l.b16 %v3733
    %v4984 = vunpack.c.l.b16 %v3734
    %v4985 = vunpack.c.h.b16 %v3734
    %v4986 = vunpack.c.l.b16 %v3735
    %v4987 = vunpack.c.h.b16 %v3735
    %v4988 = vunpack.c.l.b16 %v3736
    %v4989 = vunpack.c.h.b16 %v3736
    %v4990 = vunpack.c.l.b16 %v3737
    %v4991 = vunpack.c.l.b16 %v3738
    %v4992 = vunpack.c.h.b16 %v3738
    %v4993 = vunpack.c.l.b16 %v3739
    %v4994 = vunpack.c.h.b16 %v3739
    %v4995 = vunpack.c.l.b16 %v3740
    %v4996 = vunpack.c.h.b16 %v3740
    %v4997 = vunpack.c.l.b16 %v3741
    %v4998 = vunpack.c.l.b16 %v3742
    %v4999 = vunpack.c.h.b16 %v3742
    %v5000 = vunpack.c.l.b16 %v3743
    %v5001 = vunpack.c.h.b16 %v3743
    %v5002 = vunpack.c.l.b16 %v3744
    %v5003 = vunpack.c.h.b16 %v3744
    %v5004 = vunpack.c.l.b16 %v3745
    %v5005 = vunpack.c.l.b16 %v3746
    %v5006 = vunpack.c.h.b16 %v3746
    %v5007 = vunpack.c.l.b16 %v3747
    %v5008 = vunpack.c.h.b16 %v3747
    %v5009 = vunpack.c.l.b16 %v3748
    %v5010 = vunpack.c.h.b16 %v3748
    %v5011 = vunpack.c.l.b16 %v3749
    %v5012 = vunpack.c.l.b16 %v3750
    %v5013 = vunpack.c.h.b16 %v3750
    %v5014 = vunpack.c.l.b16 %v3751
    %v5015 = vunpack.c.h.b16 %v3751
    %v5016 = vunpack.c.l.b16 %v3752
    %v5017 = vunpack.c.h.b16 %v3752
    %v5018 = vunpack.c.l.b16 %v3753
    %v5019 = vunpack.c.l.b16 %v3754
    %v5020 = vunpack.c.h.b16 %v3754
    %v5021 = vunpack.c.l.b16 %v3755
    %v5022 = vunpack.c.h.b16 %v3755
    %v5023 = vunpack.c.l.b16 %v3756
    %v5024 = vunpack.c.h.b16 %v3756
    %v5025 = vunpack.c.l.b16 %v3757
    %v5026 = vunpack.c.l.b16 %v3758
    %v5027 = vunpack.c.h.b16 %v3758
    %v5028 = vunpack.c.l.b16 %v3759
    %v5029 = vunpack.c.h.b16 %v3759
    %v5030 = vunpack.c.l.b16 %v3760
    %v5031 = vunpack.c.h.b16 %v3760
    %v5032 = vunpack.c.l.b16 %v3761
    %v5033 = vunpack.c.l.b16 %v3762
    %v5034 = vunpack.c.h.b16 %v3762
    %v5035 = vunpack.c.l.b16 %v3763
    %v5036 = vunpack.c.h.b16 %v3763
    %v5037 = vunpack.c.l.b16 %v3764
    %v5038 = vunpack.c.h.b16 %v3764
    %v5039 = vunpack.c.l.b16 %v3765
    %v5040 = vunpack.c.l.b16 %v3766
    %v5041 = vunpack.c.h.b16 %v3766
    %v5042 = vunpack.c.l.b16 %v3767
    %v5043 = vunpack.c.h.b16 %v3767
    %v5044 = vunpack.c.l.b16 %v3768
    %v5045 = vunpack.c.h.b16 %v3768
    %v5046 = vunpack.c.l.b16 %v3769
    %v5047 = vunpack.c.l.b16 %v3770
    %v5048 = vunpack.c.h.b16 %v3770
    %v5049 = vunpack.c.l.b16 %v3771
    %v5050 = vunpack.c.h.b16 %v3771
    %v5051 = vunpack.c.l.b16 %v3772
    %v5052 = vunpack.c.h.b16 %v3772
    %v5053 = vunpack.c.l.b16 %v3773
    %v5054 = vunpack.c.l.b16 %v3774
    %v5055 = vunpack.c.h.b16 %v3774
    %v5056 = vunpack.c.l.b16 %v3775
    %v5057 = vunpack.c.h.b16 %v3775
    %v5058 = vunpack.c.l.b16 %v3776
    %v5059 = vunpack.c.h.b16 %v3776
    %v5060 = vunpack.c.l.b16 %v3777
    %v5061 = vunpack.c.l.b16 %v3778
    %v5062 = vunpack.c.h.b16 %v3778
    %v5063 = vunpack.c.l.b16 %v3779
    %v5064 = vunpack.c.h.b16 %v3779
    %v5065 = vunpack.c.l.b16 %v3780
    %v5066 = vunpack.c.h.b16 %v3780
    %v5067 = vunpack.c.l.b16 %v3781
    %v5068 = vunpack.c.l.b16 %v3782
    %v5069 = vunpack.c.h.b16 %v3782
    %v5070 = vunpack.c.l.b16 %v3783
    %v5071 = vunpack.c.h.b16 %v3783
    %v5072 = vunpack.c.l.b16 %v3784
    %v5073 = vunpack.c.h.b16 %v3784
    %v5074 = vunpack.c.l.b16 %v3785
    %v5075 = vunpack.c.l.b16 %v3786
    %v5076 = vunpack.c.h.b16 %v3786
    %v5077 = vunpack.c.l.b16 %v3787
    %v5078 = vunpack.c.h.b16 %v3787
    %v5079 = vunpack.c.l.b16 %v3788
    %v5080 = vunpack.c.h.b16 %v3788
    %v5081 = vunpack.c.l.b16 %v3789
    %v5082 = vunpack.c.l.b16 %v3790
    %v5083 = vunpack.c.h.b16 %v3790
    %v5084 = vunpack.c.l.b16 %v3791
    %v5085 = vunpack.c.h.b16 %v3791
    %v5086 = vunpack.c.l.b16 %v3792
    %v5087 = vunpack.c.h.b16 %v3792
    %v5088 = vunpack.c.l.b16 %v3793
    %v5089 = vunpack.c.l.b16 %v3794
    %v5090 = vunpack.c.h.b16 %v3794
    %v5091 = vunpack.c.l.b16 %v3795
    %v5092 = vunpack.c.h.b16 %v3795
    %v5093 = vunpack.c.l.b16 %v3796
    %v5094 = vunpack.c.h.b16 %v3796
    %v5095 = vunpack.c.l.b16 %v3797
    %v5096 = vunpack.c.l.b16 %v3798
    %v5097 = vunpack.c.h.b16 %v3798
    %v5098 = vunpack.c.l.b16 %v3799
    %v5099 = vunpack.c.h.b16 %v3799
    %v5100 = vunpack.c.l.b16 %v3800
    %v5101 = vunpack.c.h.b16 %v3800
    %v5102 = vunpack.c.l.b16 %v3801
    %v5103 = vunpack.c.l.b16 %v3802
    %v5104 = vunpack.c.h.b16 %v3802
    %v5105 = vunpack.c.l.b16 %v3803
    %v5106 = vunpack.c.h.b16 %v3803
    %v5107 = vunpack.c.l.b16 %v3804
    %v5108 = vunpack.c.h.b16 %v3804
    %v5109 = vunpack.c.l.b16 %v3805
    %v5110 = vunpack.c.l.b16 %v3806
    %v5111 = vunpack.c.h.b16 %v3806
    %v5112 = vunpack.c.l.b16 %v3807
    %v5113 = vunpack.c.h.b16 %v3807
    %v5114 = vunpack.c.l.b16 %v3808
    %v5115 = vunpack.c.h.b16 %v3808
    %v5116 = vunpack.c.l.b16 %v3809
    %v5117 = vunpack.c.l.b16 %v3810
    %v5118 = vunpack.c.h.b16 %v3810
    %v5119 = vunpack.c.l.b16 %v3811
    %v5120 = vunpack.c.h.b16 %v3811
    %v5121 = vunpack.c.l.b16 %v3812
    %v5122 = vunpack.c.h.b16 %v3812
    %v5123 = vunpack.c.l.b16 %v3813
    %v5124 = vunpack.c.l.b16 %v3814
    %v5125 = vunpack.c.h.b16 %v3814
    %v5126 = vunpack.c.l.b16 %v3815
    %v5127 = vunpack.c.h.b16 %v3815
    %v5128 = vunpack.c.l.b16 %v3816
    %v5129 = vunpack.c.h.b16 %v3816
    %v5130 = vunpack.c.l.b16 %v3817
    %v5131 = vunpack.c.l.b16 %v3818
    %v5132 = vunpack.c.h.b16 %v3818
    %v5133 = vunpack.c.l.b16 %v3819
    %v5134 = vunpack.c.h.b16 %v3819
    %v5135 = vunpack.c.l.b16 %v3820
    %v5136 = vunpack.c.h.b16 %v3820
    %v5137 = vunpack.c.l.b16 %v3821
    %v5138 = vunpack.c.l.b16 %v3822
    %v5139 = vunpack.c.h.b16 %v3822
    %v5140 = vunpack.c.l.b16 %v3823
    %v5141 = vunpack.c.h.b16 %v3823
    %v5142 = vunpack.c.l.b16 %v3824
    %v5143 = vunpack.c.h.b16 %v3824
    %v5144 = vunpack.c.l.b16 %v3825
    %v5145 = vunpack.c.l.b16 %v3826
    %v5146 = vunpack.c.h.b16 %v3826
    %v5147 = vunpack.c.l.b16 %v3827
    %v5148 = vunpack.c.h.b16 %v3827
    %v5149 = vunpack.c.l.b16 %v3828
    %v5150 = vunpack.c.h.b16 %v3828
    %v5151 = vunpack.c.l.b16 %v3829
    %v5152 = vunpack.c.l.b16 %v3830
    %v5153 = vunpack.c.h.b16 %v3830
    %v5154 = vunpack.c.l.b16 %v3831
    %v5155 = vunpack.c.h.b16 %v3831
    %v5156 = vunpack.c.l.b16 %v3832
    %v5157 = vunpack.c.h.b16 %v3832
    %v5158 = vunpack.c.l.b16 %v3833
    %v5159 = vunpack.c.l.b16 %v3834
    %v5160 = vunpack.c.h.b16 %v3834
    %v5161 = vunpack.c.l.b16 %v3835
    %v5162 = vunpack.c.h.b16 %v3835
    %v5163 = vunpack.c.l.b16 %v3836
    %v5164 = vunpack.c.h.b16 %v3836
    %v5165 = vunpack.c.l.b16 %v3837
    %v5166 = vunpack.c.l.b16 %v3838
    %v5167 = vunpack.c.h.b16 %v3838
    %v5168 = vunpack.c.l.b16 %v3839
    %v5169 = vunpack.c.h.b16 %v3839
    %v5170 = vunpack.c.l.b16 %v3840
    %v5171 = vunpack.c.h.b16 %v3840
    %v5172 = vunpack.c.l.b16 %v3841
    %v5173 = vunpack.c.l.b16 %v3842
    %v5174 = vunpack.c.h.b16 %v3842
    %v5175 = vunpack.c.l.b16 %v3843
    %v5176 = vunpack.c.h.b16 %v3843
    %v5177 = vunpack.c.l.b16 %v3844
    %v5178 = vunpack.c.h.b16 %v3844
    %v5179 = vunpack.c.l.b16 %v3845
    %v5180 = vunpack.c.l.b16 %v3846
    %v5181 = vunpack.c.h.b16 %v3846
    %v5182 = vunpack.c.l.b16 %v3847
    %v5183 = vunpack.c.h.b16 %v3847
    %v5184 = vunpack.c.l.b16 %v3848
    %v5185 = vunpack.c.h.b16 %v3848
    %v5186 = vunpack.c.l.b16 %v3849
    %v5187 = vunpack.c.l.b16 %v3850
    %v5188 = vunpack.c.h.b16 %v3850
    %v5189 = vunpack.c.l.b16 %v3851
    %v5190 = vunpack.c.h.b16 %v3851
    %v5191 = vunpack.c.l.b16 %v3852
    %v5192 = vunpack.c.h.b16 %v3852
    %v5193 = vunpack.c.l.b16 %v3853
    %v5194 = vunpack.c.l.b16 %v3854
    %v5195 = vunpack.c.h.b16 %v3854
    %v5196 = vunpack.c.l.b16 %v3855
    %v5197 = vunpack.c.h.b16 %v3855
    %v5198 = vunpack.c.l.b16 %v3856
    %v5199 = vunpack.c.h.b16 %v3856
    %v5200 = vunpack.c.l.b16 %v3857
    %v5201 = vunpack.c.l.b16 %v3858
    %v5202 = vunpack.c.h.b16 %v3858
    %v5203 = vunpack.c.l.b16 %v3859
    %v5204 = vunpack.c.h.b16 %v3859
    %v5205 = vunpack.c.l.b16 %v3860
    %v5206 = vunpack.c.h.b16 %v3860
    %v5207 = vunpack.c.l.b16 %v3861
    %v5208 = vunpack.c.l.b16 %v3862
    %v5209 = vunpack.c.h.b16 %v3862
    %v5210 = vunpack.c.l.b16 %v3863
    %v5211 = vunpack.c.h.b16 %v3863
    %v5212 = vunpack.c.l.b16 %v3864
    %v5213 = vunpack.c.h.b16 %v3864
    %v5214 = vunpack.c.l.b16 %v3865
    %v5215 = vunpack.c.l.b16 %v3866
    %v5216 = vunpack.c.h.b16 %v3866
    %v5217 = vunpack.c.l.b16 %v3867
    %v5218 = vunpack.c.h.b16 %v3867
    %v5219 = vunpack.c.l.b16 %v3868
    %v5220 = vunpack.c.h.b16 %v3868
    %v5221 = vunpack.c.l.b16 %v3869
    %v5222 = vunpack.c.l.b16 %v3870
    %v5223 = vunpack.c.h.b16 %v3870
    %v5224 = vunpack.c.l.b16 %v3871
    %v5225 = vunpack.c.h.b16 %v3871
    %v5226 = vunpack.c.l.b16 %v3872
    %v5227 = vunpack.c.h.b16 %v3872
    %v5228 = vunpack.c.l.b16 %v3873
    %v5229 = vunpack.c.l.b16 %v3874
    %v5230 = vunpack.c.h.b16 %v3874
    %v5231 = vunpack.c.l.b16 %v3875
    %v5232 = vunpack.c.h.b16 %v3875
    %v5233 = vunpack.c.l.b16 %v3876
    %v5234 = vunpack.c.h.b16 %v3876
    %v5235 = vunpack.c.l.b16 %v3877
    %v5236 = vunpack.c.l.b16 %v3878
    %v5237 = vunpack.c.h.b16 %v3878
    %v5238 = vunpack.c.l.b16 %v3879
    %v5239 = vunpack.c.h.b16 %v3879
    %v5240 = vunpack.c.l.b16 %v3880
    %v5241 = vunpack.c.h.b16 %v3880
    %v5242 = vunpack.c.l.b16 %v3881
    %v5243 = vunpack.c.l.b16 %v3882
    %v5244 = vunpack.c.h.b16 %v3882
    %v5245 = vunpack.c.l.b16 %v3883
    %v5246 = vunpack.c.h.b16 %v3883
    %v5247 = vunpack.c.l.b16 %v3884
    %v5248 = vunpack.c.h.b16 %v3884
    %v5249 = vunpack.c.l.b16 %v3885
    %v5250 = vunpack.c.l.b16 %v3886
    %v5251 = vunpack.c.h.b16 %v3886
    %v5252 = vunpack.c.l.b16 %v3887
    %v5253 = vunpack.c.h.b16 %v3887
    %v5254 = vunpack.c.l.b16 %v3888
    %v5255 = vunpack.c.h.b16 %v3888
    %v5256 = vunpack.c.l.b16 %v3889
    %v5257 = vunpack.c.l.b16 %v3890
    %v5258 = vunpack.c.h.b16 %v3890
    %v5259 = vunpack.c.l.b16 %v3891
    %v5260 = vunpack.c.h.b16 %v3891
    %v5261 = vunpack.c.l.b16 %v3892
    %v5262 = vunpack.c.h.b16 %v3892
    %v5263 = vunpack.c.l.b16 %v3893
    %v5264 = vunpack.c.l.b16 %v3894
    %v5265 = vunpack.c.h.b16 %v3894
    %v5266 = vunpack.c.l.b16 %v3895
    %v5267 = vunpack.c.h.b16 %v3895
    %v5268 = vunpack.c.l.b16 %v3896
    %v5269 = vunpack.c.h.b16 %v3896
    %v5270 = vunpack.c.l.b16 %v3897
    %v5271 = vunpack.c.l.b16 %v3898
    %v5272 = vunpack.c.h.b16 %v3898
    %v5273 = vunpack.c.l.b16 %v3899
    %v5274 = vunpack.c.h.b16 %v3899
    %v5275 = vunpack.c.l.b16 %v3900
    %v5276 = vunpack.c.h.b16 %v3900
    %v5277 = vunpack.c.l.b16 %v3901
    %v5278 = vunpack.c.l.b16 %v3902
    %v5279 = vunpack.c.h.b16 %v3902
    %v5280 = vunpack.c.l.b16 %v3903
    %v5281 = vunpack.c.h.b16 %v3903
    %v5282 = vunpack.c.l.b16 %v3904
    %v5283 = vunpack.c.h.b16 %v3904
    %v5284 = vunpack.c.l.b16 %v3905
    %v5285 = vunpack.c.l.b16 %v3906
    %v5286 = vunpack.c.h.b16 %v3906
    %v5287 = vunpack.c.l.b16 %v3907
    %v5288 = vunpack.c.h.b16 %v3907
    %v5289 = vunpack.c.l.b16 %v3908
    %v5290 = vunpack.c.h.b16 %v3908
    %v5291 = vunpack.c.l.b16 %v3909
    %v5292 = vunpack.c.l.b16 %v3910
    %v5293 = vunpack.c.h.b16 %v3910
    %v5294 = vunpack.c.l.b16 %v3911
    %v5295 = vunpack.c.h.b16 %v3911
    %v5296 = vunpack.c.l.b16 %v3912
    %v5297 = vunpack.c.h.b16 %v3912
    %v5298 = vunpack.c.l.b16 %v3913
    %v5299 = vunpack.c.l.b16 %v3914
    %v5300 = vunpack.c.h.b16 %v3914
    %v5301 = vunpack.c.l.b16 %v3915
    %v5302 = vunpack.c.h.b16 %v3915
    %v5303 = vunpack.c.l.b16 %v3916
    %v5304 = vunpack.c.h.b16 %v3916
    %v5305 = vunpack.c.l.b16 %v3917
    %v5306 = vunpack.c.l.b16 %v3918
    %v5307 = vunpack.c.h.b16 %v3918
    %v5308 = vunpack.c.l.b16 %v3919
    %v5309 = vunpack.c.h.b16 %v3919
    %v5310 = vunpack.c.l.b16 %v3920
    %v5311 = vunpack.c.h.b16 %v3920
    %v5312 = vunpack.c.l.b16 %v3921
    %v5313 = vunpack.c.l.b16 %v3922
    %v5314 = vunpack.c.h.b16 %v3922
    %v5315 = vunpack.c.l.b16 %v3923
    %v5316 = vunpack.c.h.b16 %v3923
    %v5317 = vunpack.c.l.b16 %v3924
    %v5318 = vunpack.c.h.b16 %v3924
    %v5319 = vunpack.c.l.b16 %v3925
    %v5320 = vunpack.c.l.b16 %v3926
    %v5321 = vunpack.c.h.b16 %v3926
    %v5322 = vunpack.c.l.b16 %v3927
    %v5323 = vunpack.c.h.b16 %v3927
    %v5324 = vunpack.c.l.b16 %v3928
    %v5325 = vunpack.c.h.b16 %v3928
    %v5326 = vunpack.c.l.b16 %v3929
    %v5327 = vunpack.c.l.b16 %v3930
    %v5328 = vunpack.c.h.b16 %v3930
    %v5329 = vunpack.c.l.b16 %v3931
    %v5330 = vunpack.c.h.b16 %v3931
    %v5331 = vunpack.c.l.b16 %v3932
    %v5332 = vunpack.c.h.b16 %v3932
    %v5333 = vunpack.c.l.b16 %v3933
    %v5334 = vunpack.c.l.b16 %v3934
    %v5335 = vunpack.c.h.b16 %v3934
    %v5336 = vunpack.c.l.b16 %v3935
    %v5337 = vunpack.c.h.b16 %v3935
    %v5338 = vunpack.c.l.b16 %v3936
    %v5339 = vunpack.c.h.b16 %v3936
    %v5340 = vunpack.c.l.b16 %v3937
    %v5341 = vunpack.c.l.b16 %v3938
    %v5342 = vunpack.c.h.b16 %v3938
    %v5343 = vunpack.c.l.b16 %v3939
    %v5344 = vunpack.c.h.b16 %v3939
    %v5345 = vunpack.c.l.b16 %v3940
    %v5346 = vunpack.c.h.b16 %v3940
    %v5347 = vunpack.c.l.b16 %v3941
    %v5348 = vunpack.c.l.b16 %v3942
    %v5349 = vunpack.c.h.b16 %v3942
    %v5350 = vunpack.c.l.b16 %v3943
    %v5351 = vunpack.c.h.b16 %v3943
    %v5352 = vunpack.c.l.b16 %v3944
    %v5353 = vunpack.c.h.b16 %v3944
    %v5354 = vunpack.c.l.b16 %v3945
    %v5355 = vunpack.c.l.b16 %v3946
    %v5356 = vunpack.c.h.b16 %v3946
    %v5357 = vunpack.c.l.b16 %v3947
    %v5358 = vunpack.c.h.b16 %v3947
    %v5359 = vunpack.c.l.b16 %v3948
    %v5360 = vunpack.c.h.b16 %v3948
    %v5361 = vunpack.c.l.b16 %v3949
    %v5362 = vunpack.c.l.b16 %v3950
    %v5363 = vunpack.c.h.b16 %v3950
    %v5364 = vunpack.c.l.b16 %v3951
    %v5365 = vunpack.c.h.b16 %v3951
    %v5366 = vunpack.c.l.b16 %v3952
    %v5367 = vunpack.c.h.b16 %v3952
    %v5368 = vunpack.c.l.b16 %v3953
    %v5369 = vunpack.c.l.b16 %v3954
    %v5370 = vunpack.c.h.b16 %v3954
    %v5371 = vunpack.c.l.b16 %v3955
    %v5372 = vunpack.c.h.b16 %v3955
    %v5373 = vunpack.c.l.b16 %v3956
    %v5374 = vunpack.c.h.b16 %v3956
    %v5375 = vunpack.c.l.b16 %v3957
    %v5376 = vunpack.c.l.b16 %v3958
    %v5377 = vunpack.c.h.b16 %v3958
    %v5378 = vunpack.c.l.b16 %v3959
    %v5379 = vunpack.c.h.b16 %v3959
    %v5380 = vunpack.c.l.b16 %v3960
    %v5381 = vunpack.c.h.b16 %v3960
    %v5382 = vunpack.c.l.b16 %v3961
    %v5383 = vunpack.c.l.b16 %v3962
    %v5384 = vunpack.c.h.b16 %v3962
    %v5385 = vunpack.c.l.b16 %v3963
    %v5386 = vunpack.c.h.b16 %v3963
    %v5387 = vunpack.c.l.b16 %v3964
    %v5388 = vunpack.c.h.b16 %v3964
    %v5389 = vunpack.c.l.b16 %v3965
    %v5390 = vunpack.c.l.b16 %v3966
    %v5391 = vunpack.c.h.b16 %v3966
    %v5392 = vunpack.c.l.b16 %v3967
    %v5393 = vunpack.c.h.b16 %v3967
    %v5394 = vunpack.c.l.b16 %v3968
    %v5395 = vunpack.c.h.b16 %v3968
    %v5396 = vunpack.c.l.b16 %v3969
    %v5397 = vunpack.c.l.b16 %v3970
    %v5398 = vunpack.c.h.b16 %v3970
    %v5399 = vunpack.c.l.b16 %v3971
    %v5400 = vunpack.c.h.b16 %v3971
    %v5401 = vunpack.c.l.b16 %v3972
    %v5402 = vunpack.c.h.b16 %v3972
    %v5403 = vunpack.c.l.b16 %v3973
    %v5404 = vunpack.c.l.b16 %v3974
    %v5405 = vunpack.c.h.b16 %v3974
    %v5406 = vunpack.c.l.b16 %v3975
    %v5407 = vunpack.c.h.b16 %v3975
    %v5408 = vunpack.c.l.b16 %v3976
    %v5409 = vunpack.c.h.b16 %v3976
    %v5410 = vunpack.c.l.b16 %v3977
    %v5411 = vunpack.c.l.b16 %v3978
    %v5412 = vunpack.c.h.b16 %v3978
    %v5413 = vunpack.c.l.b16 %v3979
    %v5414 = vunpack.c.h.b16 %v3979
    %v5415 = vunpack.c.l.b16 %v3980
    %v5416 = vunpack.c.h.b16 %v3980
    %v5417 = vunpack.c.l.b16 %v3981
    %v5418 = vunpack.c.l.b16 %v3982
    %v5419 = vunpack.c.h.b16 %v3982
    %v5420 = vunpack.c.l.b16 %v3983
    %v5421 = vunpack.c.h.b16 %v3983
    %v5422 = vunpack.c.l.b16 %v3984
    %v5423 = vunpack.c.h.b16 %v3984
    %v5424 = vunpack.c.l.b16 %v3985
    %v5425 = vunpack.c.l.b16 %v3986
    %v5426 = vunpack.c.h.b16 %v3986
    %v5427 = vunpack.c.l.b16 %v3987
    %v5428 = vunpack.c.h.b16 %v3987
    %v5429 = vunpack.c.l.b16 %v3988
    %v5430 = vunpack.c.h.b16 %v3988
    %v5431 = vunpack.c.l.b16 %v3989
    %v5432 = vunpack.c.l.b16 %v3990
    %v5433 = vunpack.c.h.b16 %v3990
    %v5434 = vunpack.c.l.b16 %v3991
    %v5435 = vunpack.c.h.b16 %v3991
    %v5436 = vunpack.c.l.b16 %v3992
    %v5437 = vunpack.c.h.b16 %v3992
    %v5438 = vunpack.c.l.b16 %v3993
    %v5439 = vpack.c.b16 %v4550, %v4543
    %v5440 = vpack.c.b16 %v4551, %v4544
    %v5441 = vpack.c.b16 %v4552, %v4545
    %v5442 = vpack.c.b16 %v4553, %v4546
    %v5443 = vpack.c.b16 %v4554, %v4547
    %v5444 = vpack.c.b16 %v4555, %v4548
    %v5445 = vpack.c.b16 %v4556, %v4549
    %v5446 = vpack.c.b16 %v4564, %v4557
    %v5447 = vpack.c.b16 %v4565, %v4558
    %v5448 = vpack.c.b16 %v4566, %v4559
    %v5449 = vpack.c.b16 %v4567, %v4560
    %v5450 = vpack.c.b16 %v4568, %v4561
    %v5451 = vpack.c.b16 %v4569, %v4562
    %v5452 = vpack.c.b16 %v4570, %v4563
    %v5453 = vpack.c.b16 %v4578, %v4571
    %v5454 = vpack.c.b16 %v4579, %v4572
    %v5455 = vpack.c.b16 %v4580, %v4573
    %v5456 = vpack.c.b16 %v4581, %v4574
    %v5457 = vpack.c.b16 %v4582, %v4575
    %v5458 = vpack.c.b16 %v4583, %v4576
    %v5459 = vpack.c.b16 %v4584, %v4577
    %v5460 = vpack.c.b16 %v4592, %v4585
    %v5461 = vpack.c.b16 %v4593, %v4586
    %v5462 = vpack.c.b16 %v4594, %v4587
    %v5463 = vpack.c.b16 %v4595, %v4588
    %v5464 = vpack.c.b16 %v4596, %v4589
    %v5465 = vpack.c.b16 %v4597, %v4590
    %v5466 = vpack.c.b16 %v4598, %v4591
    %v5467 = vpack.c.b16 %v4606, %v4599
    %v5468 = vpack.c.b16 %v4607, %v4600
    %v5469 = vpack.c.b16 %v4608, %v4601
    %v5470 = vpack.c.b16 %v4609, %v4602
    %v5471 = vpack.c.b16 %v4610, %v4603
    %v5472 = vpack.c.b16 %v4611, %v4604
    %v5473 = vpack.c.b16 %v4612, %v4605
    %v5474 = vpack.c.b16 %v4620, %v4613
    %v5475 = vpack.c.b16 %v4621, %v4614
    %v5476 = vpack.c.b16 %v4622, %v4615
    %v5477 = vpack.c.b16 %v4623, %v4616
    %v5478 = vpack.c.b16 %v4624, %v4617
    %v5479 = vpack.c.b16 %v4625, %v4618
    %v5480 = vpack.c.b16 %v4626, %v4619
    %v5481 = vpack.c.b16 %v4634, %v4627
    %v5482 = vpack.c.b16 %v4635, %v4628
    %v5483 = vpack.c.b16 %v4636, %v4629
    %v5484 = vpack.c.b16 %v4637, %v4630
    %v5485 = vpack.c.b16 %v4638, %v4631
    %v5486 = vpack.c.b16 %v4639, %v4632
    %v5487 = vpack.c.b16 %v4640, %v4633
    %v5488 = vpack.c.b16 %v4648, %v4641
    %v5489 = vpack.c.b16 %v4649, %v4642
    %v5490 = vpack.c.b16 %v4650, %v4643
    %v5491 = vpack.c.b16 %v4651, %v4644
    %v5492 = vpack.c.b16 %v4652, %v4645
    %v5493 = vpack.c.b16 %v4653, %v4646
    %v5494 = vpack.c.b16 %v4654, %v4647
    %v5495 = vpack.c.b16 %v4662, %v4655
    %v5496 = vpack.c.b16 %v4663, %v4656
    %v5497 = vpack.c.b16 %v4664, %v4657
    %v5498 = vpack.c.b16 %v4665, %v4658
    %v5499 = vpack.c.b16 %v4666, %v4659
    %v5500 = vpack.c.b16 %v4667, %v4660
    %v5501 = vpack.c.b16 %v4668, %v4661
    %v5502 = vpack.c.b16 %v4676, %v4669
    %v5503 = vpack.c.b16 %v4677, %v4670
    %v5504 = vpack.c.b16 %v4678, %v4671
    %v5505 = vpack.c.b16 %v4679, %v4672
    %v5506 = vpack.c.b16 %v4680, %v4673
    %v5507 = vpack.c.b16 %v4681, %v4674
    %v5508 = vpack.c.b16 %v4682, %v4675
    %v5509 = vpack.c.b16 %v4690, %v4683
    %v5510 = vpack.c.b16 %v4691, %v4684
    %v5511 = vpack.c.b16 %v4692, %v4685
    %v5512 = vpack.c.b16 %v4693, %v4686
    %v5513 = vpack.c.b16 %v4694, %v4687
    %v5514 = vpack.c.b16 %v4695, %v4688
    %v5515 = vpack.c.b16 %v4696, %v4689
    %v5516 = vpack.c.b16 %v4704, %v4697
    %v5517 = vpack.c.b16 %v4705, %v4698
    %v5518 = vpack.c.b16 %v4706, %v4699
    %v5519 = vpack.c.b16 %v4707, %v4700
    %v5520 = vpack.c.b16 %v4708, %v4701
    %v5521 = vpack.c.b16 %v4709, %v4702
    %v5522 = vpack.c.b16 %v4710, %v4703
    %v5523 = vpack.c.b16 %v4718, %v4711
    %v5524 = vpack.c.b16 %v4719, %v4712
    %v5525 = vpack.c.b16 %v4720, %v4713
    %v5526 = vpack.c.b16 %v4721, %v4714
    %v5527 = vpack.c.b16 %v4722, %v4715
    %v5528 = vpack.c.b16 %v4723, %v4716
    %v5529 = vpack.c.b16 %v4724, %v4717
    %v5530 = vpack.c.b16 %v4732, %v4725
    %v5531 = vpack.c.b16 %v4733, %v4726
    %v5532 = vpack.c.b16 %v4734, %v4727
    %v5533 = vpack.c.b16 %v4735, %v4728
    %v5534 = vpack.c.b16 %v4736, %v4729
    %v5535 = vpack.c.b16 %v4737, %v4730
    %v5536 = vpack.c.b16 %v4738, %v4731
    %v5537 = vpack.c.b16 %v4746, %v4739
    %v5538 = vpack.c.b16 %v4747, %v4740
    %v5539 = vpack.c.b16 %v4748, %v4741
    %v5540 = vpack.c.b16 %v4749, %v4742
    %v5541 = vpack.c.b16 %v4750, %v4743
    %v5542 = vpack.c.b16 %v4751, %v4744
    %v5543 = vpack.c.b16 %v4752, %v4745
    %v5544 = vpack.c.b16 %v4760, %v4753
    %v5545 = vpack.c.b16 %v4761, %v4754
    %v5546 = vpack.c.b16 %v4762, %v4755
    %v5547 = vpack.c.b16 %v4763, %v4756
    %v5548 = vpack.c.b16 %v4764, %v4757
    %v5549 = vpack.c.b16 %v4765, %v4758
    %v5550 = vpack.c.b16 %v4766, %v4759
    %v5551 = vpack.c.b16 %v4774, %v4767
    %v5552 = vpack.c.b16 %v4775, %v4768
    %v5553 = vpack.c.b16 %v4776, %v4769
    %v5554 = vpack.c.b16 %v4777, %v4770
    %v5555 = vpack.c.b16 %v4778, %v4771
    %v5556 = vpack.c.b16 %v4779, %v4772
    %v5557 = vpack.c.b16 %v4780, %v4773
    %v5558 = vpack.c.b16 %v4788, %v4781
    %v5559 = vpack.c.b16 %v4789, %v4782
    %v5560 = vpack.c.b16 %v4790, %v4783
    %v5561 = vpack.c.b16 %v4791, %v4784
    %v5562 = vpack.c.b16 %v4792, %v4785
    %v5563 = vpack.c.b16 %v4793, %v4786
    %v5564 = vpack.c.b16 %v4794, %v4787
    %v5565 = vpack.c.b16 %v4802, %v4795
    %v5566 = vpack.c.b16 %v4803, %v4796
    %v5567 = vpack.c.b16 %v4804, %v4797
    %v5568 = vpack.c.b16 %v4805, %v4798
    %v5569 = vpack.c.b16 %v4806, %v4799
    %v5570 = vpack.c.b16 %v4807, %v4800
    %v5571 = vpack.c.b16 %v4808, %v4801
    %v5572 = vpack.c.b16 %v4816, %v4809
    %v5573 = vpack.c.b16 %v4817, %v4810
    %v5574 = vpack.c.b16 %v4818, %v4811
    %v5575 = vpack.c.b16 %v4819, %v4812
    %v5576 = vpack.c.b16 %v4820, %v4813
    %v5577 = vpack.c.b16 %v4821, %v4814
    %v5578 = vpack.c.b16 %v4822, %v4815
    %v5579 = vpack.c.b16 %v4830, %v4823
    %v5580 = vpack.c.b16 %v4831, %v4824
    %v5581 = vpack.c.b16 %v4832, %v4825
    %v5582 = vpack.c.b16 %v4833, %v4826
    %v5583 = vpack.c.b16 %v4834, %v4827
    %v5584 = vpack.c.b16 %v4835, %v4828
    %v5585 = vpack.c.b16 %v4836, %v4829
    %v5586 = vpack.c.b16 %v4844, %v4837
    %v5587 = vpack.c.b16 %v4845, %v4838
    %v5588 = vpack.c.b16 %v4846, %v4839
    %v5589 = vpack.c.b16 %v4847, %v4840
    %v5590 = vpack.c.b16 %v4848, %v4841
    %v5591 = vpack.c.b16 %v4849, %v4842
    %v5592 = vpack.c.b16 %v4850, %v4843
    %v5593 = vpack.c.b16 %v4858, %v4851
    %v5594 = vpack.c.b16 %v4859, %v4852
    %v5595 = vpack.c.b16 %v4860, %v4853
    %v5596 = vpack.c.b16 %v4861, %v4854
    %v5597 = vpack.c.b16 %v4862, %v4855
    %v5598 = vpack.c.b16 %v4863, %v4856
    %v5599 = vpack.c.b16 %v4864, %v4857
    %v5600 = vpack.c.b16 %v4872, %v4865
    %v5601 = vpack.c.b16 %v4873, %v4866
    %v5602 = vpack.c.b16 %v4874, %v4867
    %v5603 = vpack.c.b16 %v4875, %v4868
    %v5604 = vpack.c.b16 %v4876, %v4869
    %v5605 = vpack.c.b16 %v4877, %v4870
    %v5606 = vpack.c.b16 %v4878, %v4871
    %v5607 = vpack.c.b16 %v4886, %v4879
    %v5608 = vpack.c.b16 %v4887, %v4880
    %v5609 = vpack.c.b16 %v4888, %v4881
    %v5610 = vpack.c.b16 %v4889, %v4882
    %v5611 = vpack.c.b16 %v4890, %v4883
    %v5612 = vpack.c.b16 %v4891, %v4884
    %v5613 = vpack.c.b16 %v4892, %v4885
    %v5614 = vpack.c.b16 %v4900, %v4893
    %v5615 = vpack.c.b16 %v4901, %v4894
    %v5616 = vpack.c.b16 %v4902, %v4895
    %v5617 = vpack.c.b16 %v4903, %v4896
    %v5618 = vpack.c.b16 %v4904, %v4897
    %v5619 = vpack.c.b16 %v4905, %v4898
    %v5620 = vpack.c.b16 %v4906, %v4899
    %v5621 = vpack.c.b16 %v4914, %v4907
    %v5622 = vpack.c.b16 %v4915, %v4908
    %v5623 = vpack.c.b16 %v4916, %v4909
    %v5624 = vpack.c.b16 %v4917, %v4910
    %v5625 = vpack.c.b16 %v4918, %v4911
    %v5626 = vpack.c.b16 %v4919, %v4912
    %v5627 = vpack.c.b16 %v4920, %v4913
    %v5628 = vpack.c.b16 %v4928, %v4921
    %v5629 = vpack.c.b16 %v4929, %v4922
    %v5630 = vpack.c.b16 %v4930, %v4923
    %v5631 = vpack.c.b16 %v4931, %v4924
    %v5632 = vpack.c.b16 %v4932, %v4925
    %v5633 = vpack.c.b16 %v4933, %v4926
    %v5634 = vpack.c.b16 %v4934, %v4927
    %v5635 = vpack.c.b16 %v4942, %v4935
    %v5636 = vpack.c.b16 %v4943, %v4936
    %v5637 = vpack.c.b16 %v4944, %v4937
    %v5638 = vpack.c.b16 %v4945, %v4938
    %v5639 = vpack.c.b16 %v4946, %v4939
    %v5640 = vpack.c.b16 %v4947, %v4940
    %v5641 = vpack.c.b16 %v4948, %v4941
    %v5642 = vpack.c.b16 %v4956, %v4949
    %v5643 = vpack.c.b16 %v4957, %v4950
    %v5644 = vpack.c.b16 %v4958, %v4951
    %v5645 = vpack.c.b16 %v4959, %v4952
    %v5646 = vpack.c.b16 %v4960, %v4953
    %v5647 = vpack.c.b16 %v4961, %v4954
    %v5648 = vpack.c.b16 %v4962, %v4955
    %v5649 = vpack.c.b16 %v4970, %v4963
    %v5650 = vpack.c.b16 %v4971, %v4964
    %v5651 = vpack.c.b16 %v4972, %v4965
    %v5652 = vpack.c.b16 %v4973, %v4966
    %v5653 = vpack.c.b16 %v4974, %v4967
    %v5654 = vpack.c.b16 %v4975, %v4968
    %v5655 = vpack.c.b16 %v4976, %v4969
    %v5656 = vpack.c.b16 %v4984, %v4977
    %v5657 = vpack.c.b16 %v4985, %v4978
    %v5658 = vpack.c.b16 %v4986, %v4979
    %v5659 = vpack.c.b16 %v4987, %v4980
    %v5660 = vpack.c.b16 %v4988, %v4981
    %v5661 = vpack.c.b16 %v4989, %v4982
    %v5662 = vpack.c.b16 %v4990, %v4983
    %v5663 = vpack.c.b16 %v4998, %v4991
    %v5664 = vpack.c.b16 %v4999, %v4992
    %v5665 = vpack.c.b16 %v5000, %v4993
    %v5666 = vpack.c.b16 %v5001, %v4994
    %v5667 = vpack.c.b16 %v5002, %v4995
    %v5668 = vpack.c.b16 %v5003, %v4996
    %v5669 = vpack.c.b16 %v5004, %v4997
    %v5670 = vpack.c.b16 %v5012, %v5005
    %v5671 = vpack.c.b16 %v5013, %v5006
    %v5672 = vpack.c.b16 %v5014, %v5007
    %v5673 = vpack.c.b16 %v5015, %v5008
    %v5674 = vpack.c.b16 %v5016, %v5009
    %v5675 = vpack.c.b16 %v5017, %v5010
    %v5676 = vpack.c.b16 %v5018, %v5011
    %v5677 = vpack.c.b16 %v5026, %v5019
    %v5678 = vpack.c.b16 %v5027, %v5020
    %v5679 = vpack.c.b16 %v5028, %v5021
    %v5680 = vpack.c.b16 %v5029, %v5022
    %v5681 = vpack.c.b16 %v5030, %v5023
    %v5682 = vpack.c.b16 %v5031, %v5024
    %v5683 = vpack.c.b16 %v5032, %v5025
    %v5684 = vpack.c.b16 %v5040, %v5033
    %v5685 = vpack.c.b16 %v5041, %v5034
    %v5686 = vpack.c.b16 %v5042, %v5035
    %v5687 = vpack.c.b16 %v5043, %v5036
    %v5688 = vpack.c.b16 %v5044, %v5037
    %v5689 = vpack.c.b16 %v5045, %v5038
    %v5690 = vpack.c.b16 %v5046, %v5039
    %v5691 = vpack.c.b16 %v5054, %v5047
    %v5692 = vpack.c.b16 %v5055, %v5048
    %v5693 = vpack.c.b16 %v5056, %v5049
    %v5694 = vpack.c.b16 %v5057, %v5050
    %v5695 = vpack.c.b16 %v5058, %v5051
    %v5696 = vpack.c.b16 %v5059, %v5052
    %v5697 = vpack.c.b16 %v5060, %v5053
    %v5698 = vpack.c.b16 %v5068, %v5061
    %v5699 = vpack.c.b16 %v5069, %v5062
    %v5700 = vpack.c.b16 %v5070, %v5063
    %v5701 = vpack.c.b16 %v5071, %v5064
    %v5702 = vpack.c.b16 %v5072, %v5065
    %v5703 = vpack.c.b16 %v5073, %v5066
    %v5704 = vpack.c.b16 %v5074, %v5067
    %v5705 = vpack.c.b16 %v5082, %v5075
    %v5706 = vpack.c.b16 %v5083, %v5076
    %v5707 = vpack.c.b16 %v5084, %v5077
    %v5708 = vpack.c.b16 %v5085, %v5078
    %v5709 = vpack.c.b16 %v5086, %v5079
    %v5710 = vpack.c.b16 %v5087, %v5080
    %v5711 = vpack.c.b16 %v5088, %v5081
    %v5712 = vpack.c.b16 %v5096, %v5089
    %v5713 = vpack.c.b16 %v5097, %v5090
    %v5714 = vpack.c.b16 %v5098, %v5091
    %v5715 = vpack.c.b16 %v5099, %v5092
    %v5716 = vpack.c.b16 %v5100, %v5093
    %v5717 = vpack.c.b16 %v5101, %v5094
    %v5718 = vpack.c.b16 %v5102, %v5095
    %v5719 = vpack.c.b16 %v5110, %v5103
    %v5720 = vpack.c.b16 %v5111, %v5104
    %v5721 = vpack.c.b16 %v5112, %v5105
    %v5722 = vpack.c.b16 %v5113, %v5106
    %v5723 = vpack.c.b16 %v5114, %v5107
    %v5724 = vpack.c.b16 %v5115, %v5108
    %v5725 = vpack.c.b16 %v5116, %v5109
    %v5726 = vpack.c.b16 %v5124, %v5117
    %v5727 = vpack.c.b16 %v5125, %v5118
    %v5728 = vpack.c.b16 %v5126, %v5119
    %v5729 = vpack.c.b16 %v5127, %v5120
    %v5730 = vpack.c.b16 %v5128, %v5121
    %v5731 = vpack.c.b16 %v5129, %v5122
    %v5732 = vpack.c.b16 %v5130, %v5123
    %v5733 = vpack.c.b16 %v5138, %v5131
    %v5734 = vpack.c.b16 %v5139, %v5132
    %v5735 = vpack.c.b16 %v5140, %v5133
    %v5736 = vpack.c.b16 %v5141, %v5134
    %v5737 = vpack.c.b16 %v5142, %v5135
    %v5738 = vpack.c.b16 %v5143, %v5136
    %v5739 = vpack.c.b16 %v5144, %v5137
    %v5740 = vpack.c.b16 %v5152, %v5145
    %v5741 = vpack.c.b16 %v5153, %v5146
    %v5742 = vpack.c.b16 %v5154, %v5147
    %v5743 = vpack.c.b16 %v5155, %v5148
    %v5744 = vpack.c.b16 %v5156, %v5149
    %v5745 = vpack.c.b16 %v5157, %v5150
    %v5746 = vpack.c.b16 %v5158, %v5151
    %v5747 = vpack.c.b16 %v5166, %v5159
    %v5748 = vpack.c.b16 %v5167, %v5160
    %v5749 = vpack.c.b16 %v5168, %v5161
    %v5750 = vpack.c.b16 %v5169, %v5162
    %v5751 = vpack.c.b16 %v5170, %v5163
    %v5752 = vpack.c.b16 %v5171, %v5164
    %v5753 = vpack.c.b16 %v5172, %v5165
    %v5754 = vpack.c.b16 %v5180, %v5173
    %v5755 = vpack.c.b16 %v5181, %v5174
    %v5756 = vpack.c.b16 %v5182, %v5175
    %v5757 = vpack.c.b16 %v5183, %v5176
    %v5758 = vpack.c.b16 %v5184, %v5177
    %v5759 = vpack.c.b16 %v5185, %v5178
    %v5760 = vpack.c.b16 %v5186, %v5179
    %v5761 = vpack.c.b16 %v5194, %v5187
    %v5762 = vpack.c.b16 %v5195, %v5188
    %v5763 = vpack.c.b16 %v5196, %v5189
    %v5764 = vpack.c.b16 %v5197, %v5190
    %v5765 = vpack.c.b16 %v5198, %v5191
    %v5766 = vpack.c.b16 %v5199, %v5192
    %v5767 = vpack.c.b16 %v5200, %v5193
    %v5768 = vpack.c.b16 %v5208, %v5201
    %v5769 = vpack.c.b16 %v5209, %v5202
    %v5770 = vpack.c.b16 %v5210, %v5203
    %v5771 = vpack.c.b16 %v5211, %v5204
    %v5772 = vpack.c.b16 %v5212, %v5205
    %v5773 = vpack.c.b16 %v5213, %v5206
    %v5774 = vpack.c.b16 %v5214, %v5207
    %v5775 = vpack.c.b16 %v5222, %v5215
    %v5776 = vpack.c.b16 %v5223, %v5216
    %v5777 = vpack.c.b16 %v5224, %v5217
    %v5778 = vpack.c.b16 %v5225, %v5218
    %v5779 = vpack.c.b16 %v5226, %v5219
    %v5780 = vpack.c.b16 %v5227, %v5220
    %v5781 = vpack.c.b16 %v5228, %v5221
    %v5782 = vpack.c.b16 %v5236, %v5229
    %v5783 = vpack.c.b16 %v5237, %v5230
    %v5784 = vpack.c.b16 %v5238, %v5231
    %v5785 = vpack.c.b16 %v5239, %v5232
    %v5786 = vpack.c.b16 %v5240, %v5233
    %v5787 = vpack.c.b16 %v5241, %v5234
    %v5788 = vpack.c.b16 %v5242, %v5235
    %v5789 = vpack.c.b16 %v5250, %v5243
    %v5790 = vpack.c.b16 %v5251, %v5244
    %v5791 = vpack.c.b16 %v5252, %v5245
    %v5792 = vpack.c.b16 %v5253, %v5246
    %v5793 = vpack.c.b16 %v5254, %v5247
    %v5794 = vpack.c.b16 %v5255, %v5248
    %v5795 = vpack.c.b16 %v5256, %v5249
    %v5796 = vpack.c.b16 %v5264, %v5257
    %v5797 = vpack.c.b16 %v5265, %v5258
    %v5798 = vpack.c.b16 %v5266, %v5259
    %v5799 = vpack.c.b16 %v5267, %v5260
    %v5800 = vpack.c.b16 %v5268, %v5261
    %v5801 = vpack.c.b16 %v5269, %v5262
    %v5802 = vpack.c.b16 %v5270, %v5263
    %v5803 = vpack.c.b16 %v5278, %v5271
    %v5804 = vpack.c.b16 %v5279, %v5272
    %v5805 = vpack.c.b16 %v5280, %v5273
    %v5806 = vpack.c.b16 %v5281, %v5274
    %v5807 = vpack.c.b16 %v5282, %v5275
    %v5808 = vpack.c.b16 %v5283, %v5276
    %v5809 = vpack.c.b16 %v5284, %v5277
    %v5810 = vpack.c.b16 %v5292, %v5285
    %v5811 = vpack.c.b16 %v5293, %v5286
    %v5812 = vpack.c.b16 %v5294, %v5287
    %v5813 = vpack.c.b16 %v5295, %v5288
    %v5814 = vpack.c.b16 %v5296, %v5289
    %v5815 = vpack.c.b16 %v5297, %v5290
    %v5816 = vpack.c.b16 %v5298, %v5291
    %v5817 = vpack.c.b16 %v5306, %v5299
    %v5818 = vpack.c.b16 %v5307, %v5300
    %v5819 = vpack.c.b16 %v5308, %v5301
    %v5820 = vpack.c.b16 %v5309, %v5302
    %v5821 = vpack.c.b16 %v5310, %v5303
    %v5822 = vpack.c.b16 %v5311, %v5304
    %v5823 = vpack.c.b16 %v5312, %v5305
    %v5824 = vpack.c.b16 %v5320, %v5313
    %v5825 = vpack.c.b16 %v5321, %v5314
    %v5826 = vpack.c.b16 %v5322, %v5315
    %v5827 = vpack.c.b16 %v5323, %v5316
    %v5828 = vpack.c.b16 %v5324, %v5317
    %v5829 = vpack.c.b16 %v5325, %v5318
    %v5830 = vpack.c.b16 %v5326, %v5319
    %v5831 = vpack.c.b16 %v5334, %v5327
    %v5832 = vpack.c.b16 %v5335, %v5328
    %v5833 = vpack.c.b16 %v5336, %v5329
    %v5834 = vpack.c.b16 %v5337, %v5330
    %v5835 = vpack.c.b16 %v5338, %v5331
    %v5836 = vpack.c.b16 %v5339, %v5332
    %v5837 = vpack.c.b16 %v5340, %v5333
    %v5838 = vpack.c.b16 %v5348, %v5341
    %v5839 = vpack.c.b16 %v5349, %v5342
    %v5840 = vpack.c.b16 %v5350, %v5343
    %v5841 = vpack.c.b16 %v5351, %v5344
    %v5842 = vpack.c.b16 %v5352, %v5345
    %v5843 = vpack.c.b16 %v5353, %v5346
    %v5844 = vpack.c.b16 %v5354, %v5347
    %v5845 = vpack.c.b16 %v5362, %v5355
    %v5846 = vpack.c.b16 %v5363, %v5356
    %v5847 = vpack.c.b16 %v5364, %v5357
    %v5848 = vpack.c.b16 %v5365, %v5358
    %v5849 = vpack.c.b16 %v5366, %v5359
    %v5850 = vpack.c.b16 %v5367, %v5360
    %v5851 = vpack.c.b16 %v5368, %v5361
    %v5852 = vpack.c.b16 %v5376, %v5369
    %v5853 = vpack.c.b16 %v5377, %v5370
    %v5854 = vpack.c.b16 %v5378, %v5371
    %v5855 = vpack.c.b16 %v5379, %v5372
    %v5856 = vpack.c.b16 %v5380, %v5373
    %v5857 = vpack.c.b16 %v5381, %v5374
    %v5858 = vpack.c.b16 %v5382, %v5375
    %v5859 = vpack.c.b16 %v5390, %v5383
    %v5860 = vpack.c.b16 %v5391, %v5384
    %v5861 = vpack.c.b16 %v5392, %v5385
    %v5862 = vpack.c.b16 %v5393, %v5386
    %v5863 = vpack.c.b16 %v5394, %v5387
    %v5864 = vpack.c.b16 %v5395, %v5388
    %v5865 = vpack.c.b16 %v5396, %v5389
    %v5866 = vpack.c.b16 %v5404, %v5397
    %v5867 = vpack.c.b16 %v5405, %v5398
    %v5868 = vpack.c.b16 %v5406, %v5399
    %v5869 = vpack.c.b16 %v5407, %v5400
    %v5870 = vpack.c.b16 %v5408, %v5401
    %v5871 = vpack.c.b16 %v5409, %v5402
    %v5872 = vpack.c.b16 %v5410, %v5403
    %v5873 = vpack.c.b16 %v5418, %v5411
    %v5874 = vpack.c.b16 %v5419, %v5412
    %v5875 = vpack.c.b16 %v5420, %v5413
    %v5876 = vpack.c.b16 %v5421, %v5414
    %v5877 = vpack.c.b16 %v5422, %v5415
    %v5878 = vpack.c.b16 %v5423, %v5416
    %v5879 = vpack.c.b16 %v5424, %v5417
    %v5880 = vpack.c.b16 %v5432, %v5425
    %v5881 = vpack.c.b16 %v5433, %v5426
    %v5882 = vpack.c.b16 %v5434, %v5427
    %v5883 = vpack.c.b16 %v5435, %v5428
    %v5884 = vpack.c.b16 %v5436, %v5429
    %v5885 = vpack.c.b16 %v5437, %v5430
    %v5886 = vpack.c.b16 %v5438, %v5431
    %6335 = vmatprep.subr.bf16.mxu0 %v5440
    %6336 = vmatpush1.bf16.msra.mxu0 %v5439
    %6337 = vmatprep.subr.bf16.mxu0 %v5447
    %6338 = vmatpush1.bf16.msra.mxu0 %v5446
    %6339 = vmatprep.subr.bf16.mxu0 %v5454
    %6340 = vmatpush1.bf16.msra.mxu0 %v5453
    %6341 = vmatprep.subr.bf16.mxu0 %v5461
    %6342 = vmatpush1.bf16.msra.mxu0 %v5460
    %6343 = vmatprep.subr.bf16.mxu0 %v5468
    %6344 = vmatpush1.bf16.msra.mxu0 %v5467
    %6345 = vmatprep.subr.bf16.mxu0 %v5475
    %6346 = vmatpush1.bf16.msra.mxu0 %v5474
    %6347 = vmatprep.subr.bf16.mxu0 %v5482
    %6348 = vmatpush1.bf16.msra.mxu0 %v5481
    %6349 = vmatprep.subr.bf16.mxu0 %v5489
    %6350 = vmatpush1.bf16.msra.mxu0 %v5488
    %6351 = vmatprep.subr.bf16.mxu0 %v5496
    %6352 = vmatpush1.bf16.msra.mxu0 %v5495
    %6353 = vmatprep.subr.bf16.mxu0 %v5503
    %6354 = vmatpush1.bf16.msra.mxu0 %v5502
    %6355 = vmatprep.subr.bf16.mxu0 %v5510
    %6356 = vmatpush1.bf16.msra.mxu0 %v5509
    %6357 = vmatprep.subr.bf16.mxu0 %v5517
    %6358 = vmatpush1.bf16.msra.mxu0 %v5516
    %6359 = vmatprep.subr.bf16.mxu0 %v5524
    %6360 = vmatpush1.bf16.msra.mxu0 %v5523
    %6361 = vmatprep.subr.bf16.mxu0 %v5531
    %6362 = vmatpush1.bf16.msra.mxu0 %v5530
    %6363 = vmatprep.subr.bf16.mxu0 %v5538
    %6364 = vmatpush1.bf16.msra.mxu0 %v5537
    %6365 = vmatprep.subr.bf16.mxu0 %v5545
    %6366 = vmatpush1.bf16.msra.mxu0 %v5544
    %6367 = vmatprep.mubr.bf16.mxu0 %v3475
    %6368 = vmatmul.mubr.bf16.gmra.mrb[0].mxu0 %v3474
    %v6369 = vpop.f32.mrb[0].mxu0
    %v6370 = vadd.f32 %v3999, %v6369
    %v6371 = vpop.f32.mrb[0].mxu0
    %v6372 = vadd.f32 %v4003, %v6371
    %v6373 = vpop.f32.mrb[0].mxu0
    %v6374 = vpop.f32.mrb[0].mxu0
    %6375 = vdwg.mxu0
    %6376 = vmatprep.subr.bf16.mxu0 %v5552
    %6377 = vmatpush1.bf16.msra.mxu0 %v5551
    %6378 = vmatprep.subr.bf16.mxu0 %v5559
    %6379 = vmatpush1.bf16.msra.mxu0 %v5558
    %6380 = vmatprep.subr.bf16.mxu0 %v5566
    %6381 = vmatpush1.bf16.msra.mxu0 %v5565
    %6382 = vmatprep.subr.bf16.mxu0 %v5573
    %6383 = vmatpush1.bf16.msra.mxu0 %v5572
    %6384 = vmatprep.subr.bf16.mxu0 %v5580
    %6385 = vmatpush1.bf16.msra.mxu0 %v5579
    %6386 = vmatprep.subr.bf16.mxu0 %v5587
    %6387 = vmatpush1.bf16.msra.mxu0 %v5586
    %6388 = vmatprep.subr.bf16.mxu0 %v5594
    %6389 = vmatpush1.bf16.msra.mxu0 %v5593
    %6390 = vmatprep.subr.bf16.mxu0 %v5601
    %6391 = vmatpush1.bf16.msra.mxu0 %v5600
    %6392 = vmatprep.subr.bf16.mxu0 %v5608
    %6393 = vmatpush1.bf16.msra.mxu0 %v5607
    %6394 = vmatprep.subr.bf16.mxu0 %v5615
    %6395 = vmatpush1.bf16.msra.mxu0 %v5614
    %6396 = vmatprep.subr.bf16.mxu0 %v5622
    %6397 = vmatpush1.bf16.msra.mxu0 %v5621
    %6398 = vmatprep.subr.bf16.mxu0 %v5629
    %6399 = vmatpush1.bf16.msra.mxu0 %v5628
    %6400 = vmatprep.subr.bf16.mxu0 %v5636
    %6401 = vmatpush1.bf16.msra.mxu0 %v5635
    %6402 = vmatprep.subr.bf16.mxu0 %v5643
    %6403 = vmatpush1.bf16.msra.mxu0 %v5642
    %6404 = vmatprep.subr.bf16.mxu0 %v5650
    %6405 = vmatpush1.bf16.msra.mxu0 %v5649
    %6406 = vmatprep.subr.bf16.mxu0 %v5657
    %6407 = vmatpush1.bf16.msra.mxu0 %v5656
    %6408 = vmatprep.mubr.bf16.mxu0 %v3477
    %6409 = vmatmul.mubr.bf16.gmra.mrb[0].mxu0 %v3476
    %v6410 = vpop.f32.mrb[0].mxu0
    %v6411 = vadd.f32 %v6370, %v6410
    %v6412 = vpop.f32.mrb[0].mxu0
    %v6413 = vadd.f32 %v6372, %v6412
    %v6414 = vpop.f32.mrb[0].mxu0
    %v6415 = vpop.f32.mrb[0].mxu0
    %6416 = vdwg.mxu0
    %6417 = vmatprep.subr.bf16.mxu0 %v5664
    %6418 = vmatpush1.bf16.msra.mxu0 %v5663
    %6419 = vmatprep.subr.bf16.mxu0 %v5671
    %6420 = vmatpush1.bf16.msra.mxu0 %v5670
    %6421 = vmatprep.subr.bf16.mxu0 %v5678
    %6422 = vmatpush1.bf16.msra.mxu0 %v5677
    %6423 = vmatprep.subr.bf16.mxu0 %v5685
    %6424 = vmatpush1.bf16.msra.mxu0 %v5684
    %6425 = vmatprep.subr.bf16.mxu0 %v5692
    %6426 = vmatpush1.bf16.msra.mxu0 %v5691
    %6427 = vmatprep.subr.bf16.mxu0 %v5699
    %6428 = vmatpush1.bf16.msra.mxu0 %v5698
    %6429 = vmatprep.subr.bf16.mxu0 %v5706
    %6430 = vmatpush1.bf16.msra.mxu0 %v5705
    %6431 = vmatprep.subr.bf16.mxu0 %v5713
    %6432 = vmatpush1.bf16.msra.mxu0 %v5712
    %6433 = vmatprep.subr.bf16.mxu0 %v5720
    %6434 = vmatpush1.bf16.msra.mxu0 %v5719
    %6435 = vmatprep.subr.bf16.mxu0 %v5727
    %6436 = vmatpush1.bf16.msra.mxu0 %v5726
    %6437 = vmatprep.subr.bf16.mxu0 %v5734
    %6438 = vmatpush1.bf16.msra.mxu0 %v5733
    %6439 = vmatprep.subr.bf16.mxu0 %v5741
    %6440 = vmatpush1.bf16.msra.mxu0 %v5740
    %6441 = vmatprep.subr.bf16.mxu0 %v5748
    %6442 = vmatpush1.bf16.msra.mxu0 %v5747
    %6443 = vmatprep.subr.bf16.mxu0 %v5755
    %6444 = vmatpush1.bf16.msra.mxu0 %v5754
    %6445 = vmatprep.subr.bf16.mxu0 %v5762
    %6446 = vmatpush1.bf16.msra.mxu0 %v5761
    %6447 = vmatprep.subr.bf16.mxu0 %v5769
    %6448 = vmatpush1.bf16.msra.mxu0 %v5768
    %6449 = vmatprep.mubr.bf16.mxu0 %v3479
    %6450 = vmatmul.mubr.bf16.gmra.mrb[0].mxu0 %v3478
    %v6451 = vpop.f32.mrb[0].mxu0
    %v6452 = vadd.f32 %v6411, %v6451
    %v6453 = vpop.f32.mrb[0].mxu0
    %v6454 = vadd.f32 %v6413, %v6453
    %v6455 = vpop.f32.mrb[0].mxu0
    %v6456 = vpop.f32.mrb[0].mxu0
    %6457 = vdwg.mxu0
    %6458 = vmatprep.subr.bf16.mxu0 %v5776
    %6459 = vmatpush1.bf16.msra.mxu0 %v5775
    %6460 = vmatprep.subr.bf16.mxu0 %v5783
    %6461 = vmatpush1.bf16.msra.mxu0 %v5782
    %6462 = vmatprep.subr.bf16.mxu0 %v5790
    %6463 = vmatpush1.bf16.msra.mxu0 %v5789
    %6464 = vmatprep.subr.bf16.mxu0 %v5797
    %6465 = vmatpush1.bf16.msra.mxu0 %v5796
    %6466 = vmatprep.subr.bf16.mxu0 %v5804
    %6467 = vmatpush1.bf16.msra.mxu0 %v5803
    %6468 = vmatprep.subr.bf16.mxu0 %v5811
    %6469 = vmatpush1.bf16.msra.mxu0 %v5810
    %6470 = vmatprep.subr.bf16.mxu0 %v5818
    %6471 = vmatpush1.bf16.msra.mxu0 %v5817
    %6472 = vmatprep.subr.bf16.mxu0 %v5825
    %6473 = vmatpush1.bf16.msra.mxu0 %v5824
    %6474 = vmatprep.subr.bf16.mxu0 %v5832
    %6475 = vmatpush1.bf16.msra.mxu0 %v5831
    %6476 = vmatprep.subr.bf16.mxu0 %v5839
    %6477 = vmatpush1.bf16.msra.mxu0 %v5838
    %6478 = vmatprep.subr.bf16.mxu0 %v5846
    %6479 = vmatpush1.bf16.msra.mxu0 %v5845
    %6480 = vmatprep.subr.bf16.mxu0 %v5853
    %6481 = vmatpush1.bf16.msra.mxu0 %v5852
    %6482 = vmatprep.subr.bf16.mxu0 %v5860
    %6483 = vmatpush1.bf16.msra.mxu0 %v5859
    %6484 = vmatprep.subr.bf16.mxu0 %v5867
    %6485 = vmatpush1.bf16.msra.mxu0 %v5866
    %6486 = vmatprep.subr.bf16.mxu0 %v5874
    %6487 = vmatpush1.bf16.msra.mxu0 %v5873
    %6488 = vmatprep.subr.bf16.mxu0 %v5881
    %6489 = vmatpush1.bf16.msra.mxu0 %v5880
    %6490 = vmatprep.mubr.bf16.mxu0 %v3481
    %6491 = vmatmul.mubr.bf16.gmra.mrb[0].mxu0 %v3480
    %v6492 = vpop.f32.mrb[0].mxu0
    %v6493 = vadd.f32 %v6452, %v6492
    %v6494 = vpop.f32.mrb[0].mxu0
    %v6495 = vadd.f32 %v6454, %v6494
    %v6496 = vpop.f32.mrb[0].mxu0
    %v6497 = vpop.f32.mrb[0].mxu0
    %6498 = vdwg.mxu0
    %6499 = vmatprep.subr.bf16.mxu0 %v5442
    %6500 = vmatpush1.bf16.msra.mxu0 %v5441
    %6501 = vmatprep.subr.bf16.mxu0 %v5449
    %6502 = vmatpush1.bf16.msra.mxu0 %v5448
    %6503 = vmatprep.subr.bf16.mxu0 %v5456
    %6504 = vmatpush1.bf16.msra.mxu0 %v5455
    %6505 = vmatprep.subr.bf16.mxu0 %v5463
    %6506 = vmatpush1.bf16.msra.mxu0 %v5462
    %6507 = vmatprep.subr.bf16.mxu0 %v5470
    %6508 = vmatpush1.bf16.msra.mxu0 %v5469
    %6509 = vmatprep.subr.bf16.mxu0 %v5477
    %6510 = vmatpush1.bf16.msra.mxu0 %v5476
    %6511 = vmatprep.subr.bf16.mxu0 %v5484
    %6512 = vmatpush1.bf16.msra.mxu0 %v5483
    %6513 = vmatprep.subr.bf16.mxu0 %v5491
    %6514 = vmatpush1.bf16.msra.mxu0 %v5490
    %6515 = vmatprep.subr.bf16.mxu0 %v5498
    %6516 = vmatpush1.bf16.msra.mxu0 %v5497
    %6517 = vmatprep.subr.bf16.mxu0 %v5505
    %6518 = vmatpush1.bf16.msra.mxu0 %v5504
    %6519 = vmatprep.subr.bf16.mxu0 %v5512
    %6520 = vmatpush1.bf16.msra.mxu0 %v5511
    %6521 = vmatprep.subr.bf16.mxu0 %v5519
    %6522 = vmatpush1.bf16.msra.mxu0 %v5518
    %6523 = vmatprep.subr.bf16.mxu0 %v5526
    %6524 = vmatpush1.bf16.msra.mxu0 %v5525
    %6525 = vmatprep.subr.bf16.mxu0 %v5533
    %6526 = vmatpush1.bf16.msra.mxu0 %v5532
    %6527 = vmatprep.subr.bf16.mxu0 %v5540
    %6528 = vmatpush1.bf16.msra.mxu0 %v5539
    %6529 = vmatprep.subr.bf16.mxu0 %v5547
    %6530 = vmatpush1.bf16.msra.mxu0 %v5546
    %6531 = vmatprep.mubr.bf16.mxu0 %v3475
    %6532 = vmatmul.mubr.bf16.gmra.mrb[0].mxu0 %v3474
    %v6533 = vpop.f32.mrb[0].mxu0
    %v6534 = vadd.f32 %v4007, %v6533
    %v6535 = vpop.f32.mrb[0].mxu0
    %v6536 = vadd.f32 %v4011, %v6535
    %v6537 = vpop.f32.mrb[0].mxu0
    %v6538 = vpop.f32.mrb[0].mxu0
    %6539 = vdwg.mxu0
    %6540 = vmatprep.subr.bf16.mxu0 %v5554
    %6541 = vmatpush1.bf16.msra.mxu0 %v5553
    %6542 = vmatprep.subr.bf16.mxu0 %v5561
    %6543 = vmatpush1.bf16.msra.mxu0 %v5560
    %6544 = vmatprep.subr.bf16.mxu0 %v5568
    %6545 = vmatpush1.bf16.msra.mxu0 %v5567
    %6546 = vmatprep.subr.bf16.mxu0 %v5575
    %6547 = vmatpush1.bf16.msra.mxu0 %v5574
    %6548 = vmatprep.subr.bf16.mxu0 %v5582
    %6549 = vmatpush1.bf16.msra.mxu0 %v5581
    %6550 = vmatprep.subr.bf16.mxu0 %v5589
    %6551 = vmatpush1.bf16.msra.mxu0 %v5588
    %6552 = vmatprep.subr.bf16.mxu0 %v5596
    %6553 = vmatpush1.bf16.msra.mxu0 %v5595
    %6554 = vmatprep.subr.bf16.mxu0 %v5603
    %6555 = vmatpush1.bf16.msra.mxu0 %v5602
    %6556 = vmatprep.subr.bf16.mxu0 %v5610
    %6557 = vmatpush1.bf16.msra.mxu0 %v5609
    %6558 = vmatprep.subr.bf16.mxu0 %v5617
    %6559 = vmatpush1.bf16.msra.mxu0 %v5616
    %6560 = vmatprep.subr.bf16.mxu0 %v5624
    %6561 = vmatpush1.bf16.msra.mxu0 %v5623
    %6562 = vmatprep.subr.bf16.mxu0 %v5631
    %6563 = vmatpush1.bf16.msra.mxu0 %v5630
    %6564 = vmatprep.subr.bf16.mxu0 %v5638
    %6565 = vmatpush1.bf16.msra.mxu0 %v5637
    %6566 = vmatprep.subr.bf16.mxu0 %v5645
    %6567 = vmatpush1.bf16.msra.mxu0 %v5644
    %6568 = vmatprep.subr.bf16.mxu0 %v5652
    %6569 = vmatpush1.bf16.msra.mxu0 %v5651
    %6570 = vmatprep.subr.bf16.mxu0 %v5659
    %6571 = vmatpush1.bf16.msra.mxu0 %v5658
    %6572 = vmatprep.mubr.bf16.mxu0 %v3477
    %6573 = vmatmul.mubr.bf16.gmra.mrb[0].mxu0 %v3476
    %v6574 = vpop.f32.mrb[0].mxu0
    %v6575 = vadd.f32 %v6534, %v6574
    %v6576 = vpop.f32.mrb[0].mxu0
    %v6577 = vadd.f32 %v6536, %v6576
    %v6578 = vpop.f32.mrb[0].mxu0
    %v6579 = vpop.f32.mrb[0].mxu0
    %6580 = vdwg.mxu0
    %6581 = vmatprep.subr.bf16.mxu0 %v5666
    %6582 = vmatpush1.bf16.msra.mxu0 %v5665
    %6583 = vmatprep.subr.bf16.mxu0 %v5673
    %6584 = vmatpush1.bf16.msra.mxu0 %v5672
    %6585 = vmatprep.subr.bf16.mxu0 %v5680
    %6586 = vmatpush1.bf16.msra.mxu0 %v5679
    %6587 = vmatprep.subr.bf16.mxu0 %v5687
    %6588 = vmatpush1.bf16.msra.mxu0 %v5686
    %6589 = vmatprep.subr.bf16.mxu0 %v5694
    %6590 = vmatpush1.bf16.msra.mxu0 %v5693
    %6591 = vmatprep.subr.bf16.mxu0 %v5701
    %6592 = vmatpush1.bf16.msra.mxu0 %v5700
    %6593 = vmatprep.subr.bf16.mxu0 %v5708
    %6594 = vmatpush1.bf16.msra.mxu0 %v5707
    %6595 = vmatprep.subr.bf16.mxu0 %v5715
    %6596 = vmatpush1.bf16.msra.mxu0 %v5714
    %6597 = vmatprep.subr.bf16.mxu0 %v5722
    %6598 = vmatpush1.bf16.msra.mxu0 %v5721
    %6599 = vmatprep.subr.bf16.mxu0 %v5729
    %6600 = vmatpush1.bf16.msra.mxu0 %v5728
    %6601 = vmatprep.subr.bf16.mxu0 %v5736
    %6602 = vmatpush1.bf16.msra.mxu0 %v5735
    %6603 = vmatprep.subr.bf16.mxu0 %v5743
    %6604 = vmatpush1.bf16.msra.mxu0 %v5742
    %6605 = vmatprep.subr.bf16.mxu0 %v5750
    %6606 = vmatpush1.bf16.msra.mxu0 %v5749
    %6607 = vmatprep.subr.bf16.mxu0 %v5757
    %6608 = vmatpush1.bf16.msra.mxu0 %v5756
    %6609 = vmatprep.subr.bf16.mxu0 %v5764
    %6610 = vmatpush1.bf16.msra.mxu0 %v5763
    %6611 = vmatprep.subr.bf16.mxu0 %v5771
    %6612 = vmatpush1.bf16.msra.mxu0 %v5770
    %6613 = vmatprep.mubr.bf16.mxu0 %v3479
    %6614 = vmatmul.mubr.bf16.gmra.mrb[0].mxu0 %v3478
    %v6615 = vpop.f32.mrb[0].mxu0
    %v6616 = vadd.f32 %v6575, %v6615
    %v6617 = vpop.f32.mrb[0].mxu0
    %v6618 = vadd.f32 %v6577, %v6617
    %v6619 = vpop.f32.mrb[0].mxu0
    %v6620 = vpop.f32.mrb[0].mxu0
    %6621 = vdwg.mxu0
    %6622 = vmatprep.subr.bf16.mxu0 %v5778
    %6623 = vmatpush1.bf16.msra.mxu0 %v5777
    %6624 = vmatprep.subr.bf16.mxu0 %v5785
    %6625 = vmatpush1.bf16.msra.mxu0 %v5784
    %6626 = vmatprep.subr.bf16.mxu0 %v5792
    %6627 = vmatpush1.bf16.msra.mxu0 %v5791
    %6628 = vmatprep.subr.bf16.mxu0 %v5799
    %6629 = vmatpush1.bf16.msra.mxu0 %v5798
    %6630 = vmatprep.subr.bf16.mxu0 %v5806
    %6631 = vmatpush1.bf16.msra.mxu0 %v5805
    %6632 = vmatprep.subr.bf16.mxu0 %v5813
    %6633 = vmatpush1.bf16.msra.mxu0 %v5812
    %6634 = vmatprep.subr.bf16.mxu0 %v5820
    %6635 = vmatpush1.bf16.msra.mxu0 %v5819
    %6636 = vmatprep.subr.bf16.mxu0 %v5827
    %6637 = vmatpush1.bf16.msra.mxu0 %v5826
    %6638 = vmatprep.subr.bf16.mxu0 %v5834
    %6639 = vmatpush1.bf16.msra.mxu0 %v5833
    %6640 = vmatprep.subr.bf16.mxu0 %v5841
    %6641 = vmatpush1.bf16.msra.mxu0 %v5840
    %6642 = vmatprep.subr.bf16.mxu0 %v5848
    %6643 = vmatpush1.bf16.msra.mxu0 %v5847
    %6644 = vmatprep.subr.bf16.mxu0 %v5855
    %6645 = vmatpush1.bf16.msra.mxu0 %v5854
    %6646 = vmatprep.subr.bf16.mxu0 %v5862
    %6647 = vmatpush1.bf16.msra.mxu0 %v5861
    %6648 = vmatprep.subr.bf16.mxu0 %v5869
    %6649 = vmatpush1.bf16.msra.mxu0 %v5868
    %6650 = vmatprep.subr.bf16.mxu0 %v5876
    %6651 = vmatpush1.bf16.msra.mxu0 %v5875
    %6652 = vmatprep.subr.bf16.mxu0 %v5883
    %6653 = vmatpush1.bf16.msra.mxu0 %v5882
    %6654 = vmatprep.mubr.bf16.mxu0 %v3481
    %6655 = vmatmul.mubr.bf16.gmra.mrb[0].mxu0 %v3480
    %v6656 = vpop.f32.mrb[0].mxu0
    %v6657 = vadd.f32 %v6616, %v6656
    %v6658 = vpop.f32.mrb[0].mxu0
    %v6659 = vadd.f32 %v6618, %v6658
    %v6660 = vpop.f32.mrb[0].mxu0
    %v6661 = vpop.f32.mrb[0].mxu0
    %6662 = vdwg.mxu0
    %6663 = vmatprep.subr.bf16.mxu0 %v5444
    %6664 = vmatpush1.bf16.msra.mxu0 %v5443
    %6665 = vmatprep.subr.bf16.mxu0 %v5451
    %6666 = vmatpush1.bf16.msra.mxu0 %v5450
    %6667 = vmatprep.subr.bf16.mxu0 %v5458
    %6668 = vmatpush1.bf16.msra.mxu0 %v5457
    %6669 = vmatprep.subr.bf16.mxu0 %v5465
    %6670 = vmatpush1.bf16.msra.mxu0 %v5464
    %6671 = vmatprep.subr.bf16.mxu0 %v5472
    %6672 = vmatpush1.bf16.msra.mxu0 %v5471
    %6673 = vmatprep.subr.bf16.mxu0 %v5479
    %6674 = vmatpush1.bf16.msra.mxu0 %v5478
    %6675 = vmatprep.subr.bf16.mxu0 %v5486
    %6676 = vmatpush1.bf16.msra.mxu0 %v5485
    %6677 = vmatprep.subr.bf16.mxu0 %v5493
    %6678 = vmatpush1.bf16.msra.mxu0 %v5492
    %6679 = vmatprep.subr.bf16.mxu0 %v5500
    %6680 = vmatpush1.bf16.msra.mxu0 %v5499
    %6681 = vmatprep.subr.bf16.mxu0 %v5507
    %6682 = vmatpush1.bf16.msra.mxu0 %v5506
    %6683 = vmatprep.subr.bf16.mxu0 %v5514
    %6684 = vmatpush1.bf16.msra.mxu0 %v5513
    %6685 = vmatprep.subr.bf16.mxu0 %v5521
    %6686 = vmatpush1.bf16.msra.mxu0 %v5520
    %6687 = vmatprep.subr.bf16.mxu0 %v5528
    %6688 = vmatpush1.bf16.msra.mxu0 %v5527
    %6689 = vmatprep.subr.bf16.mxu0 %v5535
    %6690 = vmatpush1.bf16.msra.mxu0 %v5534
    %6691 = vmatprep.subr.bf16.mxu0 %v5542
    %6692 = vmatpush1.bf16.msra.mxu0 %v5541
    %6693 = vmatprep.subr.bf16.mxu0 %v5549
    %6694 = vmatpush1.bf16.msra.mxu0 %v5548
    %6695 = vmatprep.mubr.bf16.mxu0 %v3475
    %6696 = vmatmul.mubr.bf16.gmra.mrb[0].mxu0 %v3474
    %v6697 = vpop.f32.mrb[0].mxu0
    %v6698 = vadd.f32 %v4015, %v6697
    %v6699 = vpop.f32.mrb[0].mxu0
    %v6700 = vadd.f32 %v4019, %v6699
    %v6701 = vpop.f32.mrb[0].mxu0
    %v6702 = vpop.f32.mrb[0].mxu0
    %6703 = vdwg.mxu0
    %6704 = vmatprep.subr.bf16.mxu0 %v5556
    %6705 = vmatpush1.bf16.msra.mxu0 %v5555
    %6706 = vmatprep.subr.bf16.mxu0 %v5563
    %6707 = vmatpush1.bf16.msra.mxu0 %v5562
    %6708 = vmatprep.subr.bf16.mxu0 %v5570
    %6709 = vmatpush1.bf16.msra.mxu0 %v5569
    %6710 = vmatprep.subr.bf16.mxu0 %v5577
    %6711 = vmatpush1.bf16.msra.mxu0 %v5576
    %6712 = vmatprep.subr.bf16.mxu0 %v5584
    %6713 = vmatpush1.bf16.msra.mxu0 %v5583
    %6714 = vmatprep.subr.bf16.mxu0 %v5591
    %6715 = vmatpush1.bf16.msra.mxu0 %v5590
    %6716 = vmatprep.subr.bf16.mxu0 %v5598
    %6717 = vmatpush1.bf16.msra.mxu0 %v5597
    %6718 = vmatprep.subr.bf16.mxu0 %v5605
    %6719 = vmatpush1.bf16.msra.mxu0 %v5604
    %6720 = vmatprep.subr.bf16.mxu0 %v5612
    %6721 = vmatpush1.bf16.msra.mxu0 %v5611
    %6722 = vmatprep.subr.bf16.mxu0 %v5619
    %6723 = vmatpush1.bf16.msra.mxu0 %v5618
    %6724 = vmatprep.subr.bf16.mxu0 %v5626
    %6725 = vmatpush1.bf16.msra.mxu0 %v5625
    %6726 = vmatprep.subr.bf16.mxu0 %v5633
    %6727 = vmatpush1.bf16.msra.mxu0 %v5632
    %6728 = vmatprep.subr.bf16.mxu0 %v5640
    %6729 = vmatpush1.bf16.msra.mxu0 %v5639
    %6730 = vmatprep.subr.bf16.mxu0 %v5647
    %6731 = vmatpush1.bf16.msra.mxu0 %v5646
    %6732 = vmatprep.subr.bf16.mxu0 %v5654
    %6733 = vmatpush1.bf16.msra.mxu0 %v5653
    %6734 = vmatprep.subr.bf16.mxu0 %v5661
    %6735 = vmatpush1.bf16.msra.mxu0 %v5660
    %6736 = vmatprep.mubr.bf16.mxu0 %v3477
    %6737 = vmatmul.mubr.bf16.gmra.mrb[0].mxu0 %v3476
    %v6738 = vpop.f32.mrb[0].mxu0
    %v6739 = vadd.f32 %v6698, %v6738
    %v6740 = vpop.f32.mrb[0].mxu0
    %v6741 = vadd.f32 %v6700, %v6740
    %v6742 = vpop.f32.mrb[0].mxu0
    %v6743 = vpop.f32.mrb[0].mxu0
    %6744 = vdwg.mxu0
    %6745 = vmatprep.subr.bf16.mxu0 %v5668
    %6746 = vmatpush1.bf16.msra.mxu0 %v5667
    %6747 = vmatprep.subr.bf16.mxu0 %v5675
    %6748 = vmatpush1.bf16.msra.mxu0 %v5674
    %6749 = vmatprep.subr.bf16.mxu0 %v5682
    %6750 = vmatpush1.bf16.msra.mxu0 %v5681
    %6751 = vmatprep.subr.bf16.mxu0 %v5689
    %6752 = vmatpush1.bf16.msra.mxu0 %v5688
    %6753 = vmatprep.subr.bf16.mxu0 %v5696
    %6754 = vmatpush1.bf16.msra.mxu0 %v5695
    %6755 = vmatprep.subr.bf16.mxu0 %v5703
    %6756 = vmatpush1.bf16.msra.mxu0 %v5702
    %6757 = vmatprep.subr.bf16.mxu0 %v5710
    %6758 = vmatpush1.bf16.msra.mxu0 %v5709
    %6759 = vmatprep.subr.bf16.mxu0 %v5717
    %6760 = vmatpush1.bf16.msra.mxu0 %v5716
    %6761 = vmatprep.subr.bf16.mxu0 %v5724
    %6762 = vmatpush1.bf16.msra.mxu0 %v5723
    %6763 = vmatprep.subr.bf16.mxu0 %v5731
    %6764 = vmatpush1.bf16.msra.mxu0 %v5730
    %6765 = vmatprep.subr.bf16.mxu0 %v5738
    %6766 = vmatpush1.bf16.msra.mxu0 %v5737
    %6767 = vmatprep.subr.bf16.mxu0 %v5745
    %6768 = vmatpush1.bf16.msra.mxu0 %v5744
    %6769 = vmatprep.subr.bf16.mxu0 %v5752
    %6770 = vmatpush1.bf16.msra.mxu0 %v5751
    %6771 = vmatprep.subr.bf16.mxu0 %v5759
    %6772 = vmatpush1.bf16.msra.mxu0 %v5758
    %6773 = vmatprep.subr.bf16.mxu0 %v5766
    %6774 = vmatpush1.bf16.msra.mxu0 %v5765
    %6775 = vmatprep.subr.bf16.mxu0 %v5773
    %6776 = vmatpush1.bf16.msra.mxu0 %v5772
    %6777 = vmatprep.mubr.bf16.mxu0 %v3479
    %6778 = vmatmul.mubr.bf16.gmra.mrb[0].mxu0 %v3478
    %v6779 = vpop.f32.mrb[0].mxu0
    %v6780 = vadd.f32 %v6739, %v6779
    %v6781 = vpop.f32.mrb[0].mxu0
    %v6782 = vadd.f32 %v6741, %v6781
    %v6783 = vpop.f32.mrb[0].mxu0
    %v6784 = vpop.f32.mrb[0].mxu0
    %6785 = vdwg.mxu0
    %6786 = vmatprep.subr.bf16.mxu0 %v5780
    %6787 = vmatpush1.bf16.msra.mxu0 %v5779
    %6788 = vmatprep.subr.bf16.mxu0 %v5787
    %6789 = vmatpush1.bf16.msra.mxu0 %v5786
    %6790 = vmatprep.subr.bf16.mxu0 %v5794
    %6791 = vmatpush1.bf16.msra.mxu0 %v5793
    %6792 = vmatprep.subr.bf16.mxu0 %v5801
    %6793 = vmatpush1.bf16.msra.mxu0 %v5800
    %6794 = vmatprep.subr.bf16.mxu0 %v5808
    %6795 = vmatpush1.bf16.msra.mxu0 %v5807
    %6796 = vmatprep.subr.bf16.mxu0 %v5815
    %6797 = vmatpush1.bf16.msra.mxu0 %v5814
    %6798 = vmatprep.subr.bf16.mxu0 %v5822
    %6799 = vmatpush1.bf16.msra.mxu0 %v5821
    %6800 = vmatprep.subr.bf16.mxu0 %v5829
    %6801 = vmatpush1.bf16.msra.mxu0 %v5828
    %6802 = vmatprep.subr.bf16.mxu0 %v5836
    %6803 = vmatpush1.bf16.msra.mxu0 %v5835
    %6804 = vmatprep.subr.bf16.mxu0 %v5843
    %6805 = vmatpush1.bf16.msra.mxu0 %v5842
    %6806 = vmatprep.subr.bf16.mxu0 %v5850
    %6807 = vmatpush1.bf16.msra.mxu0 %v5849
    %6808 = vmatprep.subr.bf16.mxu0 %v5857
    %6809 = vmatpush1.bf16.msra.mxu0 %v5856
    %6810 = vmatprep.subr.bf16.mxu0 %v5864
    %6811 = vmatpush1.bf16.msra.mxu0 %v5863
    %6812 = vmatprep.subr.bf16.mxu0 %v5871
    %6813 = vmatpush1.bf16.msra.mxu0 %v5870
    %6814 = vmatprep.subr.bf16.mxu0 %v5878
    %6815 = vmatpush1.bf16.msra.mxu0 %v5877
    %6816 = vmatprep.subr.bf16.mxu0 %v5885
    %6817 = vmatpush1.bf16.msra.mxu0 %v5884
    %6818 = vmatprep.mubr.bf16.mxu0 %v3481
    %6819 = vmatmul.mubr.bf16.gmra.mrb[0].mxu0 %v3480
    %v6820 = vpop.f32.mrb[0].mxu0
    %v6821 = vadd.f32 %v6780, %v6820
    %v6822 = vpop.f32.mrb[0].mxu0
    %v6823 = vadd.f32 %v6782, %v6822
    %v6824 = vpop.f32.mrb[0].mxu0
    %v6825 = vpop.f32.mrb[0].mxu0
    %6826 = vdwg.mxu0
    %6827 = vmatprep.subr.bf16.mxu0 0
    %6828 = vmatpush1.bf16.msra.mxu0 %v5445
    %6829 = vmatprep.subr.bf16.mxu0 0
    %6830 = vmatpush1.bf16.msra.mxu0 %v5452
    %6831 = vmatprep.subr.bf16.mxu0 0
    %6832 = vmatpush1.bf16.msra.mxu0 %v5459
    %6833 = vmatprep.subr.bf16.mxu0 0
    %6834 = vmatpush1.bf16.msra.mxu0 %v5466
    %6835 = vmatprep.subr.bf16.mxu0 0
    %6836 = vmatpush1.bf16.msra.mxu0 %v5473
    %6837 = vmatprep.subr.bf16.mxu0 0
    %6838 = vmatpush1.bf16.msra.mxu0 %v5480
    %6839 = vmatprep.subr.bf16.mxu0 0
    %6840 = vmatpush1.bf16.msra.mxu0 %v5487
    %6841 = vmatprep.subr.bf16.mxu0 0
    %6842 = vmatpush1.bf16.msra.mxu0 %v5494
    %6843 = vmatprep.subr.bf16.mxu0 0
    %6844 = vmatpush1.bf16.msra.mxu0 %v5501
    %6845 = vmatprep.subr.bf16.mxu0 0
    %6846 = vmatpush1.bf16.msra.mxu0 %v5508
    %6847 = vmatprep.subr.bf16.mxu0 0
    %6848 = vmatpush1.bf16.msra.mxu0 %v5515
    %6849 = vmatprep.subr.bf16.mxu0 0
    %6850 = vmatpush1.bf16.msra.mxu0 %v5522
    %6851 = vmatprep.subr.bf16.mxu0 0
    %6852 = vmatpush1.bf16.msra.mxu0 %v5529
    %6853 = vmatprep.subr.bf16.mxu0 0
    %6854 = vmatpush1.bf16.msra.mxu0 %v5536
    %6855 = vmatprep.subr.bf16.mxu0 0
    %6856 = vmatpush1.bf16.msra.mxu0 %v5543
    %6857 = vmatprep.subr.bf16.mxu0 0
    %6858 = vmatpush1.bf16.msra.mxu0 %v5550
    %6859 = vmatprep.mubr.bf16.mxu0 %v3475
    %6860 = vmatmul.mubr.bf16.gmra.mrb[0].mxu0 %v3474
    %v6861 = vpop.f32.mrb[0].mxu0
    %v6862 = vadd.f32 %v4023, %v6861
    %v6863 = vpop.f32.mrb[0].mxu0
    %v6864 = vpop.f32.mrb[0].mxu0
    %v6865 = vpop.f32.mrb[0].mxu0
    %6866 = vdwg.mxu0
    %6867 = vmatprep.subr.bf16.mxu0 0
    %6868 = vmatpush1.bf16.msra.mxu0 %v5557
    %6869 = vmatprep.subr.bf16.mxu0 0
    %6870 = vmatpush1.bf16.msra.mxu0 %v5564
    %6871 = vmatprep.subr.bf16.mxu0 0
    %6872 = vmatpush1.bf16.msra.mxu0 %v5571
    %6873 = vmatprep.subr.bf16.mxu0 0
    %6874 = vmatpush1.bf16.msra.mxu0 %v5578
    %6875 = vmatprep.subr.bf16.mxu0 0
    %6876 = vmatpush1.bf16.msra.mxu0 %v5585
    %6877 = vmatprep.subr.bf16.mxu0 0
    %6878 = vmatpush1.bf16.msra.mxu0 %v5592
    %6879 = vmatprep.subr.bf16.mxu0 0
    %6880 = vmatpush1.bf16.msra.mxu0 %v5599
    %6881 = vmatprep.subr.bf16.mxu0 0
    %6882 = vmatpush1.bf16.msra.mxu0 %v5606
    %6883 = vmatprep.subr.bf16.mxu0 0
    %6884 = vmatpush1.bf16.msra.mxu0 %v5613
    %6885 = vmatprep.subr.bf16.mxu0 0
    %6886 = vmatpush1.bf16.msra.mxu0 %v5620
    %6887 = vmatprep.subr.bf16.mxu0 0
    %6888 = vmatpush1.bf16.msra.mxu0 %v5627
    %6889 = vmatprep.subr.bf16.mxu0 0
    %6890 = vmatpush1.bf16.msra.mxu0 %v5634
    %6891 = vmatprep.subr.bf16.mxu0 0
    %6892 = vmatpush1.bf16.msra.mxu0 %v5641
    %6893 = vmatprep.subr.bf16.mxu0 0
    %6894 = vmatpush1.bf16.msra.mxu0 %v5648
    %6895 = vmatprep.subr.bf16.mxu0 0
    %6896 = vmatpush1.bf16.msra.mxu0 %v5655
    %6897 = vmatprep.subr.bf16.mxu0 0
    %6898 = vmatpush1.bf16.msra.mxu0 %v5662
    %6899 = vmatprep.mubr.bf16.mxu0 %v3477
    %6900 = vmatmul.mubr.bf16.gmra.mrb[0].mxu0 %v3476
    %v6901 = vpop.f32.mrb[0].mxu0
    %v6902 = vadd.f32 %v6862, %v6901
    %v6903 = vpop.f32.mrb[0].mxu0
    %v6904 = vpop.f32.mrb[0].mxu0
    %v6905 = vpop.f32.mrb[0].mxu0
    %6906 = vdwg.mxu0
    %6907 = vmatprep.subr.bf16.mxu0 0
    %6908 = vmatpush1.bf16.msra.mxu0 %v5669
    %6909 = vmatprep.subr.bf16.mxu0 0
    %6910 = vmatpush1.bf16.msra.mxu0 %v5676
    %6911 = vmatprep.subr.bf16.mxu0 0
    %6912 = vmatpush1.bf16.msra.mxu0 %v5683
    %6913 = vmatprep.subr.bf16.mxu0 0
    %6914 = vmatpush1.bf16.msra.mxu0 %v5690
    %6915 = vmatprep.subr.bf16.mxu0 0
    %6916 = vmatpush1.bf16.msra.mxu0 %v5697
    %6917 = vmatprep.subr.bf16.mxu0 0
    %6918 = vmatpush1.bf16.msra.mxu0 %v5704
    %6919 = vmatprep.subr.bf16.mxu0 0
    %6920 = vmatpush1.bf16.msra.mxu0 %v5711
    %6921 = vmatprep.subr.bf16.mxu0 0
    %6922 = vmatpush1.bf16.msra.mxu0 %v5718
    %6923 = vmatprep.subr.bf16.mxu0 0
    %6924 = vmatpush1.bf16.msra.mxu0 %v5725
    %6925 = vmatprep.subr.bf16.mxu0 0
    %6926 = vmatpush1.bf16.msra.mxu0 %v5732
    %6927 = vmatprep.subr.bf16.mxu0 0
    %6928 = vmatpush1.bf16.msra.mxu0 %v5739
    %6929 = vmatprep.subr.bf16.mxu0 0
    %6930 = vmatpush1.bf16.msra.mxu0 %v5746
    %6931 = vmatprep.subr.bf16.mxu0 0
    %6932 = vmatpush1.bf16.msra.mxu0 %v5753
    %6933 = vmatprep.subr.bf16.mxu0 0
    %6934 = vmatpush1.bf16.msra.mxu0 %v5760
    %6935 = vmatprep.subr.bf16.mxu0 0
    %6936 = vmatpush1.bf16.msra.mxu0 %v5767
    %6937 = vmatprep.subr.bf16.mxu0 0
    %6938 = vmatpush1.bf16.msra.mxu0 %v5774
    %6939 = vmatprep.mubr.bf16.mxu0 %v3479
    %6940 = vmatmul.mubr.bf16.gmra.mrb[0].mxu0 %v3478
    %v6941 = vpop.f32.mrb[0].mxu0
    %v6942 = vadd.f32 %v6902, %v6941
    %v6943 = vpop.f32.mrb[0].mxu0
    %v6944 = vpop.f32.mrb[0].mxu0
    %v6945 = vpop.f32.mrb[0].mxu0
    %6946 = vdwg.mxu0
    %6947 = vmatprep.subr.bf16.mxu0 0
    %6948 = vmatpush1.bf16.msra.mxu0 %v5781
    %6949 = vmatprep.subr.bf16.mxu0 0
    %6950 = vmatpush1.bf16.msra.mxu0 %v5788
    %6951 = vmatprep.subr.bf16.mxu0 0
    %6952 = vmatpush1.bf16.msra.mxu0 %v5795
    %6953 = vmatprep.subr.bf16.mxu0 0
    %6954 = vmatpush1.bf16.msra.mxu0 %v5802
    %6955 = vmatprep.subr.bf16.mxu0 0
    %6956 = vmatpush1.bf16.msra.mxu0 %v5809
    %6957 = vmatprep.subr.bf16.mxu0 0
    %6958 = vmatpush1.bf16.msra.mxu0 %v5816
    %6959 = vmatprep.subr.bf16.mxu0 0
    %6960 = vmatpush1.bf16.msra.mxu0 %v5823
    %6961 = vmatprep.subr.bf16.mxu0 0
    %6962 = vmatpush1.bf16.msra.mxu0 %v5830
    %6963 = vmatprep.subr.bf16.mxu0 0
    %6964 = vmatpush1.bf16.msra.mxu0 %v5837
    %6965 = vmatprep.subr.bf16.mxu0 0
    %6966 = vmatpush1.bf16.msra.mxu0 %v5844
    %6967 = vmatprep.subr.bf16.mxu0 0
    %6968 = vmatpush1.bf16.msra.mxu0 %v5851
    %6969 = vmatprep.subr.bf16.mxu0 0
    %6970 = vmatpush1.bf16.msra.mxu0 %v5858
    %6971 = vmatprep.subr.bf16.mxu0 0
    %6972 = vmatpush1.bf16.msra.mxu0 %v5865
    %6973 = vmatprep.subr.bf16.mxu0 0
    %6974 = vmatpush1.bf16.msra.mxu0 %v5872
    %6975 = vmatprep.subr.bf16.mxu0 0
    %6976 = vmatpush1.bf16.msra.mxu0 %v5879
    %6977 = vmatprep.subr.bf16.mxu0 0
    %6978 = vmatpush1.bf16.msra.mxu0 %v5886
    %6979 = vmatprep.mubr.bf16.mxu0 %v3481
    %6980 = vmatmul.mubr.bf16.gmra.mrb[0].mxu0 %v3480
    %v6981 = vpop.f32.mrb[0].mxu0
    %v6982 = vadd.f32 %v6942, %v6981
    %v6983 = vpop.f32.mrb[0].mxu0
    %v6984 = vpop.f32.mrb[0].mxu0
    %v6985 = vpop.f32.mrb[0].mxu0
    %6986 = vdwg.mxu0
    %v6987 = vtanh.pop %v6493
    %v6988 = vtanh.pop %v6495
    %v6989 = vtanh.pop %v6657
    %v6990 = vtanh.pop %v6659
    %v6991 = vtanh.pop %v6821
    %v6992 = vtanh.pop %v6823
    %v6993 = vtanh.pop %v6982
    %6994 = vst [vmem:[#allocation20] sm:$0xff] %v6987
    %6995 = vst [vmem:[#allocation20 + $0x8] sm:$0xff] %v6988
    %6996 = vst [vmem:[#allocation20 + $0x10] sm:$0xff] %v6989
    %6997 = vst [vmem:[#allocation20 + $0x18] sm:$0xff] %v6990
    %6998 = vst [vmem:[#allocation20 + $0x20] sm:$0xff] %v6991
    %6999 = vst [vmem:[#allocation20 + $0x28] sm:$0xff] %v6992
    %7000 = vst [vmem:[#allocation20 + $0x30] sm:$0xff] %v6993
    // Predicated region
    $region90: #{tpu_custom_call.1} parent=1 // pred_check
      _
    $region91: #{tpu_custom_call.1} parent=1 // pred_check_branch
      %7002 = sbr.rel (0) target = $region93
    $region92: #{tpu_custom_call.1} parent=1 // pred_region
      %s7004 = ssub.s32 896, 896
      %7005 = vsyncadd [#allocation4], %s7004
      %s7007 = sshll.u32 [#allocation20], 4
      %s7008 = int_to_ptr.vmem [resolvable:$true] %s7007
      %7010 = dma.vmem_to_hbm [thread:$0]  %s7008, 896, %s11, [#allocation4]
    $region93: #{tpu_custom_call.1} parent=1 // pred_fallthru
      _
    // Predicated region
    $region94: #{tpu_custom_call.1} parent=1 // pred_check
      _
    $region95: #{tpu_custom_call.1} parent=1 // pred_check_branch
      %7012 = sbr.rel (0) target = $region97
    $region96: #{tpu_custom_call.1} parent=1 // pred_region
      %7013 = dma.done [#allocation4], 896
    $region97: #{tpu_custom_call.1} parent=1 // pred_fallthru
      _
    %7014 = vsyncpa [#allocation3], 1
    %7015 = vsyncpa [#allocation6], 1
    %7016 = vsyncpa [#allocation9], 1
    %7017 = vsyncpa [#allocation12], 1
    %7018 = vsyncpa [#allocation15], 1
    %7019 = vsyncpa [#allocation18], 1
    %7020 = vsyncpa [#allocation4], 1

</llo_original>
